<compile_context>
chip_gen: v7x
topology: tpu7x:2x2x1
jax: 0.10.0
libtpu: 0.0.40
codegen_flags: <defaults>
</compile_context>

<pallas_src>
import functools

import numpy as np
import jax
import jax.numpy as jnp
from jax.experimental import pallas as pl
from jax.experimental.pallas import tpu as pltpu

BN_EPS = 1e-5
_LANES = 128


def _round_up(x, m):
    return ((x + m - 1) // m) * m


def _build_cfg(channels_noise, channels_img, features_g, embed_size):
    cin0 = channels_noise + embed_size
    raw = [
        (cin0,           features_g * 8, 3, 1, 0),
        (features_g * 8, features_g * 4, 4, 2, 1),
        (features_g * 4, features_g * 2, 4, 2, 1),
        (features_g * 2, features_g,     4, 2, 1),
        (features_g,     channels_img,   5, 1, 0),
    ]
    layers = []
    h = 1
    for li, (cin, cout, k, s, p) in enumerate(raw):
        hout = (h - 1) * s - 2 * p + k
        last = li == len(raw) - 1
        wc_out = hout * cout
        layers.append(dict(
            cin=cin, cout=cout, k=k, s=s, p=p,
            hin=h, win=h, hout=hout, wout=hout,
            wc_in=h * cin, wc_out=wc_out,
            wc_pad=_round_up(wc_out, _LANES) if last else wc_out,
            last=last))
        h = hout
    # packed-parameter layout: [gamma_l, beta_l] for each BN block ++ final bias row
    off = 0
    pp_slices = []
    for L in layers[:-1]:
        pp_slices.append((off, off + L["cout"]))
        off += 2 * L["cout"]
    return dict(layers=layers, pp_slices=pp_slices, bias_off=off,
                pp_len=off + layers[-1]["wc_pad"], cin0=cin0)


def _row_toeplitz(w_np, stride, padding, win, wout, wc_pad):
    """(Cin, Cout, k, k) ConvTranspose2d weight -> (Win*Cin, k*wc_pad) bf16-ready.

    T[kh][iw*Cin+ci, ow*Cout+co] = w[ci, co, kh, ow - iw*stride + padding]
    (zero where the kw tap is out of range), packed kh-major along columns.
    """
    cin, cout, k, _ = w_np.shape
    t = np.zeros((win * cin, k * wc_pad), np.float32)
    for kh in range(k):
        base = kh * wc_pad
        for iw in range(win):
            for ow in range(wout):
                kw = ow - iw * stride + padding
                if 0 <= kw < k:
                    t[iw * cin:(iw + 1) * cin,
                      base + ow * cout:base + (ow + 1) * cout] = w_np[:, :, kh, kw]
    return t


def make_generator(channels_noise, channels_img, features_g, num_classes,
                   img_size, embed_size):
    del img_size  # the architecture fixes the 1->3->6->12->24->28 spatial path
    cfg = _build_cfg(channels_noise, channels_img, features_g, embed_size)
    layers = cfg["layers"]

    # ------------------------- fused forward kernel -------------------------
    def _fused_kernel(n, z_ref, t0, t1, t2, t3, t4, pp_ref, o_ref):
        tws = (t0, t1, t2, t3, t4)
        x = z_ref[...]                                            # (hin*n, win*cin)
        for li, L in enumerate(layers):
            k, s, p = L["k"], L["s"], L["p"]
            hin, hout, wout, cout = L["hin"], L["hout"], L["wout"], L["cout"]
            wc = L["wc_pad"]
            # one MXU matmul covers all k kernel rows (bf16 in, f32 accumulate)
            y_all = jnp.dot(x.astype(jnp.bfloat16), tws[li][...],
                            preferred_element_type=jnp.float32)   # (hin*n, k*wc)
            xt = [y_all[:, kh * wc:(kh + 1) * wc] for kh in range(k)]
            # output row oh collects the taps with oh == ih*s - p + kh
            blocks = []
            for oh in range(hout):
                acc = None
                for kh in range(k):
                    num = oh + p - kh
                    if num % s:
                        continue
                    ih = num // s
                    if ih < 0 or ih >= hin:
                        continue
                    blk = xt[kh][ih * n:(ih + 1) * n, :]
                    acc = blk if acc is None else acc + blk
                if acc is None:
                    acc = jnp.zeros((n, wc), jnp.float32)
                blocks.append(acc)
            y = jnp.concatenate(blocks, axis=0)                   # (hout*n, wc)

            if not L["last"]:
                # train-mode BatchNorm2d (biased batch stats) + ReLU.
                # (ConvTranspose2d bias dropped: mean subtraction cancels it.)
                g_off, b_off = cfg["pp_slices"][li]
                gamma = pp_ref[:, g_off:g_off + cout]             # (1, cout)
                beta = pp_ref[:, b_off:b_off + cout]              # (1, cout)
                cnt = float(hout * n * wout)
                cs = jnp.sum(y, axis=0, keepdims=True)            # (1, wc)
                cs2 = jnp.sum(y * y, axis=0, keepdims=True)       # (1, wc)
                ch_s = sum(cs[:, w * cout:(w + 1) * cout] for w in range(wout))
                ch_s2 = sum(cs2[:, w * cout:(w + 1) * cout] for w in range(wout))
                mean = ch_s / cnt
                var = ch_s2 / cnt - mean * mean
                scale = gamma * jax.lax.rsqrt(var + BN_EPS)
                shift = beta - mean * scale
                st = jnp.concatenate([scale, shift], axis=0)      # (2, cout)
                st_t = jnp.concatenate([st] * wout, axis=1)       # (2, wc)
                x = jnp.maximum(y * st_t[0:1, :] + st_t[1:2, :], 0.0)
            else:
                bias = pp_ref[:, cfg["bias_off"]:cfg["bias_off"] + wc]  # (1, wc)
                o_ref[...] = jnp.tanh(y + bias)

    # --------------------------------- init ---------------------------------
    def init(key):
        keys = jax.random.split(key, len(layers) + 2)
        tws, raw_ws = [], []
        for li, L in enumerate(layers):
            w = 0.02 * jax.random.normal(
                keys[li], (L["cin"], L["cout"], L["k"], L["k"]), jnp.float32)
            # round once to bf16 so packed (bf16) and reference weights agree
            w = w.astype(jnp.bfloat16).astype(jnp.float32)
            raw_ws.append(w)
            t = _row_toeplitz(np.asarray(w), L["s"], L["p"],
                              L["win"], L["wout"], L["wc_pad"])
            tws.append(jnp.asarray(t, jnp.bfloat16))
        b_final = 0.01 * jax.random.normal(keys[-2], (channels_img,), jnp.float32)
        embed = 0.02 * jax.random.normal(
            keys[-1], (num_classes, embed_size), jnp.float32)
        # pack gamma/beta (per BN block) + the tiled final-layer bias row.
        pp = np.zeros((1, cfg["pp_len"]), np.float32)
        for (g_off, _b_off), L in zip(cfg["pp_slices"], layers[:-1]):
            pp[0, g_off:g_off + L["cout"]] = 1.0                  # gamma=1, beta=0
        last = layers[-1]
        brow = np.tile(np.asarray(b_final), last["wout"])
        pp[0, cfg["bias_off"]:cfg["bias_off"] + brow.size] = brow
        return {"embed": embed, "tw": tuple(tws), "pp": jnp.asarray(pp),
                "raw_w": tuple(raw_ws), "b_final": b_final}

    # -------------------------------- forward -------------------------------
    @jax.jit
    def forward(params, x, labels):
        n = x.shape[0]
        emb = params["embed"][labels]                              # (n, embed)
        z2d = jnp.concatenate([x.reshape(n, -1), emb], axis=1)     # rows=n, cols=c
        last = layers[-1]
        vmem = pl.BlockSpec(memory_space=pltpu.MemorySpace.VMEM)
        out2d = pl.pallas_call(
            functools.partial(_fused_kernel, n),
            out_shape=jax.ShapeDtypeStruct(
                (last["hout"] * n, last["wc_pad"]), jnp.float32),
            in_specs=[vmem] * (2 + len(layers)),
            out_specs=vmem,
        )(z2d.astype(jnp.float32), *params["tw"], params["pp"])
        hout, wout, cimg = last["hout"], last["wout"], last["cout"]
        img = out2d[:, :wout * cimg].reshape(hout, n, wout, cimg)
        return img.transpose(1, 3, 0, 2)                           # NCHW boundary

    return init, forward, cfg


# ------------------------ pure-JAX reference (f32) --------------------------

def _conv_transpose_ref(x, w, stride, padding):
    n, _ci, h, wd = x.shape
    _, co, k, _ = w.shape
    hf = (h - 1) * stride + k
    wf = (wd - 1) * stride + k
    out = jnp.zeros((n, co, hf, wf), jnp.float32)
    for kh in range(k):
        for kw in range(k):
            contrib = jnp.einsum("nchw,cd->ndhw", x, w[:, :, kh, kw])
            out = out.at[:, :, kh:kh + (h - 1) * stride + 1:stride,
                               kw:kw + (wd - 1) * stride + 1:stride].add(contrib)
    if padding:
        out = out[:, :, padding:hf - padding, padding:wf - padding]
    return out


def _generator_ref(params, layers, x, labels):
    h = jnp.concatenate([x, params["embed"][labels][:, :, None, None]], axis=1)
    for li, L in enumerate(layers):
        y = _conv_transpose_ref(h, params["raw_w"][li], L["s"], L["p"])
        if not L["last"]:
            mean = jnp.mean(y, axis=(0, 2, 3), keepdims=True)
            var = jnp.mean((y - mean) ** 2, axis=(0, 2, 3), keepdims=True)
            h = jnp.maximum((y - mean) * jax.lax.rsqrt(var + BN_EPS), 0.0)
        else:
            h = jnp.tanh(y + params["b_final"][None, :, None, None])
    return h


if __name__ == "__main__":
    channels_noise, channels_img, features_g = 4, 1, 8
    num_classes, img_size, embed_size = 10, 28, 4
    N = 2

    init, forward, cfg = make_generator(channels_noise, channels_img, features_g,
                                        num_classes, img_size, embed_size)

    key = jax.random.PRNGKey(0)
    pkey, xkey, lkey = jax.random.split(key, 3)
    params = init(pkey)
    x = jax.random.normal(xkey, (N, channels_noise, 1, 1), jnp.float32)
    labels = jax.random.randint(lkey, (N,), 0, num_classes)

    out = jax.block_until_ready(forward(params, x, labels))
    # 1x1 -> 3 -> 6 -> 12 -> 24 -> 28 spatial; Tanh output in [-1, 1]
    assert out.shape == (N, channels_img, 28, 28), out.shape
    assert bool(jnp.all(jnp.isfinite(out)))
    assert bool(jnp.all(jnp.abs(out) <= 1.0))

    # sanity check the fused kernel against a straightforward JAX reference
    ref = _generator_ref(params, cfg["layers"], x, labels)
    max_err = float(jnp.max(jnp.abs(out - ref)))
    assert max_err < 0.1, max_err

    print("KERNEL_OK")
</pallas_src>

<mosaic_0001>
module attributes {stable_mosaic.version = 11 : i64} {
  func.func @_fused_kernel(%arg0: memref<2x8xf32, #tpu.memory_space<vmem>>, %arg1: memref<8x576xbf16, #tpu.memory_space<vmem>>, %arg2: memref<192x768xbf16, #tpu.memory_space<vmem>>, %arg3: memref<192x768xbf16, #tpu.memory_space<vmem>>, %arg4: memref<192x768xbf16, #tpu.memory_space<vmem>>, %arg5: memref<192x640xbf16, #tpu.memory_space<vmem>>, %arg6: memref<1x368xf32, #tpu.memory_space<vmem>>, %arg7: memref<56x128xf32, #tpu.memory_space<vmem>>) attributes {dimension_semantics = [], scalar_prefetch = 0 : i64, scratch_operands = 0 : i64, tpu.core_type = #tpu.core_type<tc>} {
    %c0 = arith.constant 0 : index
    %c0_0 = arith.constant 0 : index
    %0 = vector.load %arg0[%c0, %c0_0] : memref<2x8xf32, #tpu.memory_space<vmem>>, vector<2x8xf32>
    %1 = arith.truncf %0 : vector<2x8xf32> to vector<2x8xbf16>
    %c0_1 = arith.constant 0 : index
    %c0_2 = arith.constant 0 : index
    %2 = vector.load %arg1[%c0_1, %c0_2] : memref<8x576xbf16, #tpu.memory_space<vmem>>, vector<8x576xbf16>
    %cst = arith.constant dense<0.000000e+00> : vector<2x576xf32>
    %3 = tpu.matmul %1, %2, %cst {dimension_numbers = #tpu.dot_dimension_numbers<[1], [0], [0], [1], [0, 0, 1, 1], [], []>} : vector<2x8xbf16>, vector<8x576xbf16>, vector<2x576xf32> -> vector<2x576xf32>
    %4 = vector.extract_strided_slice %3 {offsets = [0, 0], sizes = [2, 192], strides = [1, 1]} : vector<2x576xf32> to vector<2x192xf32>
    %5 = vector.extract_strided_slice %3 {offsets = [0, 192], sizes = [2, 192], strides = [1, 1]} : vector<2x576xf32> to vector<2x192xf32>
    %6 = vector.extract_strided_slice %3 {offsets = [0, 384], sizes = [2, 192], strides = [1, 1]} : vector<2x576xf32> to vector<2x192xf32>
    %7 = tpu.concatenate %4, %5, %6 in 0 : vector<2x192xf32>, vector<2x192xf32>, vector<2x192xf32> -> vector<6x192xf32>
    %c0_3 = arith.constant 0 : index
    %c0_4 = arith.constant 0 : index
    %8 = vector.load %arg6[%c0_3, %c0_4] : memref<1x368xf32, #tpu.memory_space<vmem>>, vector<1x64xf32>
    %c0_5 = arith.constant 0 : index
    %c64 = arith.constant 64 : index
    %9 = vector.load %arg6[%c0_5, %c64] : memref<1x368xf32, #tpu.memory_space<vmem>>, vector<1x64xf32>
    %cst_6 = arith.constant dense<0.000000e+00> : vector<192xf32>
    %10 = vector.multi_reduction <add>, %7, %cst_6 [0] : vector<6x192xf32> to vector<192xf32>
    %11 = vector.shape_cast %10 : vector<192xf32> to vector<1x192xf32>
    %12 = arith.mulf %7, %7 : vector<6x192xf32>
    %cst_7 = arith.constant dense<0.000000e+00> : vector<192xf32>
    %13 = vector.multi_reduction <add>, %12, %cst_7 [0] : vector<6x192xf32> to vector<192xf32>
    %14 = vector.shape_cast %13 : vector<192xf32> to vector<1x192xf32>
    %15 = vector.extract_strided_slice %11 {offsets = [0, 0], sizes = [1, 64], strides = [1, 1]} : vector<1x192xf32> to vector<1x64xf32>
    %cst_8 = arith.constant 0.000000e+00 : f32
    %16 = vector.broadcast %cst_8 : f32 to vector<1x64xf32>
    %17 = arith.addf %16, %15 : vector<1x64xf32>
    %18 = vector.extract_strided_slice %11 {offsets = [0, 64], sizes = [1, 64], strides = [1, 1]} : vector<1x192xf32> to vector<1x64xf32>
    %19 = arith.addf %17, %18 : vector<1x64xf32>
    %20 = vector.extract_strided_slice %11 {offsets = [0, 128], sizes = [1, 64], strides = [1, 1]} : vector<1x192xf32> to vector<1x64xf32>
    %21 = arith.addf %19, %20 : vector<1x64xf32>
    %22 = vector.extract_strided_slice %14 {offsets = [0, 0], sizes = [1, 64], strides = [1, 1]} : vector<1x192xf32> to vector<1x64xf32>
    %cst_9 = arith.constant 0.000000e+00 : f32
    %23 = vector.broadcast %cst_9 : f32 to vector<1x64xf32>
    %24 = arith.addf %23, %22 : vector<1x64xf32>
    %25 = vector.extract_strided_slice %14 {offsets = [0, 64], sizes = [1, 64], strides = [1, 1]} : vector<1x192xf32> to vector<1x64xf32>
    %26 = arith.addf %24, %25 : vector<1x64xf32>
    %27 = vector.extract_strided_slice %14 {offsets = [0, 128], sizes = [1, 64], strides = [1, 1]} : vector<1x192xf32> to vector<1x64xf32>
    %28 = arith.addf %26, %27 : vector<1x64xf32>
    %cst_10 = arith.constant 1.800000e+01 : f32
    %29 = vector.broadcast %cst_10 : f32 to vector<1x64xf32>
    %30 = arith.divf %21, %29 : vector<1x64xf32>
    %cst_11 = arith.constant 1.800000e+01 : f32
    %31 = vector.broadcast %cst_11 : f32 to vector<1x64xf32>
    %32 = arith.divf %28, %31 : vector<1x64xf32>
    %33 = arith.mulf %30, %30 : vector<1x64xf32>
    %34 = arith.subf %32, %33 : vector<1x64xf32>
    %cst_12 = arith.constant 9.99999974E-6 : f32
    %35 = vector.broadcast %cst_12 : f32 to vector<1x64xf32>
    %36 = arith.addf %34, %35 : vector<1x64xf32>
    %37 = math.rsqrt %36 : vector<1x64xf32>
    %38 = arith.mulf %8, %37 : vector<1x64xf32>
    %39 = arith.mulf %30, %38 : vector<1x64xf32>
    %40 = arith.subf %9, %39 : vector<1x64xf32>
    %41 = tpu.concatenate %38, %40 in 0 : vector<1x64xf32>, vector<1x64xf32> -> vector<2x64xf32>
    %42 = tpu.concatenate %41, %41, %41 in 1 : vector<2x64xf32>, vector<2x64xf32>, vector<2x64xf32> -> vector<2x192xf32>
    %43 = vector.extract_strided_slice %42 {offsets = [0, 0], sizes = [1, 192], strides = [1, 1]} : vector<2x192xf32> to vector<1x192xf32>
    %44 = vector.broadcast %43 : vector<1x192xf32> to vector<6x192xf32>
    %45 = arith.mulf %7, %44 : vector<6x192xf32>
    %46 = vector.extract_strided_slice %42 {offsets = [1, 0], sizes = [1, 192], strides = [1, 1]} : vector<2x192xf32> to vector<1x192xf32>
    %47 = vector.broadcast %46 : vector<1x192xf32> to vector<6x192xf32>
    %48 = arith.addf %45, %47 : vector<6x192xf32>
    %cst_13 = arith.constant 0.000000e+00 : f32
    %49 = vector.broadcast %cst_13 : f32 to vector<6x192xf32>
    %50 = arith.maximumf %48, %49 : vector<6x192xf32>
    %51 = arith.truncf %50 : vector<6x192xf32> to vector<6x192xbf16>
    %c0_14 = arith.constant 0 : index
    %c0_15 = arith.constant 0 : index
    %52 = vector.load %arg2[%c0_14, %c0_15] : memref<192x768xbf16, #tpu.memory_space<vmem>>, vector<192x768xbf16>
    %cst_16 = arith.constant dense<0.000000e+00> : vector<6x768xf32>
    %53 = tpu.matmul %51, %52, %cst_16 {dimension_numbers = #tpu.dot_dimension_numbers<[1], [0], [0], [1], [0, 0, 1, 1], [], []>} : vector<6x192xbf16>, vector<192x768xbf16>, vector<6x768xf32> -> vector<6x768xf32>
    %54 = vector.extract_strided_slice %53 {offsets = [0, 0], sizes = [6, 192], strides = [1, 1]} : vector<6x768xf32> to vector<6x192xf32>
    %55 = vector.extract_strided_slice %53 {offsets = [0, 192], sizes = [6, 192], strides = [1, 1]} : vector<6x768xf32> to vector<6x192xf32>
    %56 = vector.extract_strided_slice %53 {offsets = [0, 384], sizes = [6, 192], strides = [1, 1]} : vector<6x768xf32> to vector<6x192xf32>
    %57 = vector.extract_strided_slice %53 {offsets = [0, 576], sizes = [6, 192], strides = [1, 1]} : vector<6x768xf32> to vector<6x192xf32>
    %58 = vector.extract_strided_slice %55 {offsets = [0, 0], sizes = [2, 192], strides = [1, 1]} : vector<6x192xf32> to vector<2x192xf32>
    %59 = vector.extract_strided_slice %54 {offsets = [2, 0], sizes = [2, 192], strides = [1, 1]} : vector<6x192xf32> to vector<2x192xf32>
    %60 = vector.extract_strided_slice %56 {offsets = [0, 0], sizes = [2, 192], strides = [1, 1]} : vector<6x192xf32> to vector<2x192xf32>
    %61 = arith.addf %59, %60 : vector<2x192xf32>
    %62 = vector.extract_strided_slice %55 {offsets = [2, 0], sizes = [2, 192], strides = [1, 1]} : vector<6x192xf32> to vector<2x192xf32>
    %63 = vector.extract_strided_slice %57 {offsets = [0, 0], sizes = [2, 192], strides = [1, 1]} : vector<6x192xf32> to vector<2x192xf32>
    %64 = arith.addf %62, %63 : vector<2x192xf32>
    %65 = vector.extract_strided_slice %54 {offsets = [4, 0], sizes = [2, 192], strides = [1, 1]} : vector<6x192xf32> to vector<2x192xf32>
    %66 = vector.extract_strided_slice %56 {offsets = [2, 0], sizes = [2, 192], strides = [1, 1]} : vector<6x192xf32> to vector<2x192xf32>
    %67 = arith.addf %65, %66 : vector<2x192xf32>
    %68 = vector.extract_strided_slice %55 {offsets = [4, 0], sizes = [2, 192], strides = [1, 1]} : vector<6x192xf32> to vector<2x192xf32>
    %69 = vector.extract_strided_slice %57 {offsets = [2, 0], sizes = [2, 192], strides = [1, 1]} : vector<6x192xf32> to vector<2x192xf32>
    %70 = arith.addf %68, %69 : vector<2x192xf32>
    %71 = vector.extract_strided_slice %56 {offsets = [4, 0], sizes = [2, 192], strides = [1, 1]} : vector<6x192xf32> to vector<2x192xf32>
    %72 = tpu.concatenate %58, %61, %64, %67, %70, %71 in 0 : vector<2x192xf32>, vector<2x192xf32>, vector<2x192xf32>, vector<2x192xf32>, vector<2x192xf32>, vector<2x192xf32> -> vector<12x192xf32>
    %c0_17 = arith.constant 0 : index
    %c128 = arith.constant 128 : index
    %73 = vector.load %arg6[%c0_17, %c128] : memref<1x368xf32, #tpu.memory_space<vmem>>, vector<1x32xf32>
    %c0_18 = arith.constant 0 : index
    %c160 = arith.constant 160 : index
    %74 = vector.load %arg6[%c0_18, %c160] : memref<1x368xf32, #tpu.memory_space<vmem>>, vector<1x32xf32>
    %cst_19 = arith.constant dense<0.000000e+00> : vector<192xf32>
    %75 = vector.multi_reduction <add>, %72, %cst_19 [0] : vector<12x192xf32> to vector<192xf32>
    %76 = vector.shape_cast %75 : vector<192xf32> to vector<1x192xf32>
    %77 = arith.mulf %72, %72 : vector<12x192xf32>
    %cst_20 = arith.constant dense<0.000000e+00> : vector<192xf32>
    %78 = vector.multi_reduction <add>, %77, %cst_20 [0] : vector<12x192xf32> to vector<192xf32>
    %79 = vector.shape_cast %78 : vector<192xf32> to vector<1x192xf32>
    %80 = vector.extract_strided_slice %76 {offsets = [0, 0], sizes = [1, 32], strides = [1, 1]} : vector<1x192xf32> to vector<1x32xf32>
    %cst_21 = arith.constant 0.000000e+00 : f32
    %81 = vector.broadcast %cst_21 : f32 to vector<1x32xf32>
    %82 = arith.addf %81, %80 : vector<1x32xf32>
    %83 = vector.extract_strided_slice %76 {offsets = [0, 32], sizes = [1, 32], strides = [1, 1]} : vector<1x192xf32> to vector<1x32xf32>
    %84 = arith.addf %82, %83 : vector<1x32xf32>
    %85 = vector.extract_strided_slice %76 {offsets = [0, 64], sizes = [1, 32], strides = [1, 1]} : vector<1x192xf32> to vector<1x32xf32>
    %86 = arith.addf %84, %85 : vector<1x32xf32>
    %87 = vector.extract_strided_slice %76 {offsets = [0, 96], sizes = [1, 32], strides = [1, 1]} : vector<1x192xf32> to vector<1x32xf32>
    %88 = arith.addf %86, %87 : vector<1x32xf32>
    %89 = vector.extract_strided_slice %76 {offsets = [0, 128], sizes = [1, 32], strides = [1, 1]} : vector<1x192xf32> to vector<1x32xf32>
    %90 = arith.addf %88, %89 : vector<1x32xf32>
    %91 = vector.extract_strided_slice %76 {offsets = [0, 160], sizes = [1, 32], strides = [1, 1]} : vector<1x192xf32> to vector<1x32xf32>
    %92 = arith.addf %90, %91 : vector<1x32xf32>
    %93 = vector.extract_strided_slice %79 {offsets = [0, 0], sizes = [1, 32], strides = [1, 1]} : vector<1x192xf32> to vector<1x32xf32>
    %cst_22 = arith.constant 0.000000e+00 : f32
    %94 = vector.broadcast %cst_22 : f32 to vector<1x32xf32>
    %95 = arith.addf %94, %93 : vector<1x32xf32>
    %96 = vector.extract_strided_slice %79 {offsets = [0, 32], sizes = [1, 32], strides = [1, 1]} : vector<1x192xf32> to vector<1x32xf32>
    %97 = arith.addf %95, %96 : vector<1x32xf32>
    %98 = vector.extract_strided_slice %79 {offsets = [0, 64], sizes = [1, 32], strides = [1, 1]} : vector<1x192xf32> to vector<1x32xf32>
    %99 = arith.addf %97, %98 : vector<1x32xf32>
    %100 = vector.extract_strided_slice %79 {offsets = [0, 96], sizes = [1, 32], strides = [1, 1]} : vector<1x192xf32> to vector<1x32xf32>
    %101 = arith.addf %99, %100 : vector<1x32xf32>
    %102 = vector.extract_strided_slice %79 {offsets = [0, 128], sizes = [1, 32], strides = [1, 1]} : vector<1x192xf32> to vector<1x32xf32>
    %103 = arith.addf %101, %102 : vector<1x32xf32>
    %104 = vector.extract_strided_slice %79 {offsets = [0, 160], sizes = [1, 32], strides = [1, 1]} : vector<1x192xf32> to vector<1x32xf32>
    %105 = arith.addf %103, %104 : vector<1x32xf32>
    %cst_23 = arith.constant 7.200000e+01 : f32
    %106 = vector.broadcast %cst_23 : f32 to vector<1x32xf32>
    %107 = arith.divf %92, %106 : vector<1x32xf32>
    %cst_24 = arith.constant 7.200000e+01 : f32
    %108 = vector.broadcast %cst_24 : f32 to vector<1x32xf32>
    %109 = arith.divf %105, %108 : vector<1x32xf32>
    %110 = arith.mulf %107, %107 : vector<1x32xf32>
    %111 = arith.subf %109, %110 : vector<1x32xf32>
    %cst_25 = arith.constant 9.99999974E-6 : f32
    %112 = vector.broadcast %cst_25 : f32 to vector<1x32xf32>
    %113 = arith.addf %111, %112 : vector<1x32xf32>
    %114 = math.rsqrt %113 : vector<1x32xf32>
    %115 = arith.mulf %73, %114 : vector<1x32xf32>
    %116 = arith.mulf %107, %115 : vector<1x32xf32>
    %117 = arith.subf %74, %116 : vector<1x32xf32>
    %118 = tpu.concatenate %115, %117 in 0 : vector<1x32xf32>, vector<1x32xf32> -> vector<2x32xf32>
    %119 = tpu.concatenate %118, %118, %118, %118, %118, %118 in 1 : vector<2x32xf32>, vector<2x32xf32>, vector<2x32xf32>, vector<2x32xf32>, vector<2x32xf32>, vector<2x32xf32> -> vector<2x192xf32>
    %120 = vector.extract_strided_slice %119 {offsets = [0, 0], sizes = [1, 192], strides = [1, 1]} : vector<2x192xf32> to vector<1x192xf32>
    %121 = vector.broadcast %120 : vector<1x192xf32> to vector<12x192xf32>
    %122 = arith.mulf %72, %121 : vector<12x192xf32>
    %123 = vector.extract_strided_slice %119 {offsets = [1, 0], sizes = [1, 192], strides = [1, 1]} : vector<2x192xf32> to vector<1x192xf32>
    %124 = vector.broadcast %123 : vector<1x192xf32> to vector<12x192xf32>
    %125 = arith.addf %122, %124 : vector<12x192xf32>
    %cst_26 = arith.constant 0.000000e+00 : f32
    %126 = vector.broadcast %cst_26 : f32 to vector<12x192xf32>
    %127 = arith.maximumf %125, %126 : vector<12x192xf32>
    %128 = arith.truncf %127 : vector<12x192xf32> to vector<12x192xbf16>
    %c0_27 = arith.constant 0 : index
    %c0_28 = arith.constant 0 : index
    %129 = vector.load %arg3[%c0_27, %c0_28] : memref<192x768xbf16, #tpu.memory_space<vmem>>, vector<192x768xbf16>
    %cst_29 = arith.constant dense<0.000000e+00> : vector<12x768xf32>
    %130 = tpu.matmul %128, %129, %cst_29 {dimension_numbers = #tpu.dot_dimension_numbers<[1], [0], [0], [1], [0, 0, 1, 1], [], []>} : vector<12x192xbf16>, vector<192x768xbf16>, vector<12x768xf32> -> vector<12x768xf32>
    %131 = vector.extract_strided_slice %130 {offsets = [0, 0], sizes = [12, 192], strides = [1, 1]} : vector<12x768xf32> to vector<12x192xf32>
    %132 = vector.extract_strided_slice %130 {offsets = [0, 192], sizes = [12, 192], strides = [1, 1]} : vector<12x768xf32> to vector<12x192xf32>
    %133 = vector.extract_strided_slice %130 {offsets = [0, 384], sizes = [12, 192], strides = [1, 1]} : vector<12x768xf32> to vector<12x192xf32>
    %134 = vector.extract_strided_slice %130 {offsets = [0, 576], sizes = [12, 192], strides = [1, 1]} : vector<12x768xf32> to vector<12x192xf32>
    %135 = vector.extract_strided_slice %132 {offsets = [0, 0], sizes = [2, 192], strides = [1, 1]} : vector<12x192xf32> to vector<2x192xf32>
    %136 = vector.extract_strided_slice %131 {offsets = [2, 0], sizes = [2, 192], strides = [1, 1]} : vector<12x192xf32> to vector<2x192xf32>
    %137 = vector.extract_strided_slice %133 {offsets = [0, 0], sizes = [2, 192], strides = [1, 1]} : vector<12x192xf32> to vector<2x192xf32>
    %138 = arith.addf %136, %137 : vector<2x192xf32>
    %139 = vector.extract_strided_slice %132 {offsets = [2, 0], sizes = [2, 192], strides = [1, 1]} : vector<12x192xf32> to vector<2x192xf32>
    %140 = vector.extract_strided_slice %134 {offsets = [0, 0], sizes = [2, 192], strides = [1, 1]} : vector<12x192xf32> to vector<2x192xf32>
    %141 = arith.addf %139, %140 : vector<2x192xf32>
    %142 = vector.extract_strided_slice %131 {offsets = [4, 0], sizes = [2, 192], strides = [1, 1]} : vector<12x192xf32> to vector<2x192xf32>
    %143 = vector.extract_strided_slice %133 {offsets = [2, 0], sizes = [2, 192], strides = [1, 1]} : vector<12x192xf32> to vector<2x192xf32>
    %144 = arith.addf %142, %143 : vector<2x192xf32>
    %145 = vector.extract_strided_slice %132 {offsets = [4, 0], sizes = [2, 192], strides = [1, 1]} : vector<12x192xf32> to vector<2x192xf32>
    %146 = vector.extract_strided_slice %134 {offsets = [2, 0], sizes = [2, 192], strides = [1, 1]} : vector<12x192xf32> to vector<2x192xf32>
    %147 = arith.addf %145, %146 : vector<2x192xf32>
    %148 = vector.extract_strided_slice %131 {offsets = [6, 0], sizes = [2, 192], strides = [1, 1]} : vector<12x192xf32> to vector<2x192xf32>
    %149 = vector.extract_strided_slice %133 {offsets = [4, 0], sizes = [2, 192], strides = [1, 1]} : vector<12x192xf32> to vector<2x192xf32>
    %150 = arith.addf %148, %149 : vector<2x192xf32>
    %151 = vector.extract_strided_slice %132 {offsets = [6, 0], sizes = [2, 192], strides = [1, 1]} : vector<12x192xf32> to vector<2x192xf32>
    %152 = vector.extract_strided_slice %134 {offsets = [4, 0], sizes = [2, 192], strides = [1, 1]} : vector<12x192xf32> to vector<2x192xf32>
    %153 = arith.addf %151, %152 : vector<2x192xf32>
    %154 = vector.extract_strided_slice %131 {offsets = [8, 0], sizes = [2, 192], strides = [1, 1]} : vector<12x192xf32> to vector<2x192xf32>
    %155 = vector.extract_strided_slice %133 {offsets = [6, 0], sizes = [2, 192], strides = [1, 1]} : vector<12x192xf32> to vector<2x192xf32>
    %156 = arith.addf %154, %155 : vector<2x192xf32>
    %157 = vector.extract_strided_slice %132 {offsets = [8, 0], sizes = [2, 192], strides = [1, 1]} : vector<12x192xf32> to vector<2x192xf32>
    %158 = vector.extract_strided_slice %134 {offsets = [6, 0], sizes = [2, 192], strides = [1, 1]} : vector<12x192xf32> to vector<2x192xf32>
    %159 = arith.addf %157, %158 : vector<2x192xf32>
    %160 = vector.extract_strided_slice %131 {offsets = [10, 0], sizes = [2, 192], strides = [1, 1]} : vector<12x192xf32> to vector<2x192xf32>
    %161 = vector.extract_strided_slice %133 {offsets = [8, 0], sizes = [2, 192], strides = [1, 1]} : vector<12x192xf32> to vector<2x192xf32>
    %162 = arith.addf %160, %161 : vector<2x192xf32>
    %163 = vector.extract_strided_slice %132 {offsets = [10, 0], sizes = [2, 192], strides = [1, 1]} : vector<12x192xf32> to vector<2x192xf32>
    %164 = vector.extract_strided_slice %134 {offsets = [8, 0], sizes = [2, 192], strides = [1, 1]} : vector<12x192xf32> to vector<2x192xf32>
    %165 = arith.addf %163, %164 : vector<2x192xf32>
    %166 = vector.extract_strided_slice %133 {offsets = [10, 0], sizes = [2, 192], strides = [1, 1]} : vector<12x192xf32> to vector<2x192xf32>
    %167 = tpu.concatenate %135, %138, %141, %144, %147, %150, %153, %156, %159, %162, %165, %166 in 0 : vector<2x192xf32>, vector<2x192xf32>, vector<2x192xf32>, vector<2x192xf32>, vector<2x192xf32>, vector<2x192xf32>, vector<2x192xf32>, vector<2x192xf32>, vector<2x192xf32>, vector<2x192xf32>, vector<2x192xf32>, vector<2x192xf32> -> vector<24x192xf32>
    %c0_30 = arith.constant 0 : index
    %c192 = arith.constant 192 : index
    %168 = vector.load %arg6[%c0_30, %c192] : memref<1x368xf32, #tpu.memory_space<vmem>>, vector<1x16xf32>
    %c0_31 = arith.constant 0 : index
    %c208 = arith.constant 208 : index
    %169 = vector.load %arg6[%c0_31, %c208] : memref<1x368xf32, #tpu.memory_space<vmem>>, vector<1x16xf32>
    %cst_32 = arith.constant dense<0.000000e+00> : vector<192xf32>
    %170 = vector.multi_reduction <add>, %167, %cst_32 [0] : vector<24x192xf32> to vector<192xf32>
    %171 = vector.shape_cast %170 : vector<192xf32> to vector<1x192xf32>
    %172 = arith.mulf %167, %167 : vector<24x192xf32>
    %cst_33 = arith.constant dense<0.000000e+00> : vector<192xf32>
    %173 = vector.multi_reduction <add>, %172, %cst_33 [0] : vector<24x192xf32> to vector<192xf32>
    %174 = vector.shape_cast %173 : vector<192xf32> to vector<1x192xf32>
    %175 = vector.extract_strided_slice %171 {offsets = [0, 0], sizes = [1, 16], strides = [1, 1]} : vector<1x192xf32> to vector<1x16xf32>
    %cst_34 = arith.constant 0.000000e+00 : f32
    %176 = vector.broadcast %cst_34 : f32 to vector<1x16xf32>
    %177 = arith.addf %176, %175 : vector<1x16xf32>
    %178 = vector.extract_strided_slice %171 {offsets = [0, 16], sizes = [1, 16], strides = [1, 1]} : vector<1x192xf32> to vector<1x16xf32>
    %179 = arith.addf %177, %178 : vector<1x16xf32>
    %180 = vector.extract_strided_slice %171 {offsets = [0, 32], sizes = [1, 16], strides = [1, 1]} : vector<1x192xf32> to vector<1x16xf32>
    %181 = arith.addf %179, %180 : vector<1x16xf32>
    %182 = vector.extract_strided_slice %171 {offsets = [0, 48], sizes = [1, 16], strides = [1, 1]} : vector<1x192xf32> to vector<1x16xf32>
    %183 = arith.addf %181, %182 : vector<1x16xf32>
    %184 = vector.extract_strided_slice %171 {offsets = [0, 64], sizes = [1, 16], strides = [1, 1]} : vector<1x192xf32> to vector<1x16xf32>
    %185 = arith.addf %183, %184 : vector<1x16xf32>
    %186 = vector.extract_strided_slice %171 {offsets = [0, 80], sizes = [1, 16], strides = [1, 1]} : vector<1x192xf32> to vector<1x16xf32>
    %187 = arith.addf %185, %186 : vector<1x16xf32>
    %188 = vector.extract_strided_slice %171 {offsets = [0, 96], sizes = [1, 16], strides = [1, 1]} : vector<1x192xf32> to vector<1x16xf32>
    %189 = arith.addf %187, %188 : vector<1x16xf32>
    %190 = vector.extract_strided_slice %171 {offsets = [0, 112], sizes = [1, 16], strides = [1, 1]} : vector<1x192xf32> to vector<1x16xf32>
    %191 = arith.addf %189, %190 : vector<1x16xf32>
    %192 = vector.extract_strided_slice %171 {offsets = [0, 128], sizes = [1, 16], strides = [1, 1]} : vector<1x192xf32> to vector<1x16xf32>
    %193 = arith.addf %191, %192 : vector<1x16xf32>
    %194 = vector.extract_strided_slice %171 {offsets = [0, 144], sizes = [1, 16], strides = [1, 1]} : vector<1x192xf32> to vector<1x16xf32>
    %195 = arith.addf %193, %194 : vector<1x16xf32>
    %196 = vector.extract_strided_slice %171 {offsets = [0, 160], sizes = [1, 16], strides = [1, 1]} : vector<1x192xf32> to vector<1x16xf32>
    %197 = arith.addf %195, %196 : vector<1x16xf32>
    %198 = vector.extract_strided_slice %171 {offsets = [0, 176], sizes = [1, 16], strides = [1, 1]} : vector<1x192xf32> to vector<1x16xf32>
    %199 = arith.addf %197, %198 : vector<1x16xf32>
    %200 = vector.extract_strided_slice %174 {offsets = [0, 0], sizes = [1, 16], strides = [1, 1]} : vector<1x192xf32> to vector<1x16xf32>
    %cst_35 = arith.constant 0.000000e+00 : f32
    %201 = vector.broadcast %cst_35 : f32 to vector<1x16xf32>
    %202 = arith.addf %201, %200 : vector<1x16xf32>
    %203 = vector.extract_strided_slice %174 {offsets = [0, 16], sizes = [1, 16], strides = [1, 1]} : vector<1x192xf32> to vector<1x16xf32>
    %204 = arith.addf %202, %203 : vector<1x16xf32>
    %205 = vector.extract_strided_slice %174 {offsets = [0, 32], sizes = [1, 16], strides = [1, 1]} : vector<1x192xf32> to vector<1x16xf32>
    %206 = arith.addf %204, %205 : vector<1x16xf32>
    %207 = vector.extract_strided_slice %174 {offsets = [0, 48], sizes = [1, 16], strides = [1, 1]} : vector<1x192xf32> to vector<1x16xf32>
    %208 = arith.addf %206, %207 : vector<1x16xf32>
    %209 = vector.extract_strided_slice %174 {offsets = [0, 64], sizes = [1, 16], strides = [1, 1]} : vector<1x192xf32> to vector<1x16xf32>
    %210 = arith.addf %208, %209 : vector<1x16xf32>
    %211 = vector.extract_strided_slice %174 {offsets = [0, 80], sizes = [1, 16], strides = [1, 1]} : vector<1x192xf32> to vector<1x16xf32>
    %212 = arith.addf %210, %211 : vector<1x16xf32>
    %213 = vector.extract_strided_slice %174 {offsets = [0, 96], sizes = [1, 16], strides = [1, 1]} : vector<1x192xf32> to vector<1x16xf32>
    %214 = arith.addf %212, %213 : vector<1x16xf32>
    %215 = vector.extract_strided_slice %174 {offsets = [0, 112], sizes = [1, 16], strides = [1, 1]} : vector<1x192xf32> to vector<1x16xf32>
    %216 = arith.addf %214, %215 : vector<1x16xf32>
    %217 = vector.extract_strided_slice %174 {offsets = [0, 128], sizes = [1, 16], strides = [1, 1]} : vector<1x192xf32> to vector<1x16xf32>
    %218 = arith.addf %216, %217 : vector<1x16xf32>
    %219 = vector.extract_strided_slice %174 {offsets = [0, 144], sizes = [1, 16], strides = [1, 1]} : vector<1x192xf32> to vector<1x16xf32>
    %220 = arith.addf %218, %219 : vector<1x16xf32>
    %221 = vector.extract_strided_slice %174 {offsets = [0, 160], sizes = [1, 16], strides = [1, 1]} : vector<1x192xf32> to vector<1x16xf32>
    %222 = arith.addf %220, %221 : vector<1x16xf32>
    %223 = vector.extract_strided_slice %174 {offsets = [0, 176], sizes = [1, 16], strides = [1, 1]} : vector<1x192xf32> to vector<1x16xf32>
    %224 = arith.addf %222, %223 : vector<1x16xf32>
    %cst_36 = arith.constant 2.880000e+02 : f32
    %225 = vector.broadcast %cst_36 : f32 to vector<1x16xf32>
    %226 = arith.divf %199, %225 : vector<1x16xf32>
    %cst_37 = arith.constant 2.880000e+02 : f32
    %227 = vector.broadcast %cst_37 : f32 to vector<1x16xf32>
    %228 = arith.divf %224, %227 : vector<1x16xf32>
    %229 = arith.mulf %226, %226 : vector<1x16xf32>
    %230 = arith.subf %228, %229 : vector<1x16xf32>
    %cst_38 = arith.constant 9.99999974E-6 : f32
    %231 = vector.broadcast %cst_38 : f32 to vector<1x16xf32>
    %232 = arith.addf %230, %231 : vector<1x16xf32>
    %233 = math.rsqrt %232 : vector<1x16xf32>
    %234 = arith.mulf %168, %233 : vector<1x16xf32>
    %235 = arith.mulf %226, %234 : vector<1x16xf32>
    %236 = arith.subf %169, %235 : vector<1x16xf32>
    %237 = tpu.concatenate %234, %236 in 0 : vector<1x16xf32>, vector<1x16xf32> -> vector<2x16xf32>
    %238 = tpu.concatenate %237, %237, %237, %237, %237, %237, %237, %237, %237, %237, %237, %237 in 1 : vector<2x16xf32>, vector<2x16xf32>, vector<2x16xf32>, vector<2x16xf32>, vector<2x16xf32>, vector<2x16xf32>, vector<2x16xf32>, vector<2x16xf32>, vector<2x16xf32>, vector<2x16xf32>, vector<2x16xf32>, vector<2x16xf32> -> vector<2x192xf32>
    %239 = vector.extract_strided_slice %238 {offsets = [0, 0], sizes = [1, 192], strides = [1, 1]} : vector<2x192xf32> to vector<1x192xf32>
    %240 = vector.broadcast %239 : vector<1x192xf32> to vector<24x192xf32>
    %241 = arith.mulf %167, %240 : vector<24x192xf32>
    %242 = vector.extract_strided_slice %238 {offsets = [1, 0], sizes = [1, 192], strides = [1, 1]} : vector<2x192xf32> to vector<1x192xf32>
    %243 = vector.broadcast %242 : vector<1x192xf32> to vector<24x192xf32>
    %244 = arith.addf %241, %243 : vector<24x192xf32>
    %cst_39 = arith.constant 0.000000e+00 : f32
    %245 = vector.broadcast %cst_39 : f32 to vector<24x192xf32>
    %246 = arith.maximumf %244, %245 : vector<24x192xf32>
    %247 = arith.truncf %246 : vector<24x192xf32> to vector<24x192xbf16>
    %c0_40 = arith.constant 0 : index
    %c0_41 = arith.constant 0 : index
    %248 = vector.load %arg4[%c0_40, %c0_41] : memref<192x768xbf16, #tpu.memory_space<vmem>>, vector<192x768xbf16>
    %cst_42 = arith.constant dense<0.000000e+00> : vector<24x768xf32>
    %249 = tpu.matmul %247, %248, %cst_42 {dimension_numbers = #tpu.dot_dimension_numbers<[1], [0], [0], [1], [0, 0, 1, 1], [], []>} : vector<24x192xbf16>, vector<192x768xbf16>, vector<24x768xf32> -> vector<24x768xf32>
    %250 = vector.extract_strided_slice %249 {offsets = [0, 0], sizes = [24, 192], strides = [1, 1]} : vector<24x768xf32> to vector<24x192xf32>
    %251 = vector.extract_strided_slice %249 {offsets = [0, 192], sizes = [24, 192], strides = [1, 1]} : vector<24x768xf32> to vector<24x192xf32>
    %252 = vector.extract_strided_slice %249 {offsets = [0, 384], sizes = [24, 192], strides = [1, 1]} : vector<24x768xf32> to vector<24x192xf32>
    %253 = vector.extract_strided_slice %249 {offsets = [0, 576], sizes = [24, 192], strides = [1, 1]} : vector<24x768xf32> to vector<24x192xf32>
    %254 = vector.extract_strided_slice %251 {offsets = [0, 0], sizes = [2, 192], strides = [1, 1]} : vector<24x192xf32> to vector<2x192xf32>
    %255 = vector.extract_strided_slice %250 {offsets = [2, 0], sizes = [2, 192], strides = [1, 1]} : vector<24x192xf32> to vector<2x192xf32>
    %256 = vector.extract_strided_slice %252 {offsets = [0, 0], sizes = [2, 192], strides = [1, 1]} : vector<24x192xf32> to vector<2x192xf32>
    %257 = arith.addf %255, %256 : vector<2x192xf32>
    %258 = vector.extract_strided_slice %251 {offsets = [2, 0], sizes = [2, 192], strides = [1, 1]} : vector<24x192xf32> to vector<2x192xf32>
    %259 = vector.extract_strided_slice %253 {offsets = [0, 0], sizes = [2, 192], strides = [1, 1]} : vector<24x192xf32> to vector<2x192xf32>
    %260 = arith.addf %258, %259 : vector<2x192xf32>
    %261 = vector.extract_strided_slice %250 {offsets = [4, 0], sizes = [2, 192], strides = [1, 1]} : vector<24x192xf32> to vector<2x192xf32>
    %262 = vector.extract_strided_slice %252 {offsets = [2, 0], sizes = [2, 192], strides = [1, 1]} : vector<24x192xf32> to vector<2x192xf32>
    %263 = arith.addf %261, %262 : vector<2x192xf32>
    %264 = vector.extract_strided_slice %251 {offsets = [4, 0], sizes = [2, 192], strides = [1, 1]} : vector<24x192xf32> to vector<2x192xf32>
    %265 = vector.extract_strided_slice %253 {offsets = [2, 0], sizes = [2, 192], strides = [1, 1]} : vector<24x192xf32> to vector<2x192xf32>
    %266 = arith.addf %264, %265 : vector<2x192xf32>
    %267 = vector.extract_strided_slice %250 {offsets = [6, 0], sizes = [2, 192], strides = [1, 1]} : vector<24x192xf32> to vector<2x192xf32>
    %268 = vector.extract_strided_slice %252 {offsets = [4, 0], sizes = [2, 192], strides = [1, 1]} : vector<24x192xf32> to vector<2x192xf32>
    %269 = arith.addf %267, %268 : vector<2x192xf32>
    %270 = vector.extract_strided_slice %251 {offsets = [6, 0], sizes = [2, 192], strides = [1, 1]} : vector<24x192xf32> to vector<2x192xf32>
    %271 = vector.extract_strided_slice %253 {offsets = [4, 0], sizes = [2, 192], strides = [1, 1]} : vector<24x192xf32> to vector<2x192xf32>
    %272 = arith.addf %270, %271 : vector<2x192xf32>
    %273 = vector.extract_strided_slice %250 {offsets = [8, 0], sizes = [2, 192], strides = [1, 1]} : vector<24x192xf32> to vector<2x192xf32>
    %274 = vector.extract_strided_slice %252 {offsets = [6, 0], sizes = [2, 192], strides = [1, 1]} : vector<24x192xf32> to vector<2x192xf32>
    %275 = arith.addf %273, %274 : vector<2x192xf32>
    %276 = vector.extract_strided_slice %251 {offsets = [8, 0], sizes = [2, 192], strides = [1, 1]} : vector<24x192xf32> to vector<2x192xf32>
    %277 = vector.extract_strided_slice %253 {offsets = [6, 0], sizes = [2, 192], strides = [1, 1]} : vector<24x192xf32> to vector<2x192xf32>
    %278 = arith.addf %276, %277 : vector<2x192xf32>
    %279 = vector.extract_strided_slice %250 {offsets = [10, 0], sizes = [2, 192], strides = [1, 1]} : vector<24x192xf32> to vector<2x192xf32>
    %280 = vector.extract_strided_slice %252 {offsets = [8, 0], sizes = [2, 192], strides = [1, 1]} : vector<24x192xf32> to vector<2x192xf32>
    %281 = arith.addf %279, %280 : vector<2x192xf32>
    %282 = vector.extract_strided_slice %251 {offsets = [10, 0], sizes = [2, 192], strides = [1, 1]} : vector<24x192xf32> to vector<2x192xf32>
    %283 = vector.extract_strided_slice %253 {offsets = [8, 0], sizes = [2, 192], strides = [1, 1]} : vector<24x192xf32> to vector<2x192xf32>
    %284 = arith.addf %282, %283 : vector<2x192xf32>
    %285 = vector.extract_strided_slice %250 {offsets = [12, 0], sizes = [2, 192], strides = [1, 1]} : vector<24x192xf32> to vector<2x192xf32>
    %286 = vector.extract_strided_slice %252 {offsets = [10, 0], sizes = [2, 192], strides = [1, 1]} : vector<24x192xf32> to vector<2x192xf32>
    %287 = arith.addf %285, %286 : vector<2x192xf32>
    %288 = vector.extract_strided_slice %251 {offsets = [12, 0], sizes = [2, 192], strides = [1, 1]} : vector<24x192xf32> to vector<2x192xf32>
    %289 = vector.extract_strided_slice %253 {offsets = [10, 0], sizes = [2, 192], strides = [1, 1]} : vector<24x192xf32> to vector<2x192xf32>
    %290 = arith.addf %288, %289 : vector<2x192xf32>
    %291 = vector.extract_strided_slice %250 {offsets = [14, 0], sizes = [2, 192], strides = [1, 1]} : vector<24x192xf32> to vector<2x192xf32>
    %292 = vector.extract_strided_slice %252 {offsets = [12, 0], sizes = [2, 192], strides = [1, 1]} : vector<24x192xf32> to vector<2x192xf32>
    %293 = arith.addf %291, %292 : vector<2x192xf32>
    %294 = vector.extract_strided_slice %251 {offsets = [14, 0], sizes = [2, 192], strides = [1, 1]} : vector<24x192xf32> to vector<2x192xf32>
    %295 = vector.extract_strided_slice %253 {offsets = [12, 0], sizes = [2, 192], strides = [1, 1]} : vector<24x192xf32> to vector<2x192xf32>
    %296 = arith.addf %294, %295 : vector<2x192xf32>
    %297 = vector.extract_strided_slice %250 {offsets = [16, 0], sizes = [2, 192], strides = [1, 1]} : vector<24x192xf32> to vector<2x192xf32>
    %298 = vector.extract_strided_slice %252 {offsets = [14, 0], sizes = [2, 192], strides = [1, 1]} : vector<24x192xf32> to vector<2x192xf32>
    %299 = arith.addf %297, %298 : vector<2x192xf32>
    %300 = vector.extract_strided_slice %251 {offsets = [16, 0], sizes = [2, 192], strides = [1, 1]} : vector<24x192xf32> to vector<2x192xf32>
    %301 = vector.extract_strided_slice %253 {offsets = [14, 0], sizes = [2, 192], strides = [1, 1]} : vector<24x192xf32> to vector<2x192xf32>
    %302 = arith.addf %300, %301 : vector<2x192xf32>
    %303 = vector.extract_strided_slice %250 {offsets = [18, 0], sizes = [2, 192], strides = [1, 1]} : vector<24x192xf32> to vector<2x192xf32>
    %304 = vector.extract_strided_slice %252 {offsets = [16, 0], sizes = [2, 192], strides = [1, 1]} : vector<24x192xf32> to vector<2x192xf32>
    %305 = arith.addf %303, %304 : vector<2x192xf32>
    %306 = vector.extract_strided_slice %251 {offsets = [18, 0], sizes = [2, 192], strides = [1, 1]} : vector<24x192xf32> to vector<2x192xf32>
    %307 = vector.extract_strided_slice %253 {offsets = [16, 0], sizes = [2, 192], strides = [1, 1]} : vector<24x192xf32> to vector<2x192xf32>
    %308 = arith.addf %306, %307 : vector<2x192xf32>
    %309 = vector.extract_strided_slice %250 {offsets = [20, 0], sizes = [2, 192], strides = [1, 1]} : vector<24x192xf32> to vector<2x192xf32>
    %310 = vector.extract_strided_slice %252 {offsets = [18, 0], sizes = [2, 192], strides = [1, 1]} : vector<24x192xf32> to vector<2x192xf32>
    %311 = arith.addf %309, %310 : vector<2x192xf32>
    %312 = vector.extract_strided_slice %251 {offsets = [20, 0], sizes = [2, 192], strides = [1, 1]} : vector<24x192xf32> to vector<2x192xf32>
    %313 = vector.extract_strided_slice %253 {offsets = [18, 0], sizes = [2, 192], strides = [1, 1]} : vector<24x192xf32> to vector<2x192xf32>
    %314 = arith.addf %312, %313 : vector<2x192xf32>
    %315 = vector.extract_strided_slice %250 {offsets = [22, 0], sizes = [2, 192], strides = [1, 1]} : vector<24x192xf32> to vector<2x192xf32>
    %316 = vector.extract_strided_slice %252 {offsets = [20, 0], sizes = [2, 192], strides = [1, 1]} : vector<24x192xf32> to vector<2x192xf32>
    %317 = arith.addf %315, %316 : vector<2x192xf32>
    %318 = vector.extract_strided_slice %251 {offsets = [22, 0], sizes = [2, 192], strides = [1, 1]} : vector<24x192xf32> to vector<2x192xf32>
    %319 = vector.extract_strided_slice %253 {offsets = [20, 0], sizes = [2, 192], strides = [1, 1]} : vector<24x192xf32> to vector<2x192xf32>
    %320 = arith.addf %318, %319 : vector<2x192xf32>
    %321 = vector.extract_strided_slice %252 {offsets = [22, 0], sizes = [2, 192], strides = [1, 1]} : vector<24x192xf32> to vector<2x192xf32>
    %322 = tpu.concatenate %254, %257, %260, %263, %266, %269, %272, %275, %278, %281, %284, %287, %290, %293, %296, %299 in 0 : vector<2x192xf32>, vector<2x192xf32>, vector<2x192xf32>, vector<2x192xf32>, vector<2x192xf32>, vector<2x192xf32>, vector<2x192xf32>, vector<2x192xf32>, vector<2x192xf32>, vector<2x192xf32>, vector<2x192xf32>, vector<2x192xf32>, vector<2x192xf32>, vector<2x192xf32>, vector<2x192xf32>, vector<2x192xf32> -> vector<32x192xf32>
    %323 = tpu.concatenate %302, %305, %308, %311, %314, %317, %320, %321 in 0 : vector<2x192xf32>, vector<2x192xf32>, vector<2x192xf32>, vector<2x192xf32>, vector<2x192xf32>, vector<2x192xf32>, vector<2x192xf32>, vector<2x192xf32> -> vector<16x192xf32>
    %324 = tpu.concatenate %322, %323 in 0 : vector<32x192xf32>, vector<16x192xf32> -> vector<48x192xf32>
    %c0_43 = arith.constant 0 : index
    %c224 = arith.constant 224 : index
    %325 = vector.load %arg6[%c0_43, %c224] : memref<1x368xf32, #tpu.memory_space<vmem>>, vector<1x8xf32>
    %c0_44 = arith.constant 0 : index
    %c232 = arith.constant 232 : index
    %326 = vector.load %arg6[%c0_44, %c232] : memref<1x368xf32, #tpu.memory_space<vmem>>, vector<1x8xf32>
    %cst_45 = arith.constant dense<0.000000e+00> : vector<192xf32>
    %327 = vector.multi_reduction <add>, %324, %cst_45 [0] : vector<48x192xf32> to vector<192xf32>
    %328 = vector.shape_cast %327 : vector<192xf32> to vector<1x192xf32>
    %329 = arith.mulf %324, %324 : vector<48x192xf32>
    %cst_46 = arith.constant dense<0.000000e+00> : vector<192xf32>
    %330 = vector.multi_reduction <add>, %329, %cst_46 [0] : vector<48x192xf32> to vector<192xf32>
    %331 = vector.shape_cast %330 : vector<192xf32> to vector<1x192xf32>
    %332 = vector.extract_strided_slice %328 {offsets = [0, 0], sizes = [1, 8], strides = [1, 1]} : vector<1x192xf32> to vector<1x8xf32>
    %cst_47 = arith.constant 0.000000e+00 : f32
    %333 = vector.broadcast %cst_47 : f32 to vector<1x8xf32>
    %334 = arith.addf %333, %332 : vector<1x8xf32>
    %335 = vector.extract_strided_slice %328 {offsets = [0, 8], sizes = [1, 8], strides = [1, 1]} : vector<1x192xf32> to vector<1x8xf32>
    %336 = arith.addf %334, %335 : vector<1x8xf32>
    %337 = vector.extract_strided_slice %328 {offsets = [0, 16], sizes = [1, 8], strides = [1, 1]} : vector<1x192xf32> to vector<1x8xf32>
    %338 = arith.addf %336, %337 : vector<1x8xf32>
    %339 = vector.extract_strided_slice %328 {offsets = [0, 24], sizes = [1, 8], strides = [1, 1]} : vector<1x192xf32> to vector<1x8xf32>
    %340 = arith.addf %338, %339 : vector<1x8xf32>
    %341 = vector.extract_strided_slice %328 {offsets = [0, 32], sizes = [1, 8], strides = [1, 1]} : vector<1x192xf32> to vector<1x8xf32>
    %342 = arith.addf %340, %341 : vector<1x8xf32>
    %343 = vector.extract_strided_slice %328 {offsets = [0, 40], sizes = [1, 8], strides = [1, 1]} : vector<1x192xf32> to vector<1x8xf32>
    %344 = arith.addf %342, %343 : vector<1x8xf32>
    %345 = vector.extract_strided_slice %328 {offsets = [0, 48], sizes = [1, 8], strides = [1, 1]} : vector<1x192xf32> to vector<1x8xf32>
    %346 = arith.addf %344, %345 : vector<1x8xf32>
    %347 = vector.extract_strided_slice %328 {offsets = [0, 56], sizes = [1, 8], strides = [1, 1]} : vector<1x192xf32> to vector<1x8xf32>
    %348 = arith.addf %346, %347 : vector<1x8xf32>
    %349 = vector.extract_strided_slice %328 {offsets = [0, 64], sizes = [1, 8], strides = [1, 1]} : vector<1x192xf32> to vector<1x8xf32>
    %350 = arith.addf %348, %349 : vector<1x8xf32>
    %351 = vector.extract_strided_slice %328 {offsets = [0, 72], sizes = [1, 8], strides = [1, 1]} : vector<1x192xf32> to vector<1x8xf32>
    %352 = arith.addf %350, %351 : vector<1x8xf32>
    %353 = vector.extract_strided_slice %328 {offsets = [0, 80], sizes = [1, 8], strides = [1, 1]} : vector<1x192xf32> to vector<1x8xf32>
    %354 = arith.addf %352, %353 : vector<1x8xf32>
    %355 = vector.extract_strided_slice %328 {offsets = [0, 88], sizes = [1, 8], strides = [1, 1]} : vector<1x192xf32> to vector<1x8xf32>
    %356 = arith.addf %354, %355 : vector<1x8xf32>
    %357 = vector.extract_strided_slice %328 {offsets = [0, 96], sizes = [1, 8], strides = [1, 1]} : vector<1x192xf32> to vector<1x8xf32>
    %358 = arith.addf %356, %357 : vector<1x8xf32>
    %359 = vector.extract_strided_slice %328 {offsets = [0, 104], sizes = [1, 8], strides = [1, 1]} : vector<1x192xf32> to vector<1x8xf32>
    %360 = arith.addf %358, %359 : vector<1x8xf32>
    %361 = vector.extract_strided_slice %328 {offsets = [0, 112], sizes = [1, 8], strides = [1, 1]} : vector<1x192xf32> to vector<1x8xf32>
    %362 = arith.addf %360, %361 : vector<1x8xf32>
    %363 = vector.extract_strided_slice %328 {offsets = [0, 120], sizes = [1, 8], strides = [1, 1]} : vector<1x192xf32> to vector<1x8xf32>
    %364 = arith.addf %362, %363 : vector<1x8xf32>
    %365 = vector.extract_strided_slice %328 {offsets = [0, 128], sizes = [1, 8], strides = [1, 1]} : vector<1x192xf32> to vector<1x8xf32>
    %366 = arith.addf %364, %365 : vector<1x8xf32>
    %367 = vector.extract_strided_slice %328 {offsets = [0, 136], sizes = [1, 8], strides = [1, 1]} : vector<1x192xf32> to vector<1x8xf32>
    %368 = arith.addf %366, %367 : vector<1x8xf32>
    %369 = vector.extract_strided_slice %328 {offsets = [0, 144], sizes = [1, 8], strides = [1, 1]} : vector<1x192xf32> to vector<1x8xf32>
    %370 = arith.addf %368, %369 : vector<1x8xf32>
    %371 = vector.extract_strided_slice %328 {offsets = [0, 152], sizes = [1, 8], strides = [1, 1]} : vector<1x192xf32> to vector<1x8xf32>
    %372 = arith.addf %370, %371 : vector<1x8xf32>
    %373 = vector.extract_strided_slice %328 {offsets = [0, 160], sizes = [1, 8], strides = [1, 1]} : vector<1x192xf32> to vector<1x8xf32>
    %374 = arith.addf %372, %373 : vector<1x8xf32>
    %375 = vector.extract_strided_slice %328 {offsets = [0, 168], sizes = [1, 8], strides = [1, 1]} : vector<1x192xf32> to vector<1x8xf32>
    %376 = arith.addf %374, %375 : vector<1x8xf32>
    %377 = vector.extract_strided_slice %328 {offsets = [0, 176], sizes = [1, 8], strides = [1, 1]} : vector<1x192xf32> to vector<1x8xf32>
    %378 = arith.addf %376, %377 : vector<1x8xf32>
    %379 = vector.extract_strided_slice %328 {offsets = [0, 184], sizes = [1, 8], strides = [1, 1]} : vector<1x192xf32> to vector<1x8xf32>
    %380 = arith.addf %378, %379 : vector<1x8xf32>
    %381 = vector.extract_strided_slice %331 {offsets = [0, 0], sizes = [1, 8], strides = [1, 1]} : vector<1x192xf32> to vector<1x8xf32>
    %cst_48 = arith.constant 0.000000e+00 : f32
    %382 = vector.broadcast %cst_48 : f32 to vector<1x8xf32>
    %383 = arith.addf %382, %381 : vector<1x8xf32>
    %384 = vector.extract_strided_slice %331 {offsets = [0, 8], sizes = [1, 8], strides = [1, 1]} : vector<1x192xf32> to vector<1x8xf32>
    %385 = arith.addf %383, %384 : vector<1x8xf32>
    %386 = vector.extract_strided_slice %331 {offsets = [0, 16], sizes = [1, 8], strides = [1, 1]} : vector<1x192xf32> to vector<1x8xf32>
    %387 = arith.addf %385, %386 : vector<1x8xf32>
    %388 = vector.extract_strided_slice %331 {offsets = [0, 24], sizes = [1, 8], strides = [1, 1]} : vector<1x192xf32> to vector<1x8xf32>
    %389 = arith.addf %387, %388 : vector<1x8xf32>
    %390 = vector.extract_strided_slice %331 {offsets = [0, 32], sizes = [1, 8], strides = [1, 1]} : vector<1x192xf32> to vector<1x8xf32>
    %391 = arith.addf %389, %390 : vector<1x8xf32>
    %392 = vector.extract_strided_slice %331 {offsets = [0, 40], sizes = [1, 8], strides = [1, 1]} : vector<1x192xf32> to vector<1x8xf32>
    %393 = arith.addf %391, %392 : vector<1x8xf32>
    %394 = vector.extract_strided_slice %331 {offsets = [0, 48], sizes = [1, 8], strides = [1, 1]} : vector<1x192xf32> to vector<1x8xf32>
    %395 = arith.addf %393, %394 : vector<1x8xf32>
    %396 = vector.extract_strided_slice %331 {offsets = [0, 56], sizes = [1, 8], strides = [1, 1]} : vector<1x192xf32> to vector<1x8xf32>
    %397 = arith.addf %395, %396 : vector<1x8xf32>
    %398 = vector.extract_strided_slice %331 {offsets = [0, 64], sizes = [1, 8], strides = [1, 1]} : vector<1x192xf32> to vector<1x8xf32>
    %399 = arith.addf %397, %398 : vector<1x8xf32>
    %400 = vector.extract_strided_slice %331 {offsets = [0, 72], sizes = [1, 8], strides = [1, 1]} : vector<1x192xf32> to vector<1x8xf32>
    %401 = arith.addf %399, %400 : vector<1x8xf32>
    %402 = vector.extract_strided_slice %331 {offsets = [0, 80], sizes = [1, 8], strides = [1, 1]} : vector<1x192xf32> to vector<1x8xf32>
    %403 = arith.addf %401, %402 : vector<1x8xf32>
    %404 = vector.extract_strided_slice %331 {offsets = [0, 88], sizes = [1, 8], strides = [1, 1]} : vector<1x192xf32> to vector<1x8xf32>
    %405 = arith.addf %403, %404 : vector<1x8xf32>
    %406 = vector.extract_strided_slice %331 {offsets = [0, 96], sizes = [1, 8], strides = [1, 1]} : vector<1x192xf32> to vector<1x8xf32>
    %407 = arith.addf %405, %406 : vector<1x8xf32>
    %408 = vector.extract_strided_slice %331 {offsets = [0, 104], sizes = [1, 8], strides = [1, 1]} : vector<1x192xf32> to vector<1x8xf32>
    %409 = arith.addf %407, %408 : vector<1x8xf32>
    %410 = vector.extract_strided_slice %331 {offsets = [0, 112], sizes = [1, 8], strides = [1, 1]} : vector<1x192xf32> to vector<1x8xf32>
    %411 = arith.addf %409, %410 : vector<1x8xf32>
    %412 = vector.extract_strided_slice %331 {offsets = [0, 120], sizes = [1, 8], strides = [1, 1]} : vector<1x192xf32> to vector<1x8xf32>
    %413 = arith.addf %411, %412 : vector<1x8xf32>
    %414 = vector.extract_strided_slice %331 {offsets = [0, 128], sizes = [1, 8], strides = [1, 1]} : vector<1x192xf32> to vector<1x8xf32>
    %415 = arith.addf %413, %414 : vector<1x8xf32>
    %416 = vector.extract_strided_slice %331 {offsets = [0, 136], sizes = [1, 8], strides = [1, 1]} : vector<1x192xf32> to vector<1x8xf32>
    %417 = arith.addf %415, %416 : vector<1x8xf32>
    %418 = vector.extract_strided_slice %331 {offsets = [0, 144], sizes = [1, 8], strides = [1, 1]} : vector<1x192xf32> to vector<1x8xf32>
    %419 = arith.addf %417, %418 : vector<1x8xf32>
    %420 = vector.extract_strided_slice %331 {offsets = [0, 152], sizes = [1, 8], strides = [1, 1]} : vector<1x192xf32> to vector<1x8xf32>
    %421 = arith.addf %419, %420 : vector<1x8xf32>
    %422 = vector.extract_strided_slice %331 {offsets = [0, 160], sizes = [1, 8], strides = [1, 1]} : vector<1x192xf32> to vector<1x8xf32>
    %423 = arith.addf %421, %422 : vector<1x8xf32>
    %424 = vector.extract_strided_slice %331 {offsets = [0, 168], sizes = [1, 8], strides = [1, 1]} : vector<1x192xf32> to vector<1x8xf32>
    %425 = arith.addf %423, %424 : vector<1x8xf32>
    %426 = vector.extract_strided_slice %331 {offsets = [0, 176], sizes = [1, 8], strides = [1, 1]} : vector<1x192xf32> to vector<1x8xf32>
    %427 = arith.addf %425, %426 : vector<1x8xf32>
    %428 = vector.extract_strided_slice %331 {offsets = [0, 184], sizes = [1, 8], strides = [1, 1]} : vector<1x192xf32> to vector<1x8xf32>
    %429 = arith.addf %427, %428 : vector<1x8xf32>
    %cst_49 = arith.constant 1.152000e+03 : f32
    %430 = vector.broadcast %cst_49 : f32 to vector<1x8xf32>
    %431 = arith.divf %380, %430 : vector<1x8xf32>
    %cst_50 = arith.constant 1.152000e+03 : f32
    %432 = vector.broadcast %cst_50 : f32 to vector<1x8xf32>
    %433 = arith.divf %429, %432 : vector<1x8xf32>
    %434 = arith.mulf %431, %431 : vector<1x8xf32>
    %435 = arith.subf %433, %434 : vector<1x8xf32>
    %cst_51 = arith.constant 9.99999974E-6 : f32
    %436 = vector.broadcast %cst_51 : f32 to vector<1x8xf32>
    %437 = arith.addf %435, %436 : vector<1x8xf32>
    %438 = math.rsqrt %437 : vector<1x8xf32>
    %439 = arith.mulf %325, %438 : vector<1x8xf32>
    %440 = arith.mulf %431, %439 : vector<1x8xf32>
    %441 = arith.subf %326, %440 : vector<1x8xf32>
    %442 = tpu.concatenate %439, %441 in 0 : vector<1x8xf32>, vector<1x8xf32> -> vector<2x8xf32>
    %443 = tpu.concatenate %442, %442, %442, %442, %442, %442, %442, %442, %442, %442, %442, %442, %442, %442, %442, %442 in 1 : vector<2x8xf32>, vector<2x8xf32>, vector<2x8xf32>, vector<2x8xf32>, vector<2x8xf32>, vector<2x8xf32>, vector<2x8xf32>, vector<2x8xf32>, vector<2x8xf32>, vector<2x8xf32>, vector<2x8xf32>, vector<2x8xf32>, vector<2x8xf32>, vector<2x8xf32>, vector<2x8xf32>, vector<2x8xf32> -> vector<2x128xf32>
    %444 = tpu.concatenate %442, %442, %442, %442, %442, %442, %442, %442 in 1 : vector<2x8xf32>, vector<2x8xf32>, vector<2x8xf32>, vector<2x8xf32>, vector<2x8xf32>, vector<2x8xf32>, vector<2x8xf32>, vector<2x8xf32> -> vector<2x64xf32>
    %445 = tpu.concatenate %443, %444 in 1 : vector<2x128xf32>, vector<2x64xf32> -> vector<2x192xf32>
    %446 = vector.extract_strided_slice %445 {offsets = [0, 0], sizes = [1, 192], strides = [1, 1]} : vector<2x192xf32> to vector<1x192xf32>
    %447 = vector.broadcast %446 : vector<1x192xf32> to vector<48x192xf32>
    %448 = arith.mulf %324, %447 : vector<48x192xf32>
    %449 = vector.extract_strided_slice %445 {offsets = [1, 0], sizes = [1, 192], strides = [1, 1]} : vector<2x192xf32> to vector<1x192xf32>
    %450 = vector.broadcast %449 : vector<1x192xf32> to vector<48x192xf32>
    %451 = arith.addf %448, %450 : vector<48x192xf32>
    %cst_52 = arith.constant 0.000000e+00 : f32
    %452 = vector.broadcast %cst_52 : f32 to vector<48x192xf32>
    %453 = arith.maximumf %451, %452 : vector<48x192xf32>
    %454 = arith.truncf %453 : vector<48x192xf32> to vector<48x192xbf16>
    %c0_53 = arith.constant 0 : index
    %c0_54 = arith.constant 0 : index
    %455 = vector.load %arg5[%c0_53, %c0_54] : memref<192x640xbf16, #tpu.memory_space<vmem>>, vector<192x640xbf16>
    %cst_55 = arith.constant dense<0.000000e+00> : vector<48x640xf32>
    %456 = tpu.matmul %454, %455, %cst_55 {dimension_numbers = #tpu.dot_dimension_numbers<[1], [0], [0], [1], [0, 0, 1, 1], [], []>} : vector<48x192xbf16>, vector<192x640xbf16>, vector<48x640xf32> -> vector<48x640xf32>
    %457 = vector.extract_strided_slice %456 {offsets = [0, 0], sizes = [48, 128], strides = [1, 1]} : vector<48x640xf32> to vector<48x128xf32>
    %458 = vector.extract_strided_slice %456 {offsets = [0, 128], sizes = [48, 128], strides = [1, 1]} : vector<48x640xf32> to vector<48x128xf32>
    %459 = vector.extract_strided_slice %456 {offsets = [0, 256], sizes = [48, 128], strides = [1, 1]} : vector<48x640xf32> to vector<48x128xf32>
    %460 = vector.extract_strided_slice %456 {offsets = [0, 384], sizes = [48, 128], strides = [1, 1]} : vector<48x640xf32> to vector<48x128xf32>
    %461 = vector.extract_strided_slice %456 {offsets = [0, 512], sizes = [48, 128], strides = [1, 1]} : vector<48x640xf32> to vector<48x128xf32>
    %462 = vector.extract_strided_slice %457 {offsets = [0, 0], sizes = [2, 128], strides = [1, 1]} : vector<48x128xf32> to vector<2x128xf32>
    %463 = vector.extract_strided_slice %457 {offsets = [2, 0], sizes = [2, 128], strides = [1, 1]} : vector<48x128xf32> to vector<2x128xf32>
    %464 = vector.extract_strided_slice %458 {offsets = [0, 0], sizes = [2, 128], strides = [1, 1]} : vector<48x128xf32> to vector<2x128xf32>
    %465 = arith.addf %463, %464 : vector<2x128xf32>
    %466 = vector.extract_strided_slice %457 {offsets = [4, 0], sizes = [2, 128], strides = [1, 1]} : vector<48x128xf32> to vector<2x128xf32>
    %467 = vector.extract_strided_slice %458 {offsets = [2, 0], sizes = [2, 128], strides = [1, 1]} : vector<48x128xf32> to vector<2x128xf32>
    %468 = arith.addf %466, %467 : vector<2x128xf32>
    %469 = vector.extract_strided_slice %459 {offsets = [0, 0], sizes = [2, 128], strides = [1, 1]} : vector<48x128xf32> to vector<2x128xf32>
    %470 = arith.addf %468, %469 : vector<2x128xf32>
    %471 = vector.extract_strided_slice %457 {offsets = [6, 0], sizes = [2, 128], strides = [1, 1]} : vector<48x128xf32> to vector<2x128xf32>
    %472 = vector.extract_strided_slice %458 {offsets = [4, 0], sizes = [2, 128], strides = [1, 1]} : vector<48x128xf32> to vector<2x128xf32>
    %473 = arith.addf %471, %472 : vector<2x128xf32>
    %474 = vector.extract_strided_slice %459 {offsets = [2, 0], sizes = [2, 128], strides = [1, 1]} : vector<48x128xf32> to vector<2x128xf32>
    %475 = arith.addf %473, %474 : vector<2x128xf32>
    %476 = vector.extract_strided_slice %460 {offsets = [0, 0], sizes = [2, 128], strides = [1, 1]} : vector<48x128xf32> to vector<2x128xf32>
    %477 = arith.addf %475, %476 : vector<2x128xf32>
    %478 = vector.extract_strided_slice %457 {offsets = [8, 0], sizes = [2, 128], strides = [1, 1]} : vector<48x128xf32> to vector<2x128xf32>
    %479 = vector.extract_strided_slice %458 {offsets = [6, 0], sizes = [2, 128], strides = [1, 1]} : vector<48x128xf32> to vector<2x128xf32>
    %480 = arith.addf %478, %479 : vector<2x128xf32>
    %481 = vector.extract_strided_slice %459 {offsets = [4, 0], sizes = [2, 128], strides = [1, 1]} : vector<48x128xf32> to vector<2x128xf32>
    %482 = arith.addf %480, %481 : vector<2x128xf32>
    %483 = vector.extract_strided_slice %460 {offsets = [2, 0], sizes = [2, 128], strides = [1, 1]} : vector<48x128xf32> to vector<2x128xf32>
    %484 = arith.addf %482, %483 : vector<2x128xf32>
    %485 = vector.extract_strided_slice %461 {offsets = [0, 0], sizes = [2, 128], strides = [1, 1]} : vector<48x128xf32> to vector<2x128xf32>
    %486 = arith.addf %484, %485 : vector<2x128xf32>
    %487 = vector.extract_strided_slice %457 {offsets = [10, 0], sizes = [2, 128], strides = [1, 1]} : vector<48x128xf32> to vector<2x128xf32>
    %488 = vector.extract_strided_slice %458 {offsets = [8, 0], sizes = [2, 128], strides = [1, 1]} : vector<48x128xf32> to vector<2x128xf32>
    %489 = arith.addf %487, %488 : vector<2x128xf32>
    %490 = vector.extract_strided_slice %459 {offsets = [6, 0], sizes = [2, 128], strides = [1, 1]} : vector<48x128xf32> to vector<2x128xf32>
    %491 = arith.addf %489, %490 : vector<2x128xf32>
    %492 = vector.extract_strided_slice %460 {offsets = [4, 0], sizes = [2, 128], strides = [1, 1]} : vector<48x128xf32> to vector<2x128xf32>
    %493 = arith.addf %491, %492 : vector<2x128xf32>
    %494 = vector.extract_strided_slice %461 {offsets = [2, 0], sizes = [2, 128], strides = [1, 1]} : vector<48x128xf32> to vector<2x128xf32>
    %495 = arith.addf %493, %494 : vector<2x128xf32>
    %496 = vector.extract_strided_slice %457 {offsets = [12, 0], sizes = [2, 128], strides = [1, 1]} : vector<48x128xf32> to vector<2x128xf32>
    %497 = vector.extract_strided_slice %458 {offsets = [10, 0], sizes = [2, 128], strides = [1, 1]} : vector<48x128xf32> to vector<2x128xf32>
    %498 = arith.addf %496, %497 : vector<2x128xf32>
    %499 = vector.extract_strided_slice %459 {offsets = [8, 0], sizes = [2, 128], strides = [1, 1]} : vector<48x128xf32> to vector<2x128xf32>
    %500 = arith.addf %498, %499 : vector<2x128xf32>
    %501 = vector.extract_strided_slice %460 {offsets = [6, 0], sizes = [2, 128], strides = [1, 1]} : vector<48x128xf32> to vector<2x128xf32>
    %502 = arith.addf %500, %501 : vector<2x128xf32>
    %503 = vector.extract_strided_slice %461 {offsets = [4, 0], sizes = [2, 128], strides = [1, 1]} : vector<48x128xf32> to vector<2x128xf32>
    %504 = arith.addf %502, %503 : vector<2x128xf32>
    %505 = vector.extract_strided_slice %457 {offsets = [14, 0], sizes = [2, 128], strides = [1, 1]} : vector<48x128xf32> to vector<2x128xf32>
    %506 = vector.extract_strided_slice %458 {offsets = [12, 0], sizes = [2, 128], strides = [1, 1]} : vector<48x128xf32> to vector<2x128xf32>
    %507 = arith.addf %505, %506 : vector<2x128xf32>
    %508 = vector.extract_strided_slice %459 {offsets = [10, 0], sizes = [2, 128], strides = [1, 1]} : vector<48x128xf32> to vector<2x128xf32>
    %509 = arith.addf %507, %508 : vector<2x128xf32>
    %510 = vector.extract_strided_slice %460 {offsets = [8, 0], sizes = [2, 128], strides = [1, 1]} : vector<48x128xf32> to vector<2x128xf32>
    %511 = arith.addf %509, %510 : vector<2x128xf32>
    %512 = vector.extract_strided_slice %461 {offsets = [6, 0], sizes = [2, 128], strides = [1, 1]} : vector<48x128xf32> to vector<2x128xf32>
    %513 = arith.addf %511, %512 : vector<2x128xf32>
    %514 = vector.extract_strided_slice %457 {offsets = [16, 0], sizes = [2, 128], strides = [1, 1]} : vector<48x128xf32> to vector<2x128xf32>
    %515 = vector.extract_strided_slice %458 {offsets = [14, 0], sizes = [2, 128], strides = [1, 1]} : vector<48x128xf32> to vector<2x128xf32>
    %516 = arith.addf %514, %515 : vector<2x128xf32>
    %517 = vector.extract_strided_slice %459 {offsets = [12, 0], sizes = [2, 128], strides = [1, 1]} : vector<48x128xf32> to vector<2x128xf32>
    %518 = arith.addf %516, %517 : vector<2x128xf32>
    %519 = vector.extract_strided_slice %460 {offsets = [10, 0], sizes = [2, 128], strides = [1, 1]} : vector<48x128xf32> to vector<2x128xf32>
    %520 = arith.addf %518, %519 : vector<2x128xf32>
    %521 = vector.extract_strided_slice %461 {offsets = [8, 0], sizes = [2, 128], strides = [1, 1]} : vector<48x128xf32> to vector<2x128xf32>
    %522 = arith.addf %520, %521 : vector<2x128xf32>
    %523 = vector.extract_strided_slice %457 {offsets = [18, 0], sizes = [2, 128], strides = [1, 1]} : vector<48x128xf32> to vector<2x128xf32>
    %524 = vector.extract_strided_slice %458 {offsets = [16, 0], sizes = [2, 128], strides = [1, 1]} : vector<48x128xf32> to vector<2x128xf32>
    %525 = arith.addf %523, %524 : vector<2x128xf32>
    %526 = vector.extract_strided_slice %459 {offsets = [14, 0], sizes = [2, 128], strides = [1, 1]} : vector<48x128xf32> to vector<2x128xf32>
    %527 = arith.addf %525, %526 : vector<2x128xf32>
    %528 = vector.extract_strided_slice %460 {offsets = [12, 0], sizes = [2, 128], strides = [1, 1]} : vector<48x128xf32> to vector<2x128xf32>
    %529 = arith.addf %527, %528 : vector<2x128xf32>
    %530 = vector.extract_strided_slice %461 {offsets = [10, 0], sizes = [2, 128], strides = [1, 1]} : vector<48x128xf32> to vector<2x128xf32>
    %531 = arith.addf %529, %530 : vector<2x128xf32>
    %532 = vector.extract_strided_slice %457 {offsets = [20, 0], sizes = [2, 128], strides = [1, 1]} : vector<48x128xf32> to vector<2x128xf32>
    %533 = vector.extract_strided_slice %458 {offsets = [18, 0], sizes = [2, 128], strides = [1, 1]} : vector<48x128xf32> to vector<2x128xf32>
    %534 = arith.addf %532, %533 : vector<2x128xf32>
    %535 = vector.extract_strided_slice %459 {offsets = [16, 0], sizes = [2, 128], strides = [1, 1]} : vector<48x128xf32> to vector<2x128xf32>
    %536 = arith.addf %534, %535 : vector<2x128xf32>
    %537 = vector.extract_strided_slice %460 {offsets = [14, 0], sizes = [2, 128], strides = [1, 1]} : vector<48x128xf32> to vector<2x128xf32>
    %538 = arith.addf %536, %537 : vector<2x128xf32>
    %539 = vector.extract_strided_slice %461 {offsets = [12, 0], sizes = [2, 128], strides = [1, 1]} : vector<48x128xf32> to vector<2x128xf32>
    %540 = arith.addf %538, %539 : vector<2x128xf32>
    %541 = vector.extract_strided_slice %457 {offsets = [22, 0], sizes = [2, 128], strides = [1, 1]} : vector<48x128xf32> to vector<2x128xf32>
    %542 = vector.extract_strided_slice %458 {offsets = [20, 0], sizes = [2, 128], strides = [1, 1]} : vector<48x128xf32> to vector<2x128xf32>
    %543 = arith.addf %541, %542 : vector<2x128xf32>
    %544 = vector.extract_strided_slice %459 {offsets = [18, 0], sizes = [2, 128], strides = [1, 1]} : vector<48x128xf32> to vector<2x128xf32>
    %545 = arith.addf %543, %544 : vector<2x128xf32>
    %546 = vector.extract_strided_slice %460 {offsets = [16, 0], sizes = [2, 128], strides = [1, 1]} : vector<48x128xf32> to vector<2x128xf32>
    %547 = arith.addf %545, %546 : vector<2x128xf32>
    %548 = vector.extract_strided_slice %461 {offsets = [14, 0], sizes = [2, 128], strides = [1, 1]} : vector<48x128xf32> to vector<2x128xf32>
    %549 = arith.addf %547, %548 : vector<2x128xf32>
    %550 = vector.extract_strided_slice %457 {offsets = [24, 0], sizes = [2, 128], strides = [1, 1]} : vector<48x128xf32> to vector<2x128xf32>
    %551 = vector.extract_strided_slice %458 {offsets = [22, 0], sizes = [2, 128], strides = [1, 1]} : vector<48x128xf32> to vector<2x128xf32>
    %552 = arith.addf %550, %551 : vector<2x128xf32>
    %553 = vector.extract_strided_slice %459 {offsets = [20, 0], sizes = [2, 128], strides = [1, 1]} : vector<48x128xf32> to vector<2x128xf32>
    %554 = arith.addf %552, %553 : vector<2x128xf32>
    %555 = vector.extract_strided_slice %460 {offsets = [18, 0], sizes = [2, 128], strides = [1, 1]} : vector<48x128xf32> to vector<2x128xf32>
    %556 = arith.addf %554, %555 : vector<2x128xf32>
    %557 = vector.extract_strided_slice %461 {offsets = [16, 0], sizes = [2, 128], strides = [1, 1]} : vector<48x128xf32> to vector<2x128xf32>
    %558 = arith.addf %556, %557 : vector<2x128xf32>
    %559 = vector.extract_strided_slice %457 {offsets = [26, 0], sizes = [2, 128], strides = [1, 1]} : vector<48x128xf32> to vector<2x128xf32>
    %560 = vector.extract_strided_slice %458 {offsets = [24, 0], sizes = [2, 128], strides = [1, 1]} : vector<48x128xf32> to vector<2x128xf32>
    %561 = arith.addf %559, %560 : vector<2x128xf32>
    %562 = vector.extract_strided_slice %459 {offsets = [22, 0], sizes = [2, 128], strides = [1, 1]} : vector<48x128xf32> to vector<2x128xf32>
    %563 = arith.addf %561, %562 : vector<2x128xf32>
    %564 = vector.extract_strided_slice %460 {offsets = [20, 0], sizes = [2, 128], strides = [1, 1]} : vector<48x128xf32> to vector<2x128xf32>
    %565 = arith.addf %563, %564 : vector<2x128xf32>
    %566 = vector.extract_strided_slice %461 {offsets = [18, 0], sizes = [2, 128], strides = [1, 1]} : vector<48x128xf32> to vector<2x128xf32>
    %567 = arith.addf %565, %566 : vector<2x128xf32>
    %568 = vector.extract_strided_slice %457 {offsets = [28, 0], sizes = [2, 128], strides = [1, 1]} : vector<48x128xf32> to vector<2x128xf32>
    %569 = vector.extract_strided_slice %458 {offsets = [26, 0], sizes = [2, 128], strides = [1, 1]} : vector<48x128xf32> to vector<2x128xf32>
    %570 = arith.addf %568, %569 : vector<2x128xf32>
    %571 = vector.extract_strided_slice %459 {offsets = [24, 0], sizes = [2, 128], strides = [1, 1]} : vector<48x128xf32> to vector<2x128xf32>
    %572 = arith.addf %570, %571 : vector<2x128xf32>
    %573 = vector.extract_strided_slice %460 {offsets = [22, 0], sizes = [2, 128], strides = [1, 1]} : vector<48x128xf32> to vector<2x128xf32>
    %574 = arith.addf %572, %573 : vector<2x128xf32>
    %575 = vector.extract_strided_slice %461 {offsets = [20, 0], sizes = [2, 128], strides = [1, 1]} : vector<48x128xf32> to vector<2x128xf32>
    %576 = arith.addf %574, %575 : vector<2x128xf32>
    %577 = vector.extract_strided_slice %457 {offsets = [30, 0], sizes = [2, 128], strides = [1, 1]} : vector<48x128xf32> to vector<2x128xf32>
    %578 = vector.extract_strided_slice %458 {offsets = [28, 0], sizes = [2, 128], strides = [1, 1]} : vector<48x128xf32> to vector<2x128xf32>
    %579 = arith.addf %577, %578 : vector<2x128xf32>
    %580 = vector.extract_strided_slice %459 {offsets = [26, 0], sizes = [2, 128], strides = [1, 1]} : vector<48x128xf32> to vector<2x128xf32>
    %581 = arith.addf %579, %580 : vector<2x128xf32>
    %582 = vector.extract_strided_slice %460 {offsets = [24, 0], sizes = [2, 128], strides = [1, 1]} : vector<48x128xf32> to vector<2x128xf32>
    %583 = arith.addf %581, %582 : vector<2x128xf32>
    %584 = vector.extract_strided_slice %461 {offsets = [22, 0], sizes = [2, 128], strides = [1, 1]} : vector<48x128xf32> to vector<2x128xf32>
    %585 = arith.addf %583, %584 : vector<2x128xf32>
    %586 = vector.extract_strided_slice %457 {offsets = [32, 0], sizes = [2, 128], strides = [1, 1]} : vector<48x128xf32> to vector<2x128xf32>
    %587 = vector.extract_strided_slice %458 {offsets = [30, 0], sizes = [2, 128], strides = [1, 1]} : vector<48x128xf32> to vector<2x128xf32>
    %588 = arith.addf %586, %587 : vector<2x128xf32>
    %589 = vector.extract_strided_slice %459 {offsets = [28, 0], sizes = [2, 128], strides = [1, 1]} : vector<48x128xf32> to vector<2x128xf32>
    %590 = arith.addf %588, %589 : vector<2x128xf32>
    %591 = vector.extract_strided_slice %460 {offsets = [26, 0], sizes = [2, 128], strides = [1, 1]} : vector<48x128xf32> to vector<2x128xf32>
    %592 = arith.addf %590, %591 : vector<2x128xf32>
    %593 = vector.extract_strided_slice %461 {offsets = [24, 0], sizes = [2, 128], strides = [1, 1]} : vector<48x128xf32> to vector<2x128xf32>
    %594 = arith.addf %592, %593 : vector<2x128xf32>
    %595 = vector.extract_strided_slice %457 {offsets = [34, 0], sizes = [2, 128], strides = [1, 1]} : vector<48x128xf32> to vector<2x128xf32>
    %596 = vector.extract_strided_slice %458 {offsets = [32, 0], sizes = [2, 128], strides = [1, 1]} : vector<48x128xf32> to vector<2x128xf32>
    %597 = arith.addf %595, %596 : vector<2x128xf32>
    %598 = vector.extract_strided_slice %459 {offsets = [30, 0], sizes = [2, 128], strides = [1, 1]} : vector<48x128xf32> to vector<2x128xf32>
    %599 = arith.addf %597, %598 : vector<2x128xf32>
    %600 = vector.extract_strided_slice %460 {offsets = [28, 0], sizes = [2, 128], strides = [1, 1]} : vector<48x128xf32> to vector<2x128xf32>
    %601 = arith.addf %599, %600 : vector<2x128xf32>
    %602 = vector.extract_strided_slice %461 {offsets = [26, 0], sizes = [2, 128], strides = [1, 1]} : vector<48x128xf32> to vector<2x128xf32>
    %603 = arith.addf %601, %602 : vector<2x128xf32>
    %604 = vector.extract_strided_slice %457 {offsets = [36, 0], sizes = [2, 128], strides = [1, 1]} : vector<48x128xf32> to vector<2x128xf32>
    %605 = vector.extract_strided_slice %458 {offsets = [34, 0], sizes = [2, 128], strides = [1, 1]} : vector<48x128xf32> to vector<2x128xf32>
    %606 = arith.addf %604, %605 : vector<2x128xf32>
    %607 = vector.extract_strided_slice %459 {offsets = [32, 0], sizes = [2, 128], strides = [1, 1]} : vector<48x128xf32> to vector<2x128xf32>
    %608 = arith.addf %606, %607 : vector<2x128xf32>
    %609 = vector.extract_strided_slice %460 {offsets = [30, 0], sizes = [2, 128], strides = [1, 1]} : vector<48x128xf32> to vector<2x128xf32>
    %610 = arith.addf %608, %609 : vector<2x128xf32>
    %611 = vector.extract_strided_slice %461 {offsets = [28, 0], sizes = [2, 128], strides = [1, 1]} : vector<48x128xf32> to vector<2x128xf32>
    %612 = arith.addf %610, %611 : vector<2x128xf32>
    %613 = vector.extract_strided_slice %457 {offsets = [38, 0], sizes = [2, 128], strides = [1, 1]} : vector<48x128xf32> to vector<2x128xf32>
    %614 = vector.extract_strided_slice %458 {offsets = [36, 0], sizes = [2, 128], strides = [1, 1]} : vector<48x128xf32> to vector<2x128xf32>
    %615 = arith.addf %613, %614 : vector<2x128xf32>
    %616 = vector.extract_strided_slice %459 {offsets = [34, 0], sizes = [2, 128], strides = [1, 1]} : vector<48x128xf32> to vector<2x128xf32>
    %617 = arith.addf %615, %616 : vector<2x128xf32>
    %618 = vector.extract_strided_slice %460 {offsets = [32, 0], sizes = [2, 128], strides = [1, 1]} : vector<48x128xf32> to vector<2x128xf32>
    %619 = arith.addf %617, %618 : vector<2x128xf32>
    %620 = vector.extract_strided_slice %461 {offsets = [30, 0], sizes = [2, 128], strides = [1, 1]} : vector<48x128xf32> to vector<2x128xf32>
    %621 = arith.addf %619, %620 : vector<2x128xf32>
    %622 = vector.extract_strided_slice %457 {offsets = [40, 0], sizes = [2, 128], strides = [1, 1]} : vector<48x128xf32> to vector<2x128xf32>
    %623 = vector.extract_strided_slice %458 {offsets = [38, 0], sizes = [2, 128], strides = [1, 1]} : vector<48x128xf32> to vector<2x128xf32>
    %624 = arith.addf %622, %623 : vector<2x128xf32>
    %625 = vector.extract_strided_slice %459 {offsets = [36, 0], sizes = [2, 128], strides = [1, 1]} : vector<48x128xf32> to vector<2x128xf32>
    %626 = arith.addf %624, %625 : vector<2x128xf32>
    %627 = vector.extract_strided_slice %460 {offsets = [34, 0], sizes = [2, 128], strides = [1, 1]} : vector<48x128xf32> to vector<2x128xf32>
    %628 = arith.addf %626, %627 : vector<2x128xf32>
    %629 = vector.extract_strided_slice %461 {offsets = [32, 0], sizes = [2, 128], strides = [1, 1]} : vector<48x128xf32> to vector<2x128xf32>
    %630 = arith.addf %628, %629 : vector<2x128xf32>
    %631 = vector.extract_strided_slice %457 {offsets = [42, 0], sizes = [2, 128], strides = [1, 1]} : vector<48x128xf32> to vector<2x128xf32>
    %632 = vector.extract_strided_slice %458 {offsets = [40, 0], sizes = [2, 128], strides = [1, 1]} : vector<48x128xf32> to vector<2x128xf32>
    %633 = arith.addf %631, %632 : vector<2x128xf32>
    %634 = vector.extract_strided_slice %459 {offsets = [38, 0], sizes = [2, 128], strides = [1, 1]} : vector<48x128xf32> to vector<2x128xf32>
    %635 = arith.addf %633, %634 : vector<2x128xf32>
    %636 = vector.extract_strided_slice %460 {offsets = [36, 0], sizes = [2, 128], strides = [1, 1]} : vector<48x128xf32> to vector<2x128xf32>
    %637 = arith.addf %635, %636 : vector<2x128xf32>
    %638 = vector.extract_strided_slice %461 {offsets = [34, 0], sizes = [2, 128], strides = [1, 1]} : vector<48x128xf32> to vector<2x128xf32>
    %639 = arith.addf %637, %638 : vector<2x128xf32>
    %640 = vector.extract_strided_slice %457 {offsets = [44, 0], sizes = [2, 128], strides = [1, 1]} : vector<48x128xf32> to vector<2x128xf32>
    %641 = vector.extract_strided_slice %458 {offsets = [42, 0], sizes = [2, 128], strides = [1, 1]} : vector<48x128xf32> to vector<2x128xf32>
    %642 = arith.addf %640, %641 : vector<2x128xf32>
    %643 = vector.extract_strided_slice %459 {offsets = [40, 0], sizes = [2, 128], strides = [1, 1]} : vector<48x128xf32> to vector<2x128xf32>
    %644 = arith.addf %642, %643 : vector<2x128xf32>
    %645 = vector.extract_strided_slice %460 {offsets = [38, 0], sizes = [2, 128], strides = [1, 1]} : vector<48x128xf32> to vector<2x128xf32>
    %646 = arith.addf %644, %645 : vector<2x128xf32>
    %647 = vector.extract_strided_slice %461 {offsets = [36, 0], sizes = [2, 128], strides = [1, 1]} : vector<48x128xf32> to vector<2x128xf32>
    %648 = arith.addf %646, %647 : vector<2x128xf32>
    %649 = vector.extract_strided_slice %457 {offsets = [46, 0], sizes = [2, 128], strides = [1, 1]} : vector<48x128xf32> to vector<2x128xf32>
    %650 = vector.extract_strided_slice %458 {offsets = [44, 0], sizes = [2, 128], strides = [1, 1]} : vector<48x128xf32> to vector<2x128xf32>
    %651 = arith.addf %649, %650 : vector<2x128xf32>
    %652 = vector.extract_strided_slice %459 {offsets = [42, 0], sizes = [2, 128], strides = [1, 1]} : vector<48x128xf32> to vector<2x128xf32>
    %653 = arith.addf %651, %652 : vector<2x128xf32>
    %654 = vector.extract_strided_slice %460 {offsets = [40, 0], sizes = [2, 128], strides = [1, 1]} : vector<48x128xf32> to vector<2x128xf32>
    %655 = arith.addf %653, %654 : vector<2x128xf32>
    %656 = vector.extract_strided_slice %461 {offsets = [38, 0], sizes = [2, 128], strides = [1, 1]} : vector<48x128xf32> to vector<2x128xf32>
    %657 = arith.addf %655, %656 : vector<2x128xf32>
    %658 = vector.extract_strided_slice %458 {offsets = [46, 0], sizes = [2, 128], strides = [1, 1]} : vector<48x128xf32> to vector<2x128xf32>
    %659 = vector.extract_strided_slice %459 {offsets = [44, 0], sizes = [2, 128], strides = [1, 1]} : vector<48x128xf32> to vector<2x128xf32>
    %660 = arith.addf %658, %659 : vector<2x128xf32>
    %661 = vector.extract_strided_slice %460 {offsets = [42, 0], sizes = [2, 128], strides = [1, 1]} : vector<48x128xf32> to vector<2x128xf32>
    %662 = arith.addf %660, %661 : vector<2x128xf32>
    %663 = vector.extract_strided_slice %461 {offsets = [40, 0], sizes = [2, 128], strides = [1, 1]} : vector<48x128xf32> to vector<2x128xf32>
    %664 = arith.addf %662, %663 : vector<2x128xf32>
    %665 = vector.extract_strided_slice %459 {offsets = [46, 0], sizes = [2, 128], strides = [1, 1]} : vector<48x128xf32> to vector<2x128xf32>
    %666 = vector.extract_strided_slice %460 {offsets = [44, 0], sizes = [2, 128], strides = [1, 1]} : vector<48x128xf32> to vector<2x128xf32>
    %667 = arith.addf %665, %666 : vector<2x128xf32>
    %668 = vector.extract_strided_slice %461 {offsets = [42, 0], sizes = [2, 128], strides = [1, 1]} : vector<48x128xf32> to vector<2x128xf32>
    %669 = arith.addf %667, %668 : vector<2x128xf32>
    %670 = vector.extract_strided_slice %460 {offsets = [46, 0], sizes = [2, 128], strides = [1, 1]} : vector<48x128xf32> to vector<2x128xf32>
    %671 = vector.extract_strided_slice %461 {offsets = [44, 0], sizes = [2, 128], strides = [1, 1]} : vector<48x128xf32> to vector<2x128xf32>
    %672 = arith.addf %670, %671 : vector<2x128xf32>
    %673 = vector.extract_strided_slice %461 {offsets = [46, 0], sizes = [2, 128], strides = [1, 1]} : vector<48x128xf32> to vector<2x128xf32>
    %674 = tpu.concatenate %462, %465, %470, %477, %486, %495, %504, %513, %522, %531, %540, %549, %558, %567, %576, %585 in 0 : vector<2x128xf32>, vector<2x128xf32>, vector<2x128xf32>, vector<2x128xf32>, vector<2x128xf32>, vector<2x128xf32>, vector<2x128xf32>, vector<2x128xf32>, vector<2x128xf32>, vector<2x128xf32>, vector<2x128xf32>, vector<2x128xf32>, vector<2x128xf32>, vector<2x128xf32>, vector<2x128xf32>, vector<2x128xf32> -> vector<32x128xf32>
    %675 = tpu.concatenate %594, %603, %612, %621, %630, %639, %648, %657, %664, %669, %672, %673 in 0 : vector<2x128xf32>, vector<2x128xf32>, vector<2x128xf32>, vector<2x128xf32>, vector<2x128xf32>, vector<2x128xf32>, vector<2x128xf32>, vector<2x128xf32>, vector<2x128xf32>, vector<2x128xf32>, vector<2x128xf32>, vector<2x128xf32> -> vector<24x128xf32>
    %676 = tpu.concatenate %674, %675 in 0 : vector<32x128xf32>, vector<24x128xf32> -> vector<56x128xf32>
    %c0_56 = arith.constant 0 : index
    %c240 = arith.constant 240 : index
    %677 = vector.load %arg6[%c0_56, %c240] : memref<1x368xf32, #tpu.memory_space<vmem>>, vector<1x128xf32>
    %678 = vector.broadcast %677 : vector<1x128xf32> to vector<56x128xf32>
    %679 = arith.addf %676, %678 : vector<56x128xf32>
    %680 = math.tanh %679 : vector<56x128xf32>
    %c0_57 = arith.constant 0 : index
    %c0_58 = arith.constant 0 : index
    %681 = vector.load %arg7[%c0_57, %c0_58] : memref<56x128xf32, #tpu.memory_space<vmem>>, vector<56x128xf32>
    tpu.vector_store %arg7[%c0_57, %c0_58], %680 {strides = array<i32>} : memref<56x128xf32, #tpu.memory_space<vmem>>, vector<56x128xf32>,
    return
  }
}

</mosaic_0001>

<llo_original>
// kernel: forward.1
$region0: #{forward.1}
  #allocation0 [shape = 'u32[]', space=smem, size = 0x4, offset = 0x4, fixed_abs, tag = 'smem constant byte address 0x4 - core index']
  #allocation1 [shape = 'u32[144,128]{1,0:T(1,128)}', space=vmem, size = 0x12000, scoped, tag = 'internal scratch']
  %s0 = inlined_call_operand.vmem [shape: f32[2,8], index: 0, kind: input, shape index: {}]
  %s1 = inlined_call_operand.vmem [shape: bf16[8,576], index: 1, kind: input, shape index: {}]
  %s2 = inlined_call_operand.hbm [shape: bf16[192,768], index: 2, kind: input, shape index: {}]
  %s3 = inlined_call_operand.hbm [shape: bf16[192,768], index: 3, kind: input, shape index: {}]
  %s4 = inlined_call_operand.hbm [shape: bf16[192,768], index: 4, kind: input, shape index: {}]
  %s5 = inlined_call_operand.hbm [shape: bf16[192,640], index: 5, kind: input, shape index: {}]
  %s6 = inlined_call_operand.vmem [shape: f32[1,368], index: 6, kind: input, shape index: {}]
  %s7 = inlined_call_operand.vmem [shape: f32[56,128], index: 7, kind: output, shape index: {}]
  %s8 = sld [smem:[#allocation0]]
  $region54: #{forward.1} parent=0
    _
  %s10 = ssub.s32 1, %s8
  %s11 = scalar_select 0, %s10, %s8
  $region1: #{forward.1} parent=0
    #allocation2 [shape = 'u8[294912]{0}', space=vmem, size = 0x48000, scoped, tag = 'input window, operand 2, single buffered']
    #allocation3 [shape = 's32[1]{0}', space=sflag, size = 0x4, scoped, tag = 'scoped memory for forward.1']
    #allocation4 [shape = 'u8[294912]{0}', space=vmem, size = 0x48000, scoped, tag = 'input window, operand 3, single buffered']
    #allocation5 [shape = 's32[1]{0}', space=sflag, size = 0x4, scoped, tag = 'scoped memory for forward.1']
    #allocation6 [shape = 'u8[294912]{0}', space=vmem, size = 0x48000, scoped, tag = 'input window, operand 4, single buffered']
    #allocation7 [shape = 'u8[245760]{0}', space=vmem, size = 0x3c000, scoped, tag = 'input window, operand 5, single buffered']
    #allocation8 [shape = 's32[1]{0}', space=sflag, size = 0x4, scoped, tag = 'scoped memory for forward.1']
    %12 = vsyncpa [#allocation3], 0
    %13 = vsyncpa [#allocation5], 0
    %14 = vsyncpa [#allocation8], 0
    // Predicated region
    $region2: #{forward.1} parent=1 // pred_check
      _
    $region3: #{forward.1} parent=1 // pred_check_branch
      %16 = sbr.rel (0) target = $region5
    $region4: #{forward.1} parent=1 // pred_region
      _
    $region5: #{forward.1} parent=1 // pred_fallthru
      _
    // Predicated region
    $region6: #{forward.1} parent=1 // pred_check
      _
    $region7: #{forward.1} parent=1 // pred_check_branch
      %18 = sbr.rel (0) target = $region9
    $region8: #{forward.1} parent=1 // pred_region
      _
    $region9: #{forward.1} parent=1 // pred_fallthru
      _
    // Predicated region
    $region10: #{forward.1} parent=1 // pred_check
      _
    $region11: #{forward.1} parent=1 // pred_check_branch
      %20 = sbr.rel (0) target = $region13
    $region12: #{forward.1} parent=1 // pred_region
      %s22 = ssub.s32 9216, 9216
      %23 = vsyncadd [#allocation3], %s22
      %s24 = sshll.u32 [#allocation2], 4
      %s25 = int_to_ptr.vmem [resolvable:$true] %s24
      %30 = dma.hbm_to_vmem [thread:$0]  %s2, 9216, %s25, [#allocation3], 384, 384, 24
    $region13: #{forward.1} parent=1 // pred_fallthru
      _
    // Predicated region
    $region14: #{forward.1} parent=1 // pred_check
      _
    $region15: #{forward.1} parent=1 // pred_check_branch
      %32 = sbr.rel (0) target = $region17
    $region16: #{forward.1} parent=1 // pred_region
      %s34 = ssub.s32 9216, 9216
      %35 = vsyncadd [#allocation5], %s34
      %s36 = sshll.u32 [#allocation4], 4
      %s37 = int_to_ptr.vmem [resolvable:$true] %s36
      %42 = dma.hbm_to_vmem [thread:$0]  %s3, 9216, %s37, [#allocation5], 384, 384, 24
    $region17: #{forward.1} parent=1 // pred_fallthru
      _
    // Predicated region
    $region18: #{forward.1} parent=1 // pred_check
      _
    $region19: #{forward.1} parent=1 // pred_check_branch
      %44 = sbr.rel (0) target = $region21
    $region20: #{forward.1} parent=1 // pred_region
      %s46 = ssub.s32 9216, 9216
      %47 = vsyncadd [#allocation5], %s46
      %s48 = sshll.u32 [#allocation6], 4
      %s49 = int_to_ptr.vmem [resolvable:$true] %s48
      %54 = dma.hbm_to_vmem [thread:$0]  %s4, 9216, %s49, [#allocation5], 384, 384, 24
    $region21: #{forward.1} parent=1 // pred_fallthru
      _
    // Predicated region
    $region22: #{forward.1} parent=1 // pred_check
      _
    $region23: #{forward.1} parent=1 // pred_check_branch
      %56 = sbr.rel (0) target = $region25
    $region24: #{forward.1} parent=1 // pred_region
      %s58 = ssub.s32 7680, 7680
      %59 = vsyncadd [#allocation8], %s58
      %s60 = sshll.u32 [#allocation7], 4
      %s61 = int_to_ptr.vmem [resolvable:$true] %s60
      %66 = dma.hbm_to_vmem [thread:$0]  %s5, 7680, %s61, [#allocation8], 320, 320, 20
    $region25: #{forward.1} parent=1 // pred_fallthru
      _
    // Predicated region
    $region26: #{forward.1} parent=1 // pred_check
      _
    $region27: #{forward.1} parent=1 // pred_check_branch
      %68 = sbr.rel (0) target = $region29
    $region28: #{forward.1} parent=1 // pred_region
      _
    $region29: #{forward.1} parent=1 // pred_fallthru
      _
    // Predicated region
    $region30: #{forward.1} parent=1 // pred_check
      _
    $region31: #{forward.1} parent=1 // pred_check_branch
      %70 = sbr.rel (0) target = $region33
    $region32: #{forward.1} parent=1 // pred_region
      %71 = dma.done [#allocation3], 9216
    $region33: #{forward.1} parent=1 // pred_fallthru
      _
    // Predicated region
    $region34: #{forward.1} parent=1 // pred_check
      _
    $region35: #{forward.1} parent=1 // pred_check_branch
      %73 = sbr.rel (0) target = $region37
    $region36: #{forward.1} parent=1 // pred_region
      %74 = dma.done [#allocation5], 9216
    $region37: #{forward.1} parent=1 // pred_fallthru
      _
    // Predicated region
    $region38: #{forward.1} parent=1 // pred_check
      _
    $region39: #{forward.1} parent=1 // pred_check_branch
      %76 = sbr.rel (0) target = $region41
    $region40: #{forward.1} parent=1 // pred_region
      %77 = dma.done [#allocation5], 9216
    $region41: #{forward.1} parent=1 // pred_fallthru
      _
    // Predicated region
    $region42: #{forward.1} parent=1 // pred_check
      _
    $region43: #{forward.1} parent=1 // pred_check_branch
      %79 = sbr.rel (0) target = $region45
    $region44: #{forward.1} parent=1 // pred_region
      %80 = dma.done [#allocation8], 7680
    $region45: #{forward.1} parent=1 // pred_fallthru
      _
    %v82 = vld [vmem:[%s0] sm:$0x3]
    %v83 = vpack.c.bf16 %v82, %v82
    %v84 = vld [vmem:[%s1] sm:$0xff]
    %v85 = vld [vmem:[%s1 + $0x8] sm:$0xff]
    %v86 = vld [vmem:[%s1 + $0x10] sm:$0xf]
    %v90 = vunpack.c.l.b16 %v84
    %v91 = vunpack.c.h.b16 %v84
    %v92 = vunpack.c.l.b16 %v85
    %v93 = vunpack.c.h.b16 %v85
    %v94 = vunpack.c.l.b16 %v86
    %v95 = vpack.c.b16 %v90, %v90
    %v96 = vpack.c.b16 %v91, %v91
    %v97 = vpack.c.b16 %v92, %v92
    %v98 = vpack.c.b16 %v93, %v93
    %v99 = vpack.c.b16 %v94, %v94
    %vm100 = vcmask 64512
    %v102 = vsel %vm100, %v83, 0
    %vm104 = vcmask 1043456
    %v106 = vsel %vm104, %v95, 0
    %v109 = vsel %vm104, %v96, 0
    %v112 = vsel %vm104, %v97, 0
    %v115 = vsel %vm104, %v98, 0
    %v118 = vsel %vm104, %v99, 0
    %120 = vmatprep.subr.bf16.mxu0 %v109
    %121 = vmatpush1.bf16.msra.mxu0 %v106
    %122 = vmatprep.subr.bf16.mxu0 0
    %123 = vmatpush1.bf16.msra.mxu0 0
    %124 = vmatprep.subr.bf16.mxu0 0
    %125 = vmatpush1.bf16.msra.mxu0 0
    %126 = vmatprep.subr.bf16.mxu0 0
    %127 = vmatpush1.bf16.msra.mxu0 0
    %128 = vmatprep.subr.bf16.mxu0 0
    %129 = vmatpush1.bf16.msra.mxu0 0
    %130 = vmatprep.subr.bf16.mxu0 0
    %131 = vmatpush1.bf16.msra.mxu0 0
    %132 = vmatprep.subr.bf16.mxu0 0
    %133 = vmatpush1.bf16.msra.mxu0 0
    %134 = vmatprep.subr.bf16.mxu0 0
    %135 = vmatpush1.bf16.msra.mxu0 0
    %136 = vmatprep.subr.bf16.mxu0 0
    %137 = vmatpush1.bf16.msra.mxu0 0
    %138 = vmatprep.subr.bf16.mxu0 0
    %139 = vmatpush1.bf16.msra.mxu0 0
    %140 = vmatprep.subr.bf16.mxu0 0
    %141 = vmatpush1.bf16.msra.mxu0 0
    %142 = vmatprep.subr.bf16.mxu0 0
    %143 = vmatpush1.bf16.msra.mxu0 0
    %144 = vmatprep.subr.bf16.mxu0 0
    %145 = vmatpush1.bf16.msra.mxu0 0
    %146 = vmatprep.subr.bf16.mxu0 0
    %147 = vmatpush1.bf16.msra.mxu0 0
    %148 = vmatprep.subr.bf16.mxu0 0
    %149 = vmatpush1.bf16.msra.mxu0 0
    %150 = vmatprep.subr.bf16.mxu0 0
    %151 = vmatpush1.bf16.msra.mxu0 0
    %152 = vmatprep.mubr.bf16.mxu0 0
    %153 = vmatmul.mubr.bf16.gmra.mrb[0].mxu0 %v102
    %v154 = vpop.f32.mrb[0].mxu0
    %v155 = vadd.f32 0.0, %v154
    %v156 = vpop.f32.mrb[0].mxu0
    %v157 = vadd.f32 0.0, %v156
    %v158 = vpop.f32.mrb[0].mxu0
    %v159 = vpop.f32.mrb[0].mxu0
    %160 = vdwg.mxu0
    %161 = vmatprep.subr.bf16.mxu0 %v115
    %162 = vmatpush1.bf16.msra.mxu0 %v112
    %163 = vmatprep.subr.bf16.mxu0 0
    %164 = vmatpush1.bf16.msra.mxu0 0
    %165 = vmatprep.subr.bf16.mxu0 0
    %166 = vmatpush1.bf16.msra.mxu0 0
    %167 = vmatprep.subr.bf16.mxu0 0
    %168 = vmatpush1.bf16.msra.mxu0 0
    %169 = vmatprep.subr.bf16.mxu0 0
    %170 = vmatpush1.bf16.msra.mxu0 0
    %171 = vmatprep.subr.bf16.mxu0 0
    %172 = vmatpush1.bf16.msra.mxu0 0
    %173 = vmatprep.subr.bf16.mxu0 0
    %174 = vmatpush1.bf16.msra.mxu0 0
    %175 = vmatprep.subr.bf16.mxu0 0
    %176 = vmatpush1.bf16.msra.mxu0 0
    %177 = vmatprep.subr.bf16.mxu0 0
    %178 = vmatpush1.bf16.msra.mxu0 0
    %179 = vmatprep.subr.bf16.mxu0 0
    %180 = vmatpush1.bf16.msra.mxu0 0
    %181 = vmatprep.subr.bf16.mxu0 0
    %182 = vmatpush1.bf16.msra.mxu0 0
    %183 = vmatprep.subr.bf16.mxu0 0
    %184 = vmatpush1.bf16.msra.mxu0 0
    %185 = vmatprep.subr.bf16.mxu0 0
    %186 = vmatpush1.bf16.msra.mxu0 0
    %187 = vmatprep.subr.bf16.mxu0 0
    %188 = vmatpush1.bf16.msra.mxu0 0
    %189 = vmatprep.subr.bf16.mxu0 0
    %190 = vmatpush1.bf16.msra.mxu0 0
    %191 = vmatprep.subr.bf16.mxu0 0
    %192 = vmatpush1.bf16.msra.mxu0 0
    %193 = vmatprep.mubr.bf16.mxu0 0
    %194 = vmatmul.mubr.bf16.gmra.mrb[0].mxu0 %v102
    %v195 = vpop.f32.mrb[0].mxu0
    %v196 = vadd.f32 0.0, %v195
    %v197 = vpop.f32.mrb[0].mxu0
    %v198 = vadd.f32 0.0, %v197
    %v199 = vpop.f32.mrb[0].mxu0
    %v200 = vpop.f32.mrb[0].mxu0
    %201 = vdwg.mxu0
    %202 = vmatprep.subr.bf16.mxu0 0
    %203 = vmatpush1.bf16.msra.mxu0 %v118
    %204 = vmatprep.subr.bf16.mxu0 0
    %205 = vmatpush1.bf16.msra.mxu0 0
    %206 = vmatprep.subr.bf16.mxu0 0
    %207 = vmatpush1.bf16.msra.mxu0 0
    %208 = vmatprep.subr.bf16.mxu0 0
    %209 = vmatpush1.bf16.msra.mxu0 0
    %210 = vmatprep.subr.bf16.mxu0 0
    %211 = vmatpush1.bf16.msra.mxu0 0
    %212 = vmatprep.subr.bf16.mxu0 0
    %213 = vmatpush1.bf16.msra.mxu0 0
    %214 = vmatprep.subr.bf16.mxu0 0
    %215 = vmatpush1.bf16.msra.mxu0 0
    %216 = vmatprep.subr.bf16.mxu0 0
    %217 = vmatpush1.bf16.msra.mxu0 0
    %218 = vmatprep.subr.bf16.mxu0 0
    %219 = vmatpush1.bf16.msra.mxu0 0
    %220 = vmatprep.subr.bf16.mxu0 0
    %221 = vmatpush1.bf16.msra.mxu0 0
    %222 = vmatprep.subr.bf16.mxu0 0
    %223 = vmatpush1.bf16.msra.mxu0 0
    %224 = vmatprep.subr.bf16.mxu0 0
    %225 = vmatpush1.bf16.msra.mxu0 0
    %226 = vmatprep.subr.bf16.mxu0 0
    %227 = vmatpush1.bf16.msra.mxu0 0
    %228 = vmatprep.subr.bf16.mxu0 0
    %229 = vmatpush1.bf16.msra.mxu0 0
    %230 = vmatprep.subr.bf16.mxu0 0
    %231 = vmatpush1.bf16.msra.mxu0 0
    %232 = vmatprep.subr.bf16.mxu0 0
    %233 = vmatpush1.bf16.msra.mxu0 0
    %234 = vmatprep.mubr.bf16.mxu0 0
    %235 = vmatmul.mubr.bf16.gmra.mrb[0].mxu0 %v102
    %v236 = vpop.f32.mrb[0].mxu0
    %v237 = vadd.f32 0.0, %v236
    %v238 = vpop.f32.mrb[0].mxu0
    %v239 = vpop.f32.mrb[0].mxu0
    %v240 = vpop.f32.mrb[0].mxu0
    %241 = vdwg.mxu0
    %v244 = vrot.slane %v157, 6
    %v245 = vrot.slane %v196, 6
    %246 = vrot.lane.b32.xlu0 %v244, 64
    %v247 = vpop.permute.xlu0 %246
    %248 = vrot.lane.b32.xlu0 %v245, 64
    %v249 = vpop.permute.xlu0 %248
    %vm250 = vcmask 523264
    %v251 = vsel %vm250, %v247, %v249
    %v256 = vrot.slane %v198, 4
    %v257 = vrot.slane %v237, 4
    %vm260 = vcmask 1041408
    %v261 = vsel %vm260, %v155, %v251
    %v262 = vsel %vm260, %v157, %v249
    %v263 = vsel %vm104, %v261, %v256
    %v264 = vsel %vm104, %v262, %v257
    %v265 = vld [vmem:[%s6] sm:$0x1]
    %vm266 = vcmask 1045504
    %v267 = vsel %vm266, %v263, 0.0
    %v268 = vrot.slane %v267, 4
    %v269 = vadd.f32 %v267, %v268
    %v270 = vrot.slane %v269, 2
    %v271 = vadd.f32 %v269, %v270
    %v272 = vrot.slane %v271, 1
    %v273 = vadd.f32 %v271, %v272
    %vm274 = vcmask 521216
    %v275 = vsel %vm274, %v264, 0.0
    %v276 = vrot.slane %v275, 4
    %v277 = vadd.f32 %v275, %v276
    %v278 = vrot.slane %v277, 2
    %v279 = vadd.f32 %v277, %v278
    %v280 = vrot.slane %v279, 1
    %v281 = vadd.f32 %v279, %v280
    %v282 = vmul.f32 %v263, %v263
    %v283 = vmul.f32 %v264, %v264
    %v284 = vsel %vm266, %v282, 0.0
    %v285 = vrot.slane %v284, 4
    %v286 = vadd.f32 %v284, %v285
    %v287 = vrot.slane %v286, 2
    %v288 = vadd.f32 %v286, %v287
    %v289 = vrot.slane %v288, 1
    %v290 = vadd.f32 %v288, %v289
    %v291 = vsel %vm274, %v283, 0.0
    %v292 = vrot.slane %v291, 4
    %v293 = vadd.f32 %v291, %v292
    %v294 = vrot.slane %v293, 2
    %v295 = vadd.f32 %v293, %v294
    %v296 = vrot.slane %v295, 1
    %v297 = vadd.f32 %v295, %v296
    %v298 = vadd.f32 %v273, 0.0
    %300 = vrot.lane.b32.xlu0 %v273, 64
    %v301 = vpop.permute.xlu0 %300
    %v303 = vadd.f32 %v298, %v301
    %v304 = vadd.f32 %v303, %v281
    %v305 = vadd.f32 %v290, 0.0
    %307 = vrot.lane.b32.xlu0 %v290, 64
    %v308 = vpop.permute.xlu0 %307
    %v310 = vadd.f32 %v305, %v308
    %v311 = vadd.f32 %v310, %v297
    %v312 = vrcp.pop 18.0
    %v313 = vmul.f32 %v304, %v312
    %v314 = vmul.f32 %v311, %v312
    %v315 = vmul.f32 %v313, %v313
    %v316 = vsub.f32 %v314, %v315
    %v317 = vadd.f32 %v316, 1e-05
    %v318 = vrsqrt.pop %v317
    %v319 = vmul.f32 %v265, %v318
    %v320 = vmul.f32 %v313, %v319
    %v323 = vunpack.c.l.s4 1966171168
    %v324 = vunpack.c.0.s8 %v323
    %v325 = vlaneseq
    %v326 = vshrl.u32 %v325, 7
    %v327 = vsub.s32 %v324, %v326
    %v328 = vrot.slane %v320, %v327
    %v330 = vunpack.c.l.s4 1966171168
    %v331 = vunpack.c.0.s8 %v330
    %v332 = vlaneseq
    %v333 = vshrl.u32 %v332, 7
    %v334 = vsub.s32 %v331, %v333
    %v335 = vrot.slane %v328, %v334
    %336 = vrot.lane.b32.xlu0 %v335, 64
    %v337 = vpop.permute.xlu0 %336
    %v339 = vsub.f32 %v265, %v337
    %v341 = vlaneseq
    %v342 = vshrl.u32 %v341, 7
    %v343 = vsub.s32 0, %v342
    %v344 = vrot.slane %v339, %v343
    %345 = vrot.lane.b32.xlu0 %v344, 64
    %v346 = vpop.permute.xlu0 %345
    %vm348 = vcmask 1040384
    %v349 = vsel %vm348, %v319, %v346
    %351 = vrot.lane.b32.xlu0 %v349, 64
    %v352 = vpop.permute.xlu0 %351
    %v354 = vsel %vm250, %v349, %v352
    %v355 = vlaneseq
    %v356 = vshrl.u32 %v355, 7
    %v357 = vsub.s32 0, %v356
    %v358 = vrot.slane %v354, %v357
    %v359 = vlaneseq
    %v360 = vshrl.u32 %v359, 7
    %v361 = vsub.s32 0, %v360
    %v362 = vrot.slane %v349, %v361
    %v363 = vmul.f32 %v263, %v358
    %v364 = vmul.f32 %v264, %v362
    %v365 = vlaneseq
    %v366 = vshrl.u32 %v365, 7
    %v367 = vsub.s32 1, %v366
    %v368 = vrot.slane %v354, %v367
    %v369 = vlaneseq
    %v370 = vshrl.u32 %v369, 7
    %v371 = vsub.s32 1, %v370
    %v372 = vrot.slane %v349, %v371
    %v373 = vadd.f32 %v363, %v368
    %v374 = vadd.f32 %v364, %v372
    %v375 = vmax.f32 %v373, 0.0
    %v376 = vmax.f32 %v374, 0.0
    %v377 = vpack.c.bf16 %v375, %v375
    %v378 = vpack.c.bf16 %v376, %v376
    %v379 = vld [vmem:[#allocation2] sm:$0xff]
    %v380 = vld [vmem:[#allocation2 + $0x8] sm:$0xff]
    %v381 = vld [vmem:[#allocation2 + $0x10] sm:$0xff]
    %v382 = vld [vmem:[#allocation2 + $0x18] sm:$0xff]
    %v383 = vld [vmem:[#allocation2 + $0x20] sm:$0xff]
    %v384 = vld [vmem:[#allocation2 + $0x28] sm:$0xff]
    %v385 = vld [vmem:[#allocation2 + $0x30] sm:$0xff]
    %v386 = vld [vmem:[#allocation2 + $0x38] sm:$0xff]
    %v387 = vld [vmem:[#allocation2 + $0x40] sm:$0xff]
    %v388 = vld [vmem:[#allocation2 + $0x48] sm:$0xff]
    %v389 = vld [vmem:[#allocation2 + $0x50] sm:$0xff]
    %v390 = vld [vmem:[#allocation2 + $0x58] sm:$0xff]
    %v391 = vld [vmem:[#allocation2 + $0x60] sm:$0xff]
    %v392 = vld [vmem:[#allocation2 + $0x68] sm:$0xff]
    %v393 = vld [vmem:[#allocation2 + $0x70] sm:$0xff]
    %v394 = vld [vmem:[#allocation2 + $0x78] sm:$0xff]
    %v395 = vld [vmem:[#allocation2 + $0x80] sm:$0xff]
    %v396 = vld [vmem:[#allocation2 + $0x88] sm:$0xff]
    %v397 = vld [vmem:[#allocation2 + $0x90] sm:$0xff]
    %v398 = vld [vmem:[#allocation2 + $0x98] sm:$0xff]
    %v399 = vld [vmem:[#allocation2 + $0xa0] sm:$0xff]
    %v400 = vld [vmem:[#allocation2 + $0xa8] sm:$0xff]
    %v401 = vld [vmem:[#allocation2 + $0xb0] sm:$0xff]
    %v402 = vld [vmem:[#allocation2 + $0xb8] sm:$0xff]
    %v403 = vld [vmem:[#allocation2 + $0xc0] sm:$0xff]
    %v404 = vld [vmem:[#allocation2 + $0xc8] sm:$0xff]
    %v405 = vld [vmem:[#allocation2 + $0xd0] sm:$0xff]
    %v406 = vld [vmem:[#allocation2 + $0xd8] sm:$0xff]
    %v407 = vld [vmem:[#allocation2 + $0xe0] sm:$0xff]
    %v408 = vld [vmem:[#allocation2 + $0xe8] sm:$0xff]
    %v409 = vld [vmem:[#allocation2 + $0xf0] sm:$0xff]
    %v410 = vld [vmem:[#allocation2 + $0xf8] sm:$0xff]
    %v411 = vld [vmem:[#allocation2 + $0x100] sm:$0xff]
    %v412 = vld [vmem:[#allocation2 + $0x108] sm:$0xff]
    %v413 = vld [vmem:[#allocation2 + $0x110] sm:$0xff]
    %v414 = vld [vmem:[#allocation2 + $0x118] sm:$0xff]
    %v415 = vld [vmem:[#allocation2 + $0x120] sm:$0xff]
    %v416 = vld [vmem:[#allocation2 + $0x128] sm:$0xff]
    %v417 = vld [vmem:[#allocation2 + $0x130] sm:$0xff]
    %v418 = vld [vmem:[#allocation2 + $0x138] sm:$0xff]
    %v419 = vld [vmem:[#allocation2 + $0x140] sm:$0xff]
    %v420 = vld [vmem:[#allocation2 + $0x148] sm:$0xff]
    %v421 = vld [vmem:[#allocation2 + $0x150] sm:$0xff]
    %v422 = vld [vmem:[#allocation2 + $0x158] sm:$0xff]
    %v423 = vld [vmem:[#allocation2 + $0x160] sm:$0xff]
    %v424 = vld [vmem:[#allocation2 + $0x168] sm:$0xff]
    %v425 = vld [vmem:[#allocation2 + $0x170] sm:$0xff]
    %v426 = vld [vmem:[#allocation2 + $0x178] sm:$0xff]
    %v427 = vld [vmem:[#allocation2 + $0x180] sm:$0xff]
    %v428 = vld [vmem:[#allocation2 + $0x188] sm:$0xff]
    %v429 = vld [vmem:[#allocation2 + $0x190] sm:$0xff]
    %v430 = vld [vmem:[#allocation2 + $0x198] sm:$0xff]
    %v431 = vld [vmem:[#allocation2 + $0x1a0] sm:$0xff]
    %v432 = vld [vmem:[#allocation2 + $0x1a8] sm:$0xff]
    %v433 = vld [vmem:[#allocation2 + $0x1b0] sm:$0xff]
    %v434 = vld [vmem:[#allocation2 + $0x1b8] sm:$0xff]
    %v435 = vld [vmem:[#allocation2 + $0x1c0] sm:$0xff]
    %v436 = vld [vmem:[#allocation2 + $0x1c8] sm:$0xff]
    %v437 = vld [vmem:[#allocation2 + $0x1d0] sm:$0xff]
    %v438 = vld [vmem:[#allocation2 + $0x1d8] sm:$0xff]
    %v439 = vld [vmem:[#allocation2 + $0x1e0] sm:$0xff]
    %v440 = vld [vmem:[#allocation2 + $0x1e8] sm:$0xff]
    %v441 = vld [vmem:[#allocation2 + $0x1f0] sm:$0xff]
    %v442 = vld [vmem:[#allocation2 + $0x1f8] sm:$0xff]
    %v443 = vld [vmem:[#allocation2 + $0x200] sm:$0xff]
    %v444 = vld [vmem:[#allocation2 + $0x208] sm:$0xff]
    %v445 = vld [vmem:[#allocation2 + $0x210] sm:$0xff]
    %v446 = vld [vmem:[#allocation2 + $0x218] sm:$0xff]
    %v447 = vld [vmem:[#allocation2 + $0x220] sm:$0xff]
    %v448 = vld [vmem:[#allocation2 + $0x228] sm:$0xff]
    %v449 = vld [vmem:[#allocation2 + $0x230] sm:$0xff]
    %v450 = vld [vmem:[#allocation2 + $0x238] sm:$0xff]
    %v523 = vunpack.c.l.b16 %v379
    %v524 = vunpack.c.h.b16 %v379
    %v525 = vunpack.c.l.b16 %v380
    %v526 = vunpack.c.h.b16 %v380
    %v527 = vunpack.c.l.b16 %v381
    %v528 = vunpack.c.h.b16 %v381
    %v529 = vunpack.c.l.b16 %v382
    %v530 = vunpack.c.h.b16 %v382
    %v531 = vunpack.c.l.b16 %v383
    %v532 = vunpack.c.h.b16 %v383
    %v533 = vunpack.c.l.b16 %v384
    %v534 = vunpack.c.h.b16 %v384
    %v535 = vunpack.c.l.b16 %v385
    %v536 = vunpack.c.h.b16 %v385
    %v537 = vunpack.c.l.b16 %v386
    %v538 = vunpack.c.h.b16 %v386
    %v539 = vunpack.c.l.b16 %v387
    %v540 = vunpack.c.h.b16 %v387
    %v541 = vunpack.c.l.b16 %v388
    %v542 = vunpack.c.h.b16 %v388
    %v543 = vunpack.c.l.b16 %v389
    %v544 = vunpack.c.h.b16 %v389
    %v545 = vunpack.c.l.b16 %v390
    %v546 = vunpack.c.h.b16 %v390
    %v547 = vunpack.c.l.b16 %v391
    %v548 = vunpack.c.h.b16 %v391
    %v549 = vunpack.c.l.b16 %v392
    %v550 = vunpack.c.h.b16 %v392
    %v551 = vunpack.c.l.b16 %v393
    %v552 = vunpack.c.h.b16 %v393
    %v553 = vunpack.c.l.b16 %v394
    %v554 = vunpack.c.h.b16 %v394
    %v555 = vunpack.c.l.b16 %v395
    %v556 = vunpack.c.h.b16 %v395
    %v557 = vunpack.c.l.b16 %v396
    %v558 = vunpack.c.h.b16 %v396
    %v559 = vunpack.c.l.b16 %v397
    %v560 = vunpack.c.h.b16 %v397
    %v561 = vunpack.c.l.b16 %v398
    %v562 = vunpack.c.h.b16 %v398
    %v563 = vunpack.c.l.b16 %v399
    %v564 = vunpack.c.h.b16 %v399
    %v565 = vunpack.c.l.b16 %v400
    %v566 = vunpack.c.h.b16 %v400
    %v567 = vunpack.c.l.b16 %v401
    %v568 = vunpack.c.h.b16 %v401
    %v569 = vunpack.c.l.b16 %v402
    %v570 = vunpack.c.h.b16 %v402
    %v571 = vunpack.c.l.b16 %v403
    %v572 = vunpack.c.h.b16 %v403
    %v573 = vunpack.c.l.b16 %v404
    %v574 = vunpack.c.h.b16 %v404
    %v575 = vunpack.c.l.b16 %v405
    %v576 = vunpack.c.h.b16 %v405
    %v577 = vunpack.c.l.b16 %v406
    %v578 = vunpack.c.h.b16 %v406
    %v579 = vunpack.c.l.b16 %v407
    %v580 = vunpack.c.h.b16 %v407
    %v581 = vunpack.c.l.b16 %v408
    %v582 = vunpack.c.h.b16 %v408
    %v583 = vunpack.c.l.b16 %v409
    %v584 = vunpack.c.h.b16 %v409
    %v585 = vunpack.c.l.b16 %v410
    %v586 = vunpack.c.h.b16 %v410
    %v587 = vunpack.c.l.b16 %v411
    %v588 = vunpack.c.h.b16 %v411
    %v589 = vunpack.c.l.b16 %v412
    %v590 = vunpack.c.h.b16 %v412
    %v591 = vunpack.c.l.b16 %v413
    %v592 = vunpack.c.h.b16 %v413
    %v593 = vunpack.c.l.b16 %v414
    %v594 = vunpack.c.h.b16 %v414
    %v595 = vunpack.c.l.b16 %v415
    %v596 = vunpack.c.h.b16 %v415
    %v597 = vunpack.c.l.b16 %v416
    %v598 = vunpack.c.h.b16 %v416
    %v599 = vunpack.c.l.b16 %v417
    %v600 = vunpack.c.h.b16 %v417
    %v601 = vunpack.c.l.b16 %v418
    %v602 = vunpack.c.h.b16 %v418
    %v603 = vunpack.c.l.b16 %v419
    %v604 = vunpack.c.h.b16 %v419
    %v605 = vunpack.c.l.b16 %v420
    %v606 = vunpack.c.h.b16 %v420
    %v607 = vunpack.c.l.b16 %v421
    %v608 = vunpack.c.h.b16 %v421
    %v609 = vunpack.c.l.b16 %v422
    %v610 = vunpack.c.h.b16 %v422
    %v611 = vunpack.c.l.b16 %v423
    %v612 = vunpack.c.h.b16 %v423
    %v613 = vunpack.c.l.b16 %v424
    %v614 = vunpack.c.h.b16 %v424
    %v615 = vunpack.c.l.b16 %v425
    %v616 = vunpack.c.h.b16 %v425
    %v617 = vunpack.c.l.b16 %v426
    %v618 = vunpack.c.h.b16 %v426
    %v619 = vunpack.c.l.b16 %v427
    %v620 = vunpack.c.h.b16 %v427
    %v621 = vunpack.c.l.b16 %v428
    %v622 = vunpack.c.h.b16 %v428
    %v623 = vunpack.c.l.b16 %v429
    %v624 = vunpack.c.h.b16 %v429
    %v625 = vunpack.c.l.b16 %v430
    %v626 = vunpack.c.h.b16 %v430
    %v627 = vunpack.c.l.b16 %v431
    %v628 = vunpack.c.h.b16 %v431
    %v629 = vunpack.c.l.b16 %v432
    %v630 = vunpack.c.h.b16 %v432
    %v631 = vunpack.c.l.b16 %v433
    %v632 = vunpack.c.h.b16 %v433
    %v633 = vunpack.c.l.b16 %v434
    %v634 = vunpack.c.h.b16 %v434
    %v635 = vunpack.c.l.b16 %v435
    %v636 = vunpack.c.h.b16 %v435
    %v637 = vunpack.c.l.b16 %v436
    %v638 = vunpack.c.h.b16 %v436
    %v639 = vunpack.c.l.b16 %v437
    %v640 = vunpack.c.h.b16 %v437
    %v641 = vunpack.c.l.b16 %v438
    %v642 = vunpack.c.h.b16 %v438
    %v643 = vunpack.c.l.b16 %v439
    %v644 = vunpack.c.h.b16 %v439
    %v645 = vunpack.c.l.b16 %v440
    %v646 = vunpack.c.h.b16 %v440
    %v647 = vunpack.c.l.b16 %v441
    %v648 = vunpack.c.h.b16 %v441
    %v649 = vunpack.c.l.b16 %v442
    %v650 = vunpack.c.h.b16 %v442
    %v651 = vunpack.c.l.b16 %v443
    %v652 = vunpack.c.h.b16 %v443
    %v653 = vunpack.c.l.b16 %v444
    %v654 = vunpack.c.h.b16 %v444
    %v655 = vunpack.c.l.b16 %v445
    %v656 = vunpack.c.h.b16 %v445
    %v657 = vunpack.c.l.b16 %v446
    %v658 = vunpack.c.h.b16 %v446
    %v659 = vunpack.c.l.b16 %v447
    %v660 = vunpack.c.h.b16 %v447
    %v661 = vunpack.c.l.b16 %v448
    %v662 = vunpack.c.h.b16 %v448
    %v663 = vunpack.c.l.b16 %v449
    %v664 = vunpack.c.h.b16 %v449
    %v665 = vunpack.c.l.b16 %v450
    %v666 = vunpack.c.h.b16 %v450
    %v667 = vpack.c.b16 %v529, %v523
    %v668 = vpack.c.b16 %v530, %v524
    %v669 = vpack.c.b16 %v531, %v525
    %v670 = vpack.c.b16 %v532, %v526
    %v671 = vpack.c.b16 %v533, %v527
    %v672 = vpack.c.b16 %v534, %v528
    %v673 = vpack.c.b16 %v541, %v535
    %v674 = vpack.c.b16 %v542, %v536
    %v675 = vpack.c.b16 %v543, %v537
    %v676 = vpack.c.b16 %v544, %v538
    %v677 = vpack.c.b16 %v545, %v539
    %v678 = vpack.c.b16 %v546, %v540
    %v679 = vpack.c.b16 %v553, %v547
    %v680 = vpack.c.b16 %v554, %v548
    %v681 = vpack.c.b16 %v555, %v549
    %v682 = vpack.c.b16 %v556, %v550
    %v683 = vpack.c.b16 %v557, %v551
    %v684 = vpack.c.b16 %v558, %v552
    %v685 = vpack.c.b16 %v565, %v559
    %v686 = vpack.c.b16 %v566, %v560
    %v687 = vpack.c.b16 %v567, %v561
    %v688 = vpack.c.b16 %v568, %v562
    %v689 = vpack.c.b16 %v569, %v563
    %v690 = vpack.c.b16 %v570, %v564
    %v691 = vpack.c.b16 %v577, %v571
    %v692 = vpack.c.b16 %v578, %v572
    %v693 = vpack.c.b16 %v579, %v573
    %v694 = vpack.c.b16 %v580, %v574
    %v695 = vpack.c.b16 %v581, %v575
    %v696 = vpack.c.b16 %v582, %v576
    %v697 = vpack.c.b16 %v589, %v583
    %v698 = vpack.c.b16 %v590, %v584
    %v699 = vpack.c.b16 %v591, %v585
    %v700 = vpack.c.b16 %v592, %v586
    %v701 = vpack.c.b16 %v593, %v587
    %v702 = vpack.c.b16 %v594, %v588
    %v703 = vpack.c.b16 %v601, %v595
    %v704 = vpack.c.b16 %v602, %v596
    %v705 = vpack.c.b16 %v603, %v597
    %v706 = vpack.c.b16 %v604, %v598
    %v707 = vpack.c.b16 %v605, %v599
    %v708 = vpack.c.b16 %v606, %v600
    %v709 = vpack.c.b16 %v613, %v607
    %v710 = vpack.c.b16 %v614, %v608
    %v711 = vpack.c.b16 %v615, %v609
    %v712 = vpack.c.b16 %v616, %v610
    %v713 = vpack.c.b16 %v617, %v611
    %v714 = vpack.c.b16 %v618, %v612
    %v715 = vpack.c.b16 %v625, %v619
    %v716 = vpack.c.b16 %v626, %v620
    %v717 = vpack.c.b16 %v627, %v621
    %v718 = vpack.c.b16 %v628, %v622
    %v719 = vpack.c.b16 %v629, %v623
    %v720 = vpack.c.b16 %v630, %v624
    %v721 = vpack.c.b16 %v637, %v631
    %v722 = vpack.c.b16 %v638, %v632
    %v723 = vpack.c.b16 %v639, %v633
    %v724 = vpack.c.b16 %v640, %v634
    %v725 = vpack.c.b16 %v641, %v635
    %v726 = vpack.c.b16 %v642, %v636
    %v727 = vpack.c.b16 %v649, %v643
    %v728 = vpack.c.b16 %v650, %v644
    %v729 = vpack.c.b16 %v651, %v645
    %v730 = vpack.c.b16 %v652, %v646
    %v731 = vpack.c.b16 %v653, %v647
    %v732 = vpack.c.b16 %v654, %v648
    %v733 = vpack.c.b16 %v661, %v655
    %v734 = vpack.c.b16 %v662, %v656
    %v735 = vpack.c.b16 %v663, %v657
    %v736 = vpack.c.b16 %v664, %v658
    %v737 = vpack.c.b16 %v665, %v659
    %v738 = vpack.c.b16 %v666, %v660
    %v812 = vsel %vm250, %v378, 0
    %814 = vmatprep.subr.bf16.mxu0 %v668
    %815 = vmatpush1.bf16.msra.mxu0 %v667
    %816 = vmatprep.subr.bf16.mxu0 %v674
    %817 = vmatpush1.bf16.msra.mxu0 %v673
    %818 = vmatprep.subr.bf16.mxu0 %v680
    %819 = vmatpush1.bf16.msra.mxu0 %v679
    %820 = vmatprep.subr.bf16.mxu0 %v686
    %821 = vmatpush1.bf16.msra.mxu0 %v685
    %822 = vmatprep.subr.bf16.mxu0 %v692
    %823 = vmatpush1.bf16.msra.mxu0 %v691
    %824 = vmatprep.subr.bf16.mxu0 %v698
    %825 = vmatpush1.bf16.msra.mxu0 %v697
    %826 = vmatprep.subr.bf16.mxu0 %v704
    %827 = vmatpush1.bf16.msra.mxu0 %v703
    %828 = vmatprep.subr.bf16.mxu0 %v710
    %829 = vmatpush1.bf16.msra.mxu0 %v709
    %830 = vmatprep.subr.bf16.mxu0 %v716
    %831 = vmatpush1.bf16.msra.mxu0 %v715
    %832 = vmatprep.subr.bf16.mxu0 %v722
    %833 = vmatpush1.bf16.msra.mxu0 %v721
    %834 = vmatprep.subr.bf16.mxu0 %v728
    %835 = vmatpush1.bf16.msra.mxu0 %v727
    %836 = vmatprep.subr.bf16.mxu0 %v734
    %837 = vmatpush1.bf16.msra.mxu0 %v733
    %838 = vmatprep.subr.bf16.mxu0 0
    %839 = vmatpush1.bf16.msra.mxu0 0
    %840 = vmatprep.subr.bf16.mxu0 0
    %841 = vmatpush1.bf16.msra.mxu0 0
    %842 = vmatprep.subr.bf16.mxu0 0
    %843 = vmatpush1.bf16.msra.mxu0 0
    %844 = vmatprep.subr.bf16.mxu0 0
    %845 = vmatpush1.bf16.msra.mxu0 0
    %846 = vmatprep.mubr.bf16.mxu0 %v812
    %847 = vmatmul.mubr.bf16.gmra.mrb[0].mxu0 %v377
    %v848 = vpop.f32.mrb[0].mxu0
    %v849 = vadd.f32 0.0, %v848
    %v850 = vpop.f32.mrb[0].mxu0
    %v851 = vadd.f32 0.0, %v850
    %v852 = vpop.f32.mrb[0].mxu0
    %v853 = vpop.f32.mrb[0].mxu0
    %854 = vdwg.mxu0
    %855 = vmatprep.subr.bf16.mxu0 %v670
    %856 = vmatpush1.bf16.msra.mxu0 %v669
    %857 = vmatprep.subr.bf16.mxu0 %v676
    %858 = vmatpush1.bf16.msra.mxu0 %v675
    %859 = vmatprep.subr.bf16.mxu0 %v682
    %860 = vmatpush1.bf16.msra.mxu0 %v681
    %861 = vmatprep.subr.bf16.mxu0 %v688
    %862 = vmatpush1.bf16.msra.mxu0 %v687
    %863 = vmatprep.subr.bf16.mxu0 %v694
    %864 = vmatpush1.bf16.msra.mxu0 %v693
    %865 = vmatprep.subr.bf16.mxu0 %v700
    %866 = vmatpush1.bf16.msra.mxu0 %v699
    %867 = vmatprep.subr.bf16.mxu0 %v706
    %868 = vmatpush1.bf16.msra.mxu0 %v705
    %869 = vmatprep.subr.bf16.mxu0 %v712
    %870 = vmatpush1.bf16.msra.mxu0 %v711
    %871 = vmatprep.subr.bf16.mxu0 %v718
    %872 = vmatpush1.bf16.msra.mxu0 %v717
    %873 = vmatprep.subr.bf16.mxu0 %v724
    %874 = vmatpush1.bf16.msra.mxu0 %v723
    %875 = vmatprep.subr.bf16.mxu0 %v730
    %876 = vmatpush1.bf16.msra.mxu0 %v729
    %877 = vmatprep.subr.bf16.mxu0 %v736
    %878 = vmatpush1.bf16.msra.mxu0 %v735
    %879 = vmatprep.subr.bf16.mxu0 0
    %880 = vmatpush1.bf16.msra.mxu0 0
    %881 = vmatprep.subr.bf16.mxu0 0
    %882 = vmatpush1.bf16.msra.mxu0 0
    %883 = vmatprep.subr.bf16.mxu0 0
    %884 = vmatpush1.bf16.msra.mxu0 0
    %885 = vmatprep.subr.bf16.mxu0 0
    %886 = vmatpush1.bf16.msra.mxu0 0
    %887 = vmatprep.mubr.bf16.mxu0 %v812
    %888 = vmatmul.mubr.bf16.gmra.mrb[0].mxu0 %v377
    %v889 = vpop.f32.mrb[0].mxu0
    %v890 = vadd.f32 0.0, %v889
    %v891 = vpop.f32.mrb[0].mxu0
    %v892 = vadd.f32 0.0, %v891
    %v893 = vpop.f32.mrb[0].mxu0
    %v894 = vpop.f32.mrb[0].mxu0
    %895 = vdwg.mxu0
    %896 = vmatprep.subr.bf16.mxu0 %v672
    %897 = vmatpush1.bf16.msra.mxu0 %v671
    %898 = vmatprep.subr.bf16.mxu0 %v678
    %899 = vmatpush1.bf16.msra.mxu0 %v677
    %900 = vmatprep.subr.bf16.mxu0 %v684
    %901 = vmatpush1.bf16.msra.mxu0 %v683
    %902 = vmatprep.subr.bf16.mxu0 %v690
    %903 = vmatpush1.bf16.msra.mxu0 %v689
    %904 = vmatprep.subr.bf16.mxu0 %v696
    %905 = vmatpush1.bf16.msra.mxu0 %v695
    %906 = vmatprep.subr.bf16.mxu0 %v702
    %907 = vmatpush1.bf16.msra.mxu0 %v701
    %908 = vmatprep.subr.bf16.mxu0 %v708
    %909 = vmatpush1.bf16.msra.mxu0 %v707
    %910 = vmatprep.subr.bf16.mxu0 %v714
    %911 = vmatpush1.bf16.msra.mxu0 %v713
    %912 = vmatprep.subr.bf16.mxu0 %v720
    %913 = vmatpush1.bf16.msra.mxu0 %v719
    %914 = vmatprep.subr.bf16.mxu0 %v726
    %915 = vmatpush1.bf16.msra.mxu0 %v725
    %916 = vmatprep.subr.bf16.mxu0 %v732
    %917 = vmatpush1.bf16.msra.mxu0 %v731
    %918 = vmatprep.subr.bf16.mxu0 %v738
    %919 = vmatpush1.bf16.msra.mxu0 %v737
    %920 = vmatprep.subr.bf16.mxu0 0
    %921 = vmatpush1.bf16.msra.mxu0 0
    %922 = vmatprep.subr.bf16.mxu0 0
    %923 = vmatpush1.bf16.msra.mxu0 0
    %924 = vmatprep.subr.bf16.mxu0 0
    %925 = vmatpush1.bf16.msra.mxu0 0
    %926 = vmatprep.subr.bf16.mxu0 0
    %927 = vmatpush1.bf16.msra.mxu0 0
    %928 = vmatprep.mubr.bf16.mxu0 %v812
    %929 = vmatmul.mubr.bf16.gmra.mrb[0].mxu0 %v377
    %v930 = vpop.f32.mrb[0].mxu0
    %v931 = vadd.f32 0.0, %v930
    %v932 = vpop.f32.mrb[0].mxu0
    %v933 = vadd.f32 0.0, %v932
    %v934 = vpop.f32.mrb[0].mxu0
    %v935 = vpop.f32.mrb[0].mxu0
    %936 = vdwg.mxu0
    %v939 = vrot.slane %v892, 6
    %v940 = vrot.slane %v931, 6
    %v943 = vadd.f32 %v849, %v939
    %v944 = vadd.f32 %v851, %v940
    %v946 = vrot.slane %v933, 6
    %v948 = vadd.f32 %v890, %v946
    %951 = vrot.lane.b32.xlu0 %v943, 64
    %v952 = vpop.permute.xlu0 %951
    %953 = vrot.lane.b32.xlu0 %v944, 64
    %v954 = vpop.permute.xlu0 %953
    %v955 = vsel %vm250, %v952, %v954
    %v959 = vrot.slane %v944, 6
    %v960 = vrot.slane %v948, 6
    %v963 = vrot.slane %v943, 6
    %964 = vrot.lane.b32.xlu0 %v963, 64
    %v965 = vpop.permute.xlu0 %964
    %966 = vrot.lane.b32.xlu0 %v959, 64
    %v967 = vpop.permute.xlu0 %966
    %v968 = vsel %vm250, %v965, %v967
    %v971 = vrot.slane %v944, 4
    %v972 = vrot.slane %v948, 4
    %v975 = vrot.slane %v892, 2
    %v976 = vrot.slane %v931, 2
    %977 = vrot.lane.b32.xlu0 %v975, 64
    %v978 = vpop.permute.xlu0 %977
    %979 = vrot.lane.b32.xlu0 %v976, 64
    %v980 = vpop.permute.xlu0 %979
    %v981 = vsel %vm250, %v978, %v980
    %v984 = vsel %vm260, %v851, %v952
    %v985 = vsel %vm260, %v890, %v955
    %v986 = vsel %vm104, %v984, %v959
    %v987 = vsel %vm104, %v985, %v960
    %v988 = vsel %vm266, %v986, %v965
    %v989 = vsel %vm266, %v987, %v968
    %v990 = vsel %vm260, %v971, %v978
    %v991 = vsel %vm260, %v972, %v981
    %v992 = vld [vmem:[%s6 + $0x1] sm:$0x1]
    %vm993 = vcmask 1048064
    %v994 = vsel %vm993, %v988, 0.0
    %vm995 = vcmask 1043968
    %v996 = vsel %vm995, %v990, 0.0
    %v997 = vadd.f32 %v994, %v996
    %v998 = vrot.slane %v997, 4
    %v999 = vadd.f32 %v997, %v998
    %v1000 = vrot.slane %v999, 2
    %v1001 = vadd.f32 %v999, %v1000
    %v1002 = vrot.slane %v1001, 1
    %v1003 = vadd.f32 %v1001, %v1002
    %v1004 = vsel %vm104, %v991, 0.0
    %v1005 = vadd.f32 %v989, %v1004
    %v1006 = vrot.slane %v1005, 4
    %v1007 = vadd.f32 %v1005, %v1006
    %v1008 = vrot.slane %v1007, 2
    %v1009 = vadd.f32 %v1007, %v1008
    %v1010 = vrot.slane %v1009, 1
    %v1011 = vadd.f32 %v1009, %v1010
    %v1012 = vmul.f32 %v988, %v988
    %v1013 = vmul.f32 %v989, %v989
    %v1014 = vmul.f32 %v990, %v990
    %v1015 = vmul.f32 %v991, %v991
    %v1016 = vsel %vm993, %v1012, 0.0
    %v1017 = vsel %vm995, %v1014, 0.0
    %v1018 = vadd.f32 %v1016, %v1017
    %v1019 = vrot.slane %v1018, 4
    %v1020 = vadd.f32 %v1018, %v1019
    %v1021 = vrot.slane %v1020, 2
    %v1022 = vadd.f32 %v1020, %v1021
    %v1023 = vrot.slane %v1022, 1
    %v1024 = vadd.f32 %v1022, %v1023
    %v1025 = vsel %vm104, %v1015, 0.0
    %v1026 = vadd.f32 %v1013, %v1025
    %v1027 = vrot.slane %v1026, 4
    %v1028 = vadd.f32 %v1026, %v1027
    %v1029 = vrot.slane %v1028, 2
    %v1030 = vadd.f32 %v1028, %v1029
    %v1031 = vrot.slane %v1030, 1
    %v1032 = vadd.f32 %v1030, %v1031
    %v1033 = vadd.f32 %v1003, 0.0
    %1035 = vrot.lane.b32.xlu0 %v1003, 96
    %v1036 = vpop.permute.xlu0 %1035
    %v1038 = vadd.f32 %v1033, %v1036
    %1040 = vrot.lane.b32.xlu0 %v1011, 64
    %v1041 = vpop.permute.xlu0 %1040
    %v1043 = vadd.f32 %v1038, %v1041
    %1044 = vrot.lane.b32.xlu0 %v1011, 32
    %v1045 = vpop.permute.xlu0 %1044
    %v1047 = vadd.f32 %v1043, %v1045
    %v1048 = vadd.f32 %v1047, %v1011
    %1049 = vrot.lane.b32.xlu0 %v1011, 96
    %v1050 = vpop.permute.xlu0 %1049
    %v1052 = vadd.f32 %v1048, %v1050
    %v1053 = vadd.f32 %v1024, 0.0
    %1055 = vrot.lane.b32.xlu0 %v1024, 96
    %v1056 = vpop.permute.xlu0 %1055
    %v1058 = vadd.f32 %v1053, %v1056
    %1060 = vrot.lane.b32.xlu0 %v1032, 64
    %v1061 = vpop.permute.xlu0 %1060
    %v1063 = vadd.f32 %v1058, %v1061
    %1064 = vrot.lane.b32.xlu0 %v1032, 32
    %v1065 = vpop.permute.xlu0 %1064
    %v1067 = vadd.f32 %v1063, %v1065
    %v1068 = vadd.f32 %v1067, %v1032
    %1069 = vrot.lane.b32.xlu0 %v1032, 96
    %v1070 = vpop.permute.xlu0 %1069
    %v1072 = vadd.f32 %v1068, %v1070
    %v1073 = vrcp.pop 72.0
    %v1074 = vmul.f32 %v1052, %v1073
    %v1075 = vmul.f32 %v1072, %v1073
    %v1076 = vmul.f32 %v1074, %v1074
    %v1077 = vsub.f32 %v1075, %v1076
    %v1078 = vadd.f32 %v1077, 1e-05
    %v1079 = vrsqrt.pop %v1078
    %v1082 = vunpack.c.l.s4 1966171168
    %v1083 = vunpack.c.0.s8 %v1082
    %v1084 = vlaneseq
    %v1085 = vshrl.u32 %v1084, 7
    %v1086 = vsub.s32 %v1083, %v1085
    %v1087 = vrot.slane %v1079, %v1086
    %v1089 = vunpack.c.l.s4 1966171168
    %v1090 = vunpack.c.0.s8 %v1089
    %v1091 = vlaneseq
    %v1092 = vshrl.u32 %v1091, 7
    %v1093 = vsub.s32 %v1090, %v1092
    %v1094 = vrot.slane %v1087, %v1093
    %1095 = vrot.lane.b32.xlu0 %v1094, 64
    %v1096 = vpop.permute.xlu0 %1095
    %v1098 = vmul.f32 %v992, %v1096
    %v1100 = vlaneseq
    %v1101 = vshrl.u32 %v1100, 7
    %v1102 = vsub.s32 0, %v1101
    %v1103 = vrot.slane %v1098, %v1102
    %1104 = vrot.lane.b32.xlu0 %v1103, 64
    %v1105 = vpop.permute.xlu0 %1104
    %v1107 = vmul.f32 %v1074, %v1105
    %v1110 = vunpack.c.l.s4 1966171168
    %v1111 = vunpack.c.0.s8 %v1110
    %v1112 = vlaneseq
    %v1113 = vshrl.u32 %v1112, 7
    %v1114 = vsub.s32 %v1111, %v1113
    %v1115 = vrot.slane %v1107, %v1114
    %v1117 = vunpack.c.l.s4 1966171168
    %v1118 = vunpack.c.0.s8 %v1117
    %v1119 = vlaneseq
    %v1120 = vshrl.u32 %v1119, 7
    %v1121 = vsub.s32 %v1118, %v1120
    %v1122 = vrot.slane %v1115, %v1121
    %1123 = vrot.lane.b32.xlu0 %v1122, 96
    %v1124 = vpop.permute.xlu0 %1123
    %v1126 = vsub.f32 %v992, %v1124
    %v1128 = vlaneseq
    %v1129 = vshrl.u32 %v1128, 7
    %v1130 = vsub.s32 0, %v1129
    %v1131 = vrot.slane %v1126, %v1130
    %1132 = vrot.lane.b32.xlu0 %v1131, 96
    %v1133 = vpop.permute.xlu0 %1132
    %v1135 = vsel %vm348, %v1098, %v1133
    %1137 = vrot.lane.b32.xlu0 %v1135, 32
    %v1138 = vpop.permute.xlu0 %1137
    %1140 = vrot.lane.b32.xlu0 %v1135, 64
    %v1141 = vpop.permute.xlu0 %1140
    %1143 = vrot.lane.b32.xlu0 %v1135, 96
    %v1144 = vpop.permute.xlu0 %1143
    %vm1146 = vcmask 261120
    %v1147 = vsel %vm1146, %v1135, %v1138
    %v1148 = vsel %vm250, %v1147, %v1141
    %vm1149 = vcmask 785408
    %v1150 = vsel %vm1149, %v1148, %v1144
    %v1151 = vlaneseq
    %v1152 = vshrl.u32 %v1151, 7
    %v1153 = vsub.s32 0, %v1152
    %v1154 = vrot.slane %v1150, %v1153
    %v1155 = vlaneseq
    %v1156 = vshrl.u32 %v1155, 7
    %v1157 = vsub.s32 0, %v1156
    %v1158 = vrot.slane %v1147, %v1157
    %1161 = vrot.lane.b32.xlu0 %v1154, 64
    %v1162 = vpop.permute.xlu0 %1161
    %1163 = vrot.lane.b32.xlu0 %v1158, 64
    %v1164 = vpop.permute.xlu0 %1163
    %v1165 = vsel %vm250, %v1162, %v1164
    %v1168 = vmul.f32 %v988, %v1162
    %v1169 = vmul.f32 %v989, %v1165
    %v1170 = vmul.f32 %v990, %v1162
    %v1171 = vmul.f32 %v991, %v1165
    %v1172 = vlaneseq
    %v1173 = vshrl.u32 %v1172, 7
    %v1174 = vsub.s32 1, %v1173
    %v1175 = vrot.slane %v1150, %v1174
    %v1176 = vlaneseq
    %v1177 = vshrl.u32 %v1176, 7
    %v1178 = vsub.s32 1, %v1177
    %v1179 = vrot.slane %v1147, %v1178
    %1182 = vrot.lane.b32.xlu0 %v1175, 64
    %v1183 = vpop.permute.xlu0 %1182
    %1184 = vrot.lane.b32.xlu0 %v1179, 64
    %v1185 = vpop.permute.xlu0 %1184
    %v1186 = vsel %vm250, %v1183, %v1185
    %v1189 = vadd.f32 %v1168, %v1183
    %v1190 = vadd.f32 %v1169, %v1186
    %v1191 = vadd.f32 %v1170, %v1183
    %v1192 = vadd.f32 %v1171, %v1186
    %v1193 = vmax.f32 %v1189, 0.0
    %v1194 = vmax.f32 %v1190, 0.0
    %v1195 = vmax.f32 %v1191, 0.0
    %v1196 = vmax.f32 %v1192, 0.0
    %v1197 = vpack.c.bf16 %v1195, %v1193
    %v1198 = vpack.c.bf16 %v1196, %v1194
    %v1199 = vld [vmem:[#allocation4] sm:$0xff]
    %v1200 = vld [vmem:[#allocation4 + $0x8] sm:$0xff]
    %v1201 = vld [vmem:[#allocation4 + $0x10] sm:$0xff]
    %v1202 = vld [vmem:[#allocation4 + $0x18] sm:$0xff]
    %v1203 = vld [vmem:[#allocation4 + $0x20] sm:$0xff]
    %v1204 = vld [vmem:[#allocation4 + $0x28] sm:$0xff]
    %v1205 = vld [vmem:[#allocation4 + $0x30] sm:$0xff]
    %v1206 = vld [vmem:[#allocation4 + $0x38] sm:$0xff]
    %v1207 = vld [vmem:[#allocation4 + $0x40] sm:$0xff]
    %v1208 = vld [vmem:[#allocation4 + $0x48] sm:$0xff]
    %v1209 = vld [vmem:[#allocation4 + $0x50] sm:$0xff]
    %v1210 = vld [vmem:[#allocation4 + $0x58] sm:$0xff]
    %v1211 = vld [vmem:[#allocation4 + $0x60] sm:$0xff]
    %v1212 = vld [vmem:[#allocation4 + $0x68] sm:$0xff]
    %v1213 = vld [vmem:[#allocation4 + $0x70] sm:$0xff]
    %v1214 = vld [vmem:[#allocation4 + $0x78] sm:$0xff]
    %v1215 = vld [vmem:[#allocation4 + $0x80] sm:$0xff]
    %v1216 = vld [vmem:[#allocation4 + $0x88] sm:$0xff]
    %v1217 = vld [vmem:[#allocation4 + $0x90] sm:$0xff]
    %v1218 = vld [vmem:[#allocation4 + $0x98] sm:$0xff]
    %v1219 = vld [vmem:[#allocation4 + $0xa0] sm:$0xff]
    %v1220 = vld [vmem:[#allocation4 + $0xa8] sm:$0xff]
    %v1221 = vld [vmem:[#allocation4 + $0xb0] sm:$0xff]
    %v1222 = vld [vmem:[#allocation4 + $0xb8] sm:$0xff]
    %v1223 = vld [vmem:[#allocation4 + $0xc0] sm:$0xff]
    %v1224 = vld [vmem:[#allocation4 + $0xc8] sm:$0xff]
    %v1225 = vld [vmem:[#allocation4 + $0xd0] sm:$0xff]
    %v1226 = vld [vmem:[#allocation4 + $0xd8] sm:$0xff]
    %v1227 = vld [vmem:[#allocation4 + $0xe0] sm:$0xff]
    %v1228 = vld [vmem:[#allocation4 + $0xe8] sm:$0xff]
    %v1229 = vld [vmem:[#allocation4 + $0xf0] sm:$0xff]
    %v1230 = vld [vmem:[#allocation4 + $0xf8] sm:$0xff]
    %v1231 = vld [vmem:[#allocation4 + $0x100] sm:$0xff]
    %v1232 = vld [vmem:[#allocation4 + $0x108] sm:$0xff]
    %v1233 = vld [vmem:[#allocation4 + $0x110] sm:$0xff]
    %v1234 = vld [vmem:[#allocation4 + $0x118] sm:$0xff]
    %v1235 = vld [vmem:[#allocation4 + $0x120] sm:$0xff]
    %v1236 = vld [vmem:[#allocation4 + $0x128] sm:$0xff]
    %v1237 = vld [vmem:[#allocation4 + $0x130] sm:$0xff]
    %v1238 = vld [vmem:[#allocation4 + $0x138] sm:$0xff]
    %v1239 = vld [vmem:[#allocation4 + $0x140] sm:$0xff]
    %v1240 = vld [vmem:[#allocation4 + $0x148] sm:$0xff]
    %v1241 = vld [vmem:[#allocation4 + $0x150] sm:$0xff]
    %v1242 = vld [vmem:[#allocation4 + $0x158] sm:$0xff]
    %v1243 = vld [vmem:[#allocation4 + $0x160] sm:$0xff]
    %v1244 = vld [vmem:[#allocation4 + $0x168] sm:$0xff]
    %v1245 = vld [vmem:[#allocation4 + $0x170] sm:$0xff]
    %v1246 = vld [vmem:[#allocation4 + $0x178] sm:$0xff]
    %v1247 = vld [vmem:[#allocation4 + $0x180] sm:$0xff]
    %v1248 = vld [vmem:[#allocation4 + $0x188] sm:$0xff]
    %v1249 = vld [vmem:[#allocation4 + $0x190] sm:$0xff]
    %v1250 = vld [vmem:[#allocation4 + $0x198] sm:$0xff]
    %v1251 = vld [vmem:[#allocation4 + $0x1a0] sm:$0xff]
    %v1252 = vld [vmem:[#allocation4 + $0x1a8] sm:$0xff]
    %v1253 = vld [vmem:[#allocation4 + $0x1b0] sm:$0xff]
    %v1254 = vld [vmem:[#allocation4 + $0x1b8] sm:$0xff]
    %v1255 = vld [vmem:[#allocation4 + $0x1c0] sm:$0xff]
    %v1256 = vld [vmem:[#allocation4 + $0x1c8] sm:$0xff]
    %v1257 = vld [vmem:[#allocation4 + $0x1d0] sm:$0xff]
    %v1258 = vld [vmem:[#allocation4 + $0x1d8] sm:$0xff]
    %v1259 = vld [vmem:[#allocation4 + $0x1e0] sm:$0xff]
    %v1260 = vld [vmem:[#allocation4 + $0x1e8] sm:$0xff]
    %v1261 = vld [vmem:[#allocation4 + $0x1f0] sm:$0xff]
    %v1262 = vld [vmem:[#allocation4 + $0x1f8] sm:$0xff]
    %v1263 = vld [vmem:[#allocation4 + $0x200] sm:$0xff]
    %v1264 = vld [vmem:[#allocation4 + $0x208] sm:$0xff]
    %v1265 = vld [vmem:[#allocation4 + $0x210] sm:$0xff]
    %v1266 = vld [vmem:[#allocation4 + $0x218] sm:$0xff]
    %v1267 = vld [vmem:[#allocation4 + $0x220] sm:$0xff]
    %v1268 = vld [vmem:[#allocation4 + $0x228] sm:$0xff]
    %v1269 = vld [vmem:[#allocation4 + $0x230] sm:$0xff]
    %v1270 = vld [vmem:[#allocation4 + $0x238] sm:$0xff]
    %1273 = vrot.lane.b32.xlu0 %v1197, 64
    %v1274 = vpop.permute.xlu0 %1273
    %1275 = vrot.lane.b32.xlu0 %v1198, 64
    %v1276 = vpop.permute.xlu0 %1275
    %vm1277 = vcmask 523264
    %v1278 = vsel %vm1277, %v1274, %v1276
    %v1352 = vunpack.c.l.b16 %v1199
    %v1353 = vunpack.c.h.b16 %v1199
    %v1354 = vunpack.c.l.b16 %v1200
    %v1355 = vunpack.c.h.b16 %v1200
    %v1356 = vunpack.c.l.b16 %v1201
    %v1357 = vunpack.c.h.b16 %v1201
    %v1358 = vunpack.c.l.b16 %v1202
    %v1359 = vunpack.c.h.b16 %v1202
    %v1360 = vunpack.c.l.b16 %v1203
    %v1361 = vunpack.c.h.b16 %v1203
    %v1362 = vunpack.c.l.b16 %v1204
    %v1363 = vunpack.c.h.b16 %v1204
    %v1364 = vunpack.c.l.b16 %v1205
    %v1365 = vunpack.c.h.b16 %v1205
    %v1366 = vunpack.c.l.b16 %v1206
    %v1367 = vunpack.c.h.b16 %v1206
    %v1368 = vunpack.c.l.b16 %v1207
    %v1369 = vunpack.c.h.b16 %v1207
    %v1370 = vunpack.c.l.b16 %v1208
    %v1371 = vunpack.c.h.b16 %v1208
    %v1372 = vunpack.c.l.b16 %v1209
    %v1373 = vunpack.c.h.b16 %v1209
    %v1374 = vunpack.c.l.b16 %v1210
    %v1375 = vunpack.c.h.b16 %v1210
    %v1376 = vunpack.c.l.b16 %v1211
    %v1377 = vunpack.c.h.b16 %v1211
    %v1378 = vunpack.c.l.b16 %v1212
    %v1379 = vunpack.c.h.b16 %v1212
    %v1380 = vunpack.c.l.b16 %v1213
    %v1381 = vunpack.c.h.b16 %v1213
    %v1382 = vunpack.c.l.b16 %v1214
    %v1383 = vunpack.c.h.b16 %v1214
    %v1384 = vunpack.c.l.b16 %v1215
    %v1385 = vunpack.c.h.b16 %v1215
    %v1386 = vunpack.c.l.b16 %v1216
    %v1387 = vunpack.c.h.b16 %v1216
    %v1388 = vunpack.c.l.b16 %v1217
    %v1389 = vunpack.c.h.b16 %v1217
    %v1390 = vunpack.c.l.b16 %v1218
    %v1391 = vunpack.c.h.b16 %v1218
    %v1392 = vunpack.c.l.b16 %v1219
    %v1393 = vunpack.c.h.b16 %v1219
    %v1394 = vunpack.c.l.b16 %v1220
    %v1395 = vunpack.c.h.b16 %v1220
    %v1396 = vunpack.c.l.b16 %v1221
    %v1397 = vunpack.c.h.b16 %v1221
    %v1398 = vunpack.c.l.b16 %v1222
    %v1399 = vunpack.c.h.b16 %v1222
    %v1400 = vunpack.c.l.b16 %v1223
    %v1401 = vunpack.c.h.b16 %v1223
    %v1402 = vunpack.c.l.b16 %v1224
    %v1403 = vunpack.c.h.b16 %v1224
    %v1404 = vunpack.c.l.b16 %v1225
    %v1405 = vunpack.c.h.b16 %v1225
    %v1406 = vunpack.c.l.b16 %v1226
    %v1407 = vunpack.c.h.b16 %v1226
    %v1408 = vunpack.c.l.b16 %v1227
    %v1409 = vunpack.c.h.b16 %v1227
    %v1410 = vunpack.c.l.b16 %v1228
    %v1411 = vunpack.c.h.b16 %v1228
    %v1412 = vunpack.c.l.b16 %v1229
    %v1413 = vunpack.c.h.b16 %v1229
    %v1414 = vunpack.c.l.b16 %v1230
    %v1415 = vunpack.c.h.b16 %v1230
    %v1416 = vunpack.c.l.b16 %v1231
    %v1417 = vunpack.c.h.b16 %v1231
    %v1418 = vunpack.c.l.b16 %v1232
    %v1419 = vunpack.c.h.b16 %v1232
    %v1420 = vunpack.c.l.b16 %v1233
    %v1421 = vunpack.c.h.b16 %v1233
    %v1422 = vunpack.c.l.b16 %v1234
    %v1423 = vunpack.c.h.b16 %v1234
    %v1424 = vunpack.c.l.b16 %v1235
    %v1425 = vunpack.c.h.b16 %v1235
    %v1426 = vunpack.c.l.b16 %v1236
    %v1427 = vunpack.c.h.b16 %v1236
    %v1428 = vunpack.c.l.b16 %v1237
    %v1429 = vunpack.c.h.b16 %v1237
    %v1430 = vunpack.c.l.b16 %v1238
    %v1431 = vunpack.c.h.b16 %v1238
    %v1432 = vunpack.c.l.b16 %v1239
    %v1433 = vunpack.c.h.b16 %v1239
    %v1434 = vunpack.c.l.b16 %v1240
    %v1435 = vunpack.c.h.b16 %v1240
    %v1436 = vunpack.c.l.b16 %v1241
    %v1437 = vunpack.c.h.b16 %v1241
    %v1438 = vunpack.c.l.b16 %v1242
    %v1439 = vunpack.c.h.b16 %v1242
    %v1440 = vunpack.c.l.b16 %v1243
    %v1441 = vunpack.c.h.b16 %v1243
    %v1442 = vunpack.c.l.b16 %v1244
    %v1443 = vunpack.c.h.b16 %v1244
    %v1444 = vunpack.c.l.b16 %v1245
    %v1445 = vunpack.c.h.b16 %v1245
    %v1446 = vunpack.c.l.b16 %v1246
    %v1447 = vunpack.c.h.b16 %v1246
    %v1448 = vunpack.c.l.b16 %v1247
    %v1449 = vunpack.c.h.b16 %v1247
    %v1450 = vunpack.c.l.b16 %v1248
    %v1451 = vunpack.c.h.b16 %v1248
    %v1452 = vunpack.c.l.b16 %v1249
    %v1453 = vunpack.c.h.b16 %v1249
    %v1454 = vunpack.c.l.b16 %v1250
    %v1455 = vunpack.c.h.b16 %v1250
    %v1456 = vunpack.c.l.b16 %v1251
    %v1457 = vunpack.c.h.b16 %v1251
    %v1458 = vunpack.c.l.b16 %v1252
    %v1459 = vunpack.c.h.b16 %v1252
    %v1460 = vunpack.c.l.b16 %v1253
    %v1461 = vunpack.c.h.b16 %v1253
    %v1462 = vunpack.c.l.b16 %v1254
    %v1463 = vunpack.c.h.b16 %v1254
    %v1464 = vunpack.c.l.b16 %v1255
    %v1465 = vunpack.c.h.b16 %v1255
    %v1466 = vunpack.c.l.b16 %v1256
    %v1467 = vunpack.c.h.b16 %v1256
    %v1468 = vunpack.c.l.b16 %v1257
    %v1469 = vunpack.c.h.b16 %v1257
    %v1470 = vunpack.c.l.b16 %v1258
    %v1471 = vunpack.c.h.b16 %v1258
    %v1472 = vunpack.c.l.b16 %v1259
    %v1473 = vunpack.c.h.b16 %v1259
    %v1474 = vunpack.c.l.b16 %v1260
    %v1475 = vunpack.c.h.b16 %v1260
    %v1476 = vunpack.c.l.b16 %v1261
    %v1477 = vunpack.c.h.b16 %v1261
    %v1478 = vunpack.c.l.b16 %v1262
    %v1479 = vunpack.c.h.b16 %v1262
    %v1480 = vunpack.c.l.b16 %v1263
    %v1481 = vunpack.c.h.b16 %v1263
    %v1482 = vunpack.c.l.b16 %v1264
    %v1483 = vunpack.c.h.b16 %v1264
    %v1484 = vunpack.c.l.b16 %v1265
    %v1485 = vunpack.c.h.b16 %v1265
    %v1486 = vunpack.c.l.b16 %v1266
    %v1487 = vunpack.c.h.b16 %v1266
    %v1488 = vunpack.c.l.b16 %v1267
    %v1489 = vunpack.c.h.b16 %v1267
    %v1490 = vunpack.c.l.b16 %v1268
    %v1491 = vunpack.c.h.b16 %v1268
    %v1492 = vunpack.c.l.b16 %v1269
    %v1493 = vunpack.c.h.b16 %v1269
    %v1494 = vunpack.c.l.b16 %v1270
    %v1495 = vunpack.c.h.b16 %v1270
    %v1496 = vpack.c.b16 %v1358, %v1352
    %v1497 = vpack.c.b16 %v1359, %v1353
    %v1498 = vpack.c.b16 %v1360, %v1354
    %v1499 = vpack.c.b16 %v1361, %v1355
    %v1500 = vpack.c.b16 %v1362, %v1356
    %v1501 = vpack.c.b16 %v1363, %v1357
    %v1502 = vpack.c.b16 %v1370, %v1364
    %v1503 = vpack.c.b16 %v1371, %v1365
    %v1504 = vpack.c.b16 %v1372, %v1366
    %v1505 = vpack.c.b16 %v1373, %v1367
    %v1506 = vpack.c.b16 %v1374, %v1368
    %v1507 = vpack.c.b16 %v1375, %v1369
    %v1508 = vpack.c.b16 %v1382, %v1376
    %v1509 = vpack.c.b16 %v1383, %v1377
    %v1510 = vpack.c.b16 %v1384, %v1378
    %v1511 = vpack.c.b16 %v1385, %v1379
    %v1512 = vpack.c.b16 %v1386, %v1380
    %v1513 = vpack.c.b16 %v1387, %v1381
    %v1514 = vpack.c.b16 %v1394, %v1388
    %v1515 = vpack.c.b16 %v1395, %v1389
    %v1516 = vpack.c.b16 %v1396, %v1390
    %v1517 = vpack.c.b16 %v1397, %v1391
    %v1518 = vpack.c.b16 %v1398, %v1392
    %v1519 = vpack.c.b16 %v1399, %v1393
    %v1520 = vpack.c.b16 %v1406, %v1400
    %v1521 = vpack.c.b16 %v1407, %v1401
    %v1522 = vpack.c.b16 %v1408, %v1402
    %v1523 = vpack.c.b16 %v1409, %v1403
    %v1524 = vpack.c.b16 %v1410, %v1404
    %v1525 = vpack.c.b16 %v1411, %v1405
    %v1526 = vpack.c.b16 %v1418, %v1412
    %v1527 = vpack.c.b16 %v1419, %v1413
    %v1528 = vpack.c.b16 %v1420, %v1414
    %v1529 = vpack.c.b16 %v1421, %v1415
    %v1530 = vpack.c.b16 %v1422, %v1416
    %v1531 = vpack.c.b16 %v1423, %v1417
    %v1532 = vpack.c.b16 %v1430, %v1424
    %v1533 = vpack.c.b16 %v1431, %v1425
    %v1534 = vpack.c.b16 %v1432, %v1426
    %v1535 = vpack.c.b16 %v1433, %v1427
    %v1536 = vpack.c.b16 %v1434, %v1428
    %v1537 = vpack.c.b16 %v1435, %v1429
    %v1538 = vpack.c.b16 %v1442, %v1436
    %v1539 = vpack.c.b16 %v1443, %v1437
    %v1540 = vpack.c.b16 %v1444, %v1438
    %v1541 = vpack.c.b16 %v1445, %v1439
    %v1542 = vpack.c.b16 %v1446, %v1440
    %v1543 = vpack.c.b16 %v1447, %v1441
    %v1544 = vpack.c.b16 %v1454, %v1448
    %v1545 = vpack.c.b16 %v1455, %v1449
    %v1546 = vpack.c.b16 %v1456, %v1450
    %v1547 = vpack.c.b16 %v1457, %v1451
    %v1548 = vpack.c.b16 %v1458, %v1452
    %v1549 = vpack.c.b16 %v1459, %v1453
    %v1550 = vpack.c.b16 %v1466, %v1460
    %v1551 = vpack.c.b16 %v1467, %v1461
    %v1552 = vpack.c.b16 %v1468, %v1462
    %v1553 = vpack.c.b16 %v1469, %v1463
    %v1554 = vpack.c.b16 %v1470, %v1464
    %v1555 = vpack.c.b16 %v1471, %v1465
    %v1556 = vpack.c.b16 %v1478, %v1472
    %v1557 = vpack.c.b16 %v1479, %v1473
    %v1558 = vpack.c.b16 %v1480, %v1474
    %v1559 = vpack.c.b16 %v1481, %v1475
    %v1560 = vpack.c.b16 %v1482, %v1476
    %v1561 = vpack.c.b16 %v1483, %v1477
    %v1562 = vpack.c.b16 %v1490, %v1484
    %v1563 = vpack.c.b16 %v1491, %v1485
    %v1564 = vpack.c.b16 %v1492, %v1486
    %v1565 = vpack.c.b16 %v1493, %v1487
    %v1566 = vpack.c.b16 %v1494, %v1488
    %v1567 = vpack.c.b16 %v1495, %v1489
    %v1641 = vsel %vm250, %v1276, 0
    %1643 = vmatprep.subr.bf16.mxu0 %v1497
    %1644 = vmatpush1.bf16.msra.mxu0 %v1496
    %1645 = vmatprep.subr.bf16.mxu0 %v1503
    %1646 = vmatpush1.bf16.msra.mxu0 %v1502
    %1647 = vmatprep.subr.bf16.mxu0 %v1509
    %1648 = vmatpush1.bf16.msra.mxu0 %v1508
    %1649 = vmatprep.subr.bf16.mxu0 %v1515
    %1650 = vmatpush1.bf16.msra.mxu0 %v1514
    %1651 = vmatprep.subr.bf16.mxu0 %v1521
    %1652 = vmatpush1.bf16.msra.mxu0 %v1520
    %1653 = vmatprep.subr.bf16.mxu0 %v1527
    %1654 = vmatpush1.bf16.msra.mxu0 %v1526
    %1655 = vmatprep.subr.bf16.mxu0 %v1533
    %1656 = vmatpush1.bf16.msra.mxu0 %v1532
    %1657 = vmatprep.subr.bf16.mxu0 %v1539
    %1658 = vmatpush1.bf16.msra.mxu0 %v1538
    %1659 = vmatprep.subr.bf16.mxu0 %v1545
    %1660 = vmatpush1.bf16.msra.mxu0 %v1544
    %1661 = vmatprep.subr.bf16.mxu0 %v1551
    %1662 = vmatpush1.bf16.msra.mxu0 %v1550
    %1663 = vmatprep.subr.bf16.mxu0 %v1557
    %1664 = vmatpush1.bf16.msra.mxu0 %v1556
    %1665 = vmatprep.subr.bf16.mxu0 %v1563
    %1666 = vmatpush1.bf16.msra.mxu0 %v1562
    %1667 = vmatprep.subr.bf16.mxu0 0
    %1668 = vmatpush1.bf16.msra.mxu0 0
    %1669 = vmatprep.subr.bf16.mxu0 0
    %1670 = vmatpush1.bf16.msra.mxu0 0
    %1671 = vmatprep.subr.bf16.mxu0 0
    %1672 = vmatpush1.bf16.msra.mxu0 0
    %1673 = vmatprep.subr.bf16.mxu0 0
    %1674 = vmatpush1.bf16.msra.mxu0 0
    %1675 = vmatprep.mubr.bf16.mxu0 %v1641
    %1676 = vmatmul.mubr.bf16.gmra.mrb[0].mxu0 %v1278
    %v1677 = vpop.f32.mrb[0].mxu0
    %v1678 = vadd.f32 0.0, %v1677
    %v1679 = vpop.f32.mrb[0].mxu0
    %v1680 = vadd.f32 0.0, %v1679
    %v1681 = vpop.f32.mrb[0].mxu0
    %v1682 = vadd.f32 0.0, %v1681
    %v1683 = vpop.f32.mrb[0].mxu0
    %v1684 = vadd.f32 0.0, %v1683
    %1685 = vdwg.mxu0
    %1686 = vmatprep.subr.bf16.mxu0 %v1499
    %1687 = vmatpush1.bf16.msra.mxu0 %v1498
    %1688 = vmatprep.subr.bf16.mxu0 %v1505
    %1689 = vmatpush1.bf16.msra.mxu0 %v1504
    %1690 = vmatprep.subr.bf16.mxu0 %v1511
    %1691 = vmatpush1.bf16.msra.mxu0 %v1510
    %1692 = vmatprep.subr.bf16.mxu0 %v1517
    %1693 = vmatpush1.bf16.msra.mxu0 %v1516
    %1694 = vmatprep.subr.bf16.mxu0 %v1523
    %1695 = vmatpush1.bf16.msra.mxu0 %v1522
    %1696 = vmatprep.subr.bf16.mxu0 %v1529
    %1697 = vmatpush1.bf16.msra.mxu0 %v1528
    %1698 = vmatprep.subr.bf16.mxu0 %v1535
    %1699 = vmatpush1.bf16.msra.mxu0 %v1534
    %1700 = vmatprep.subr.bf16.mxu0 %v1541
    %1701 = vmatpush1.bf16.msra.mxu0 %v1540
    %1702 = vmatprep.subr.bf16.mxu0 %v1547
    %1703 = vmatpush1.bf16.msra.mxu0 %v1546
    %1704 = vmatprep.subr.bf16.mxu0 %v1553
    %1705 = vmatpush1.bf16.msra.mxu0 %v1552
    %1706 = vmatprep.subr.bf16.mxu0 %v1559
    %1707 = vmatpush1.bf16.msra.mxu0 %v1558
    %1708 = vmatprep.subr.bf16.mxu0 %v1565
    %1709 = vmatpush1.bf16.msra.mxu0 %v1564
    %1710 = vmatprep.subr.bf16.mxu0 0
    %1711 = vmatpush1.bf16.msra.mxu0 0
    %1712 = vmatprep.subr.bf16.mxu0 0
    %1713 = vmatpush1.bf16.msra.mxu0 0
    %1714 = vmatprep.subr.bf16.mxu0 0
    %1715 = vmatpush1.bf16.msra.mxu0 0
    %1716 = vmatprep.subr.bf16.mxu0 0
    %1717 = vmatpush1.bf16.msra.mxu0 0
    %1718 = vmatprep.mubr.bf16.mxu0 %v1641
    %1719 = vmatmul.mubr.bf16.gmra.mrb[0].mxu0 %v1278
    %v1720 = vpop.f32.mrb[0].mxu0
    %v1721 = vadd.f32 0.0, %v1720
    %v1722 = vpop.f32.mrb[0].mxu0
    %v1723 = vadd.f32 0.0, %v1722
    %v1724 = vpop.f32.mrb[0].mxu0
    %v1725 = vadd.f32 0.0, %v1724
    %v1726 = vpop.f32.mrb[0].mxu0
    %v1727 = vadd.f32 0.0, %v1726
    %1728 = vdwg.mxu0
    %1729 = vmatprep.subr.bf16.mxu0 %v1501
    %1730 = vmatpush1.bf16.msra.mxu0 %v1500
    %1731 = vmatprep.subr.bf16.mxu0 %v1507
    %1732 = vmatpush1.bf16.msra.mxu0 %v1506
    %1733 = vmatprep.subr.bf16.mxu0 %v1513
    %1734 = vmatpush1.bf16.msra.mxu0 %v1512
    %1735 = vmatprep.subr.bf16.mxu0 %v1519
    %1736 = vmatpush1.bf16.msra.mxu0 %v1518
    %1737 = vmatprep.subr.bf16.mxu0 %v1525
    %1738 = vmatpush1.bf16.msra.mxu0 %v1524
    %1739 = vmatprep.subr.bf16.mxu0 %v1531
    %1740 = vmatpush1.bf16.msra.mxu0 %v1530
    %1741 = vmatprep.subr.bf16.mxu0 %v1537
    %1742 = vmatpush1.bf16.msra.mxu0 %v1536
    %1743 = vmatprep.subr.bf16.mxu0 %v1543
    %1744 = vmatpush1.bf16.msra.mxu0 %v1542
    %1745 = vmatprep.subr.bf16.mxu0 %v1549
    %1746 = vmatpush1.bf16.msra.mxu0 %v1548
    %1747 = vmatprep.subr.bf16.mxu0 %v1555
    %1748 = vmatpush1.bf16.msra.mxu0 %v1554
    %1749 = vmatprep.subr.bf16.mxu0 %v1561
    %1750 = vmatpush1.bf16.msra.mxu0 %v1560
    %1751 = vmatprep.subr.bf16.mxu0 %v1567
    %1752 = vmatpush1.bf16.msra.mxu0 %v1566
    %1753 = vmatprep.subr.bf16.mxu0 0
    %1754 = vmatpush1.bf16.msra.mxu0 0
    %1755 = vmatprep.subr.bf16.mxu0 0
    %1756 = vmatpush1.bf16.msra.mxu0 0
    %1757 = vmatprep.subr.bf16.mxu0 0
    %1758 = vmatpush1.bf16.msra.mxu0 0
    %1759 = vmatprep.subr.bf16.mxu0 0
    %1760 = vmatpush1.bf16.msra.mxu0 0
    %1761 = vmatprep.mubr.bf16.mxu0 %v1641
    %1762 = vmatmul.mubr.bf16.gmra.mrb[0].mxu0 %v1278
    %v1763 = vpop.f32.mrb[0].mxu0
    %v1764 = vadd.f32 0.0, %v1763
    %v1765 = vpop.f32.mrb[0].mxu0
    %v1766 = vadd.f32 0.0, %v1765
    %v1767 = vpop.f32.mrb[0].mxu0
    %v1768 = vadd.f32 0.0, %v1767
    %v1769 = vpop.f32.mrb[0].mxu0
    %v1770 = vadd.f32 0.0, %v1769
    %1771 = vdwg.mxu0
    %v1774 = vrot.slane %v1723, 6
    %v1775 = vrot.slane %v1764, 6
    %v1778 = vadd.f32 %v1678, %v1774
    %v1779 = vadd.f32 %v1680, %v1775
    %v1781 = vrot.slane %v1766, 6
    %v1783 = vadd.f32 %v1721, %v1781
    %v1784 = vadd.f32 %v1682, %v1774
    %v1785 = vadd.f32 %v1684, %v1775
    %v1786 = vadd.f32 %v1725, %v1781
    %v1789 = vrot.slane %v1727, 6
    %v1790 = vrot.slane %v1768, 6
    %v1793 = vadd.f32 %v1682, %v1789
    %v1794 = vadd.f32 %v1684, %v1790
    %v1796 = vrot.slane %v1770, 6
    %v1798 = vadd.f32 %v1725, %v1796
    %1801 = vrot.lane.b32.xlu0 %v1778, 64
    %v1802 = vpop.permute.xlu0 %1801
    %1803 = vrot.lane.b32.xlu0 %v1779, 64
    %v1804 = vpop.permute.xlu0 %1803
    %v1805 = vsel %vm250, %v1802, %v1804
    %v1809 = vrot.slane %v1779, 6
    %v1810 = vrot.slane %v1783, 6
    %v1813 = vrot.slane %v1778, 6
    %1814 = vrot.lane.b32.xlu0 %v1813, 64
    %v1815 = vpop.permute.xlu0 %1814
    %1816 = vrot.lane.b32.xlu0 %v1809, 64
    %v1817 = vpop.permute.xlu0 %1816
    %v1818 = vsel %vm250, %v1815, %v1817
    %v1821 = vrot.slane %v1779, 4
    %v1822 = vrot.slane %v1783, 4
    %v1825 = vrot.slane %v1778, 4
    %1826 = vrot.lane.b32.xlu0 %v1825, 64
    %v1827 = vpop.permute.xlu0 %1826
    %1828 = vrot.lane.b32.xlu0 %v1821, 64
    %v1829 = vpop.permute.xlu0 %1828
    %v1830 = vsel %vm250, %v1827, %v1829
    %v1833 = vrot.slane %v1779, 2
    %v1834 = vrot.slane %v1783, 2
    %v1839 = vrot.slane %v1784, 2
    %v1840 = vrot.slane %v1785, 2
    %1841 = vrot.lane.b32.xlu0 %v1839, 64
    %v1842 = vpop.permute.xlu0 %1841
    %1843 = vrot.lane.b32.xlu0 %v1840, 64
    %v1844 = vpop.permute.xlu0 %1843
    %v1845 = vsel %vm250, %v1842, %v1844
    %1850 = vrot.lane.b32.xlu0 %v1793, 64
    %v1851 = vpop.permute.xlu0 %1850
    %1852 = vrot.lane.b32.xlu0 %v1794, 64
    %v1853 = vpop.permute.xlu0 %1852
    %v1854 = vsel %vm250, %v1851, %v1853
    %v1858 = vrot.slane %v1794, 6
    %v1859 = vrot.slane %v1798, 6
    %v1862 = vrot.slane %v1727, 4
    %v1863 = vrot.slane %v1768, 4
    %1864 = vrot.lane.b32.xlu0 %v1862, 64
    %v1865 = vpop.permute.xlu0 %1864
    %1866 = vrot.lane.b32.xlu0 %v1863, 64
    %v1867 = vpop.permute.xlu0 %1866
    %v1868 = vsel %vm250, %v1865, %v1867
    %v1871 = vsel %vm260, %v1680, %v1802
    %v1872 = vsel %vm260, %v1721, %v1805
    %v1873 = vsel %vm104, %v1871, %v1809
    %v1874 = vsel %vm104, %v1872, %v1810
    %v1875 = vsel %vm266, %v1873, %v1815
    %v1876 = vsel %vm266, %v1874, %v1818
    %v1877 = vsel %vm260, %v1821, %v1827
    %v1878 = vsel %vm260, %v1822, %v1830
    %v1879 = vsel %vm104, %v1877, %v1833
    %v1880 = vsel %vm104, %v1878, %v1834
    %v1881 = vsel %vm266, %v1879, %v1842
    %v1882 = vsel %vm266, %v1880, %v1845
    %v1883 = vsel %vm260, %v1785, %v1851
    %v1884 = vsel %vm260, %v1786, %v1854
    %v1885 = vsel %vm104, %v1883, %v1858
    %v1886 = vsel %vm104, %v1884, %v1859
    %v1887 = vsel %vm266, %v1885, %v1865
    %v1888 = vsel %vm266, %v1886, %v1868
    %v1889 = vld [vmem:[%s6 + $0x1] sm:$0x1]
    %v1890 = vsel %vm993, %v1875, 0.0
    %v1891 = vsel %vm993, %v1881, 0.0
    %v1892 = vadd.f32 %v1890, %v1891
    %v1893 = vsel %vm993, %v1887, 0.0
    %v1894 = vadd.f32 %v1892, %v1893
    %v1895 = vrot.slane %v1894, 4
    %v1896 = vadd.f32 %v1894, %v1895
    %v1897 = vrot.slane %v1896, 2
    %v1898 = vadd.f32 %v1896, %v1897
    %v1899 = vrot.slane %v1898, 1
    %v1900 = vadd.f32 %v1898, %v1899
    %v1901 = vadd.f32 %v1876, %v1882
    %v1902 = vadd.f32 %v1901, %v1888
    %v1903 = vrot.slane %v1902, 4
    %v1904 = vadd.f32 %v1902, %v1903
    %v1905 = vrot.slane %v1904, 2
    %v1906 = vadd.f32 %v1904, %v1905
    %v1907 = vrot.slane %v1906, 1
    %v1908 = vadd.f32 %v1906, %v1907
    %v1909 = vmul.f32 %v1875, %v1875
    %v1910 = vmul.f32 %v1876, %v1876
    %v1911 = vmul.f32 %v1881, %v1881
    %v1912 = vmul.f32 %v1882, %v1882
    %v1913 = vmul.f32 %v1887, %v1887
    %v1914 = vmul.f32 %v1888, %v1888
    %v1915 = vsel %vm993, %v1909, 0.0
    %v1916 = vsel %vm993, %v1911, 0.0
    %v1917 = vadd.f32 %v1915, %v1916
    %v1918 = vsel %vm993, %v1913, 0.0
    %v1919 = vadd.f32 %v1917, %v1918
    %v1920 = vrot.slane %v1919, 4
    %v1921 = vadd.f32 %v1919, %v1920
    %v1922 = vrot.slane %v1921, 2
    %v1923 = vadd.f32 %v1921, %v1922
    %v1924 = vrot.slane %v1923, 1
    %v1925 = vadd.f32 %v1923, %v1924
    %v1926 = vadd.f32 %v1910, %v1912
    %v1927 = vadd.f32 %v1926, %v1914
    %v1928 = vrot.slane %v1927, 4
    %v1929 = vadd.f32 %v1927, %v1928
    %v1930 = vrot.slane %v1929, 2
    %v1931 = vadd.f32 %v1929, %v1930
    %v1932 = vrot.slane %v1931, 1
    %v1933 = vadd.f32 %v1931, %v1932
    %v1934 = vadd.f32 %v1900, 0.0
    %1936 = vrot.lane.b32.xlu0 %v1900, 112
    %v1937 = vpop.permute.xlu0 %1936
    %v1939 = vadd.f32 %v1934, %v1937
    %1940 = vrot.lane.b32.xlu0 %v1900, 96
    %v1941 = vpop.permute.xlu0 %1940
    %v1943 = vadd.f32 %v1939, %v1941
    %1944 = vrot.lane.b32.xlu0 %v1900, 80
    %v1945 = vpop.permute.xlu0 %1944
    %v1947 = vadd.f32 %v1943, %v1945
    %1949 = vrot.lane.b32.xlu0 %v1908, 64
    %v1950 = vpop.permute.xlu0 %1949
    %v1952 = vadd.f32 %v1947, %v1950
    %1953 = vrot.lane.b32.xlu0 %v1908, 48
    %v1954 = vpop.permute.xlu0 %1953
    %v1956 = vadd.f32 %v1952, %v1954
    %1957 = vrot.lane.b32.xlu0 %v1908, 32
    %v1958 = vpop.permute.xlu0 %1957
    %v1960 = vadd.f32 %v1956, %v1958
    %1961 = vrot.lane.b32.xlu0 %v1908, 16
    %v1962 = vpop.permute.xlu0 %1961
    %v1964 = vadd.f32 %v1960, %v1962
    %v1965 = vadd.f32 %v1964, %v1908
    %1966 = vrot.lane.b32.xlu0 %v1908, 112
    %v1967 = vpop.permute.xlu0 %1966
    %v1969 = vadd.f32 %v1965, %v1967
    %1970 = vrot.lane.b32.xlu0 %v1908, 96
    %v1971 = vpop.permute.xlu0 %1970
    %v1973 = vadd.f32 %v1969, %v1971
    %1974 = vrot.lane.b32.xlu0 %v1908, 80
    %v1975 = vpop.permute.xlu0 %1974
    %v1977 = vadd.f32 %v1973, %v1975
    %v1978 = vadd.f32 %v1925, 0.0
    %1980 = vrot.lane.b32.xlu0 %v1925, 112
    %v1981 = vpop.permute.xlu0 %1980
    %v1983 = vadd.f32 %v1978, %v1981
    %1984 = vrot.lane.b32.xlu0 %v1925, 96
    %v1985 = vpop.permute.xlu0 %1984
    %v1987 = vadd.f32 %v1983, %v1985
    %1988 = vrot.lane.b32.xlu0 %v1925, 80
    %v1989 = vpop.permute.xlu0 %1988
    %v1991 = vadd.f32 %v1987, %v1989
    %1993 = vrot.lane.b32.xlu0 %v1933, 64
    %v1994 = vpop.permute.xlu0 %1993
    %v1996 = vadd.f32 %v1991, %v1994
    %1997 = vrot.lane.b32.xlu0 %v1933, 48
    %v1998 = vpop.permute.xlu0 %1997
    %v2000 = vadd.f32 %v1996, %v1998
    %2001 = vrot.lane.b32.xlu0 %v1933, 32
    %v2002 = vpop.permute.xlu0 %2001
    %v2004 = vadd.f32 %v2000, %v2002
    %2005 = vrot.lane.b32.xlu0 %v1933, 16
    %v2006 = vpop.permute.xlu0 %2005
    %v2008 = vadd.f32 %v2004, %v2006
    %v2009 = vadd.f32 %v2008, %v1933
    %2010 = vrot.lane.b32.xlu0 %v1933, 112
    %v2011 = vpop.permute.xlu0 %2010
    %v2013 = vadd.f32 %v2009, %v2011
    %2014 = vrot.lane.b32.xlu0 %v1933, 96
    %v2015 = vpop.permute.xlu0 %2014
    %v2017 = vadd.f32 %v2013, %v2015
    %2018 = vrot.lane.b32.xlu0 %v1933, 80
    %v2019 = vpop.permute.xlu0 %2018
    %v2021 = vadd.f32 %v2017, %v2019
    %v2022 = vrcp.pop 288.0
    %v2023 = vmul.f32 %v1977, %v2022
    %v2024 = vmul.f32 %v2021, %v2022
    %v2025 = vmul.f32 %v2023, %v2023
    %v2026 = vsub.f32 %v2024, %v2025
    %v2027 = vadd.f32 %v2026, 1e-05
    %v2028 = vrsqrt.pop %v2027
    %v2029 = vmul.f32 %v1889, %v2028
    %v2030 = vmul.f32 %v2023, %v2029
    %v2033 = vunpack.c.l.s4 1966171168
    %v2034 = vunpack.c.0.s8 %v2033
    %v2035 = vlaneseq
    %v2036 = vshrl.u32 %v2035, 7
    %v2037 = vsub.s32 %v2034, %v2036
    %v2038 = vrot.slane %v2030, %v2037
    %v2040 = vunpack.c.l.s4 1966171168
    %v2041 = vunpack.c.0.s8 %v2040
    %v2042 = vlaneseq
    %v2043 = vshrl.u32 %v2042, 7
    %v2044 = vsub.s32 %v2041, %v2043
    %v2045 = vrot.slane %v2038, %v2044
    %2046 = vrot.lane.b32.xlu0 %v2045, 16
    %v2047 = vpop.permute.xlu0 %2046
    %v2049 = vsub.f32 %v1889, %v2047
    %v2051 = vlaneseq
    %v2052 = vshrl.u32 %v2051, 7
    %v2053 = vsub.s32 0, %v2052
    %v2054 = vrot.slane %v2049, %v2053
    %2055 = vrot.lane.b32.xlu0 %v2054, 112
    %v2056 = vpop.permute.xlu0 %2055
    %v2058 = vsel %vm348, %v2029, %v2056
    %2060 = vrot.lane.b32.xlu0 %v2058, 64
    %v2061 = vpop.permute.xlu0 %2060
    %2063 = vrot.lane.b32.xlu0 %v2058, 80
    %v2064 = vpop.permute.xlu0 %2063
    %2066 = vrot.lane.b32.xlu0 %v2058, 96
    %v2067 = vpop.permute.xlu0 %2066
    %2069 = vrot.lane.b32.xlu0 %v2058, 112
    %v2070 = vpop.permute.xlu0 %2069
    %2072 = vrot.lane.b32.xlu0 %v2058, 16
    %v2073 = vpop.permute.xlu0 %2072
    %2075 = vrot.lane.b32.xlu0 %v2058, 32
    %v2076 = vpop.permute.xlu0 %2075
    %2078 = vrot.lane.b32.xlu0 %v2058, 48
    %v2079 = vpop.permute.xlu0 %2078
    %vm2081 = vcmask 130048
    %v2082 = vsel %vm2081, %v2061, %v2064
    %v2083 = vsel %vm1146, %v2082, %v2067
    %vm2084 = vcmask 392192
    %v2085 = vsel %vm2084, %v2083, %v2070
    %v2086 = vsel %vm250, %v2085, %v2058
    %vm2087 = vcmask 654336
    %v2088 = vsel %vm2087, %v2086, %v2073
    %v2089 = vsel %vm1149, %v2088, %v2076
    %vm2090 = vcmask 916480
    %v2091 = vsel %vm2090, %v2089, %v2079
    %v2092 = vlaneseq
    %v2093 = vshrl.u32 %v2092, 7
    %v2094 = vsub.s32 0, %v2093
    %v2095 = vrot.slane %v2091, %v2094
    %v2096 = vlaneseq
    %v2097 = vshrl.u32 %v2096, 7
    %v2098 = vsub.s32 0, %v2097
    %v2099 = vrot.slane %v2085, %v2098
    %2102 = vrot.lane.b32.xlu0 %v2095, 64
    %v2103 = vpop.permute.xlu0 %2102
    %2104 = vrot.lane.b32.xlu0 %v2099, 64
    %v2105 = vpop.permute.xlu0 %2104
    %v2106 = vsel %vm250, %v2103, %v2105
    %v2109 = vmul.f32 %v1875, %v2103
    %v2110 = vmul.f32 %v1876, %v2106
    %v2111 = vmul.f32 %v1881, %v2103
    %v2112 = vmul.f32 %v1882, %v2106
    %v2113 = vmul.f32 %v1887, %v2103
    %v2114 = vmul.f32 %v1888, %v2106
    %v2115 = vlaneseq
    %v2116 = vshrl.u32 %v2115, 7
    %v2117 = vsub.s32 1, %v2116
    %v2118 = vrot.slane %v2091, %v2117
    %v2119 = vlaneseq
    %v2120 = vshrl.u32 %v2119, 7
    %v2121 = vsub.s32 1, %v2120
    %v2122 = vrot.slane %v2085, %v2121
    %2125 = vrot.lane.b32.xlu0 %v2118, 64
    %v2126 = vpop.permute.xlu0 %2125
    %2127 = vrot.lane.b32.xlu0 %v2122, 64
    %v2128 = vpop.permute.xlu0 %2127
    %v2129 = vsel %vm250, %v2126, %v2128
    %v2132 = vadd.f32 %v2109, %v2126
    %v2133 = vadd.f32 %v2110, %v2129
    %v2134 = vadd.f32 %v2111, %v2126
    %v2135 = vadd.f32 %v2112, %v2129
    %v2136 = vadd.f32 %v2113, %v2126
    %v2137 = vadd.f32 %v2114, %v2129
    %v2138 = vmax.f32 %v2132, 0.0
    %v2139 = vmax.f32 %v2133, 0.0
    %v2140 = vmax.f32 %v2134, 0.0
    %v2141 = vmax.f32 %v2135, 0.0
    %v2142 = vmax.f32 %v2136, 0.0
    %v2143 = vmax.f32 %v2137, 0.0
    %v2144 = vpack.c.bf16 %v2140, %v2138
    %v2145 = vpack.c.bf16 %v2141, %v2139
    %v2146 = vpack.c.bf16 %v2142, %v2142
    %v2147 = vpack.c.bf16 %v2143, %v2143
    %v2148 = vld [vmem:[#allocation6] sm:$0xff]
    %v2149 = vld [vmem:[#allocation6 + $0x8] sm:$0xff]
    %v2150 = vld [vmem:[#allocation6 + $0x10] sm:$0xff]
    %v2151 = vld [vmem:[#allocation6 + $0x18] sm:$0xff]
    %v2152 = vld [vmem:[#allocation6 + $0x20] sm:$0xff]
    %v2153 = vld [vmem:[#allocation6 + $0x28] sm:$0xff]
    %v2154 = vld [vmem:[#allocation6 + $0x30] sm:$0xff]
    %v2155 = vld [vmem:[#allocation6 + $0x38] sm:$0xff]
    %v2156 = vld [vmem:[#allocation6 + $0x40] sm:$0xff]
    %v2157 = vld [vmem:[#allocation6 + $0x48] sm:$0xff]
    %v2158 = vld [vmem:[#allocation6 + $0x50] sm:$0xff]
    %v2159 = vld [vmem:[#allocation6 + $0x58] sm:$0xff]
    %v2160 = vld [vmem:[#allocation6 + $0x60] sm:$0xff]
    %v2161 = vld [vmem:[#allocation6 + $0x68] sm:$0xff]
    %v2162 = vld [vmem:[#allocation6 + $0x70] sm:$0xff]
    %v2163 = vld [vmem:[#allocation6 + $0x78] sm:$0xff]
    %v2164 = vld [vmem:[#allocation6 + $0x80] sm:$0xff]
    %v2165 = vld [vmem:[#allocation6 + $0x88] sm:$0xff]
    %v2166 = vld [vmem:[#allocation6 + $0x90] sm:$0xff]
    %v2167 = vld [vmem:[#allocation6 + $0x98] sm:$0xff]
    %v2168 = vld [vmem:[#allocation6 + $0xa0] sm:$0xff]
    %v2169 = vld [vmem:[#allocation6 + $0xa8] sm:$0xff]
    %v2170 = vld [vmem:[#allocation6 + $0xb0] sm:$0xff]
    %v2171 = vld [vmem:[#allocation6 + $0xb8] sm:$0xff]
    %v2172 = vld [vmem:[#allocation6 + $0xc0] sm:$0xff]
    %v2173 = vld [vmem:[#allocation6 + $0xc8] sm:$0xff]
    %v2174 = vld [vmem:[#allocation6 + $0xd0] sm:$0xff]
    %v2175 = vld [vmem:[#allocation6 + $0xd8] sm:$0xff]
    %v2176 = vld [vmem:[#allocation6 + $0xe0] sm:$0xff]
    %v2177 = vld [vmem:[#allocation6 + $0xe8] sm:$0xff]
    %v2178 = vld [vmem:[#allocation6 + $0xf0] sm:$0xff]
    %v2179 = vld [vmem:[#allocation6 + $0xf8] sm:$0xff]
    %v2180 = vld [vmem:[#allocation6 + $0x100] sm:$0xff]
    %v2181 = vld [vmem:[#allocation6 + $0x108] sm:$0xff]
    %v2182 = vld [vmem:[#allocation6 + $0x110] sm:$0xff]
    %v2183 = vld [vmem:[#allocation6 + $0x118] sm:$0xff]
    %v2184 = vld [vmem:[#allocation6 + $0x120] sm:$0xff]
    %v2185 = vld [vmem:[#allocation6 + $0x128] sm:$0xff]
    %v2186 = vld [vmem:[#allocation6 + $0x130] sm:$0xff]
    %v2187 = vld [vmem:[#allocation6 + $0x138] sm:$0xff]
    %v2188 = vld [vmem:[#allocation6 + $0x140] sm:$0xff]
    %v2189 = vld [vmem:[#allocation6 + $0x148] sm:$0xff]
    %v2190 = vld [vmem:[#allocation6 + $0x150] sm:$0xff]
    %v2191 = vld [vmem:[#allocation6 + $0x158] sm:$0xff]
    %v2192 = vld [vmem:[#allocation6 + $0x160] sm:$0xff]
    %v2193 = vld [vmem:[#allocation6 + $0x168] sm:$0xff]
    %v2194 = vld [vmem:[#allocation6 + $0x170] sm:$0xff]
    %v2195 = vld [vmem:[#allocation6 + $0x178] sm:$0xff]
    %v2196 = vld [vmem:[#allocation6 + $0x180] sm:$0xff]
    %v2197 = vld [vmem:[#allocation6 + $0x188] sm:$0xff]
    %v2198 = vld [vmem:[#allocation6 + $0x190] sm:$0xff]
    %v2199 = vld [vmem:[#allocation6 + $0x198] sm:$0xff]
    %v2200 = vld [vmem:[#allocation6 + $0x1a0] sm:$0xff]
    %v2201 = vld [vmem:[#allocation6 + $0x1a8] sm:$0xff]
    %v2202 = vld [vmem:[#allocation6 + $0x1b0] sm:$0xff]
    %v2203 = vld [vmem:[#allocation6 + $0x1b8] sm:$0xff]
    %v2204 = vld [vmem:[#allocation6 + $0x1c0] sm:$0xff]
    %v2205 = vld [vmem:[#allocation6 + $0x1c8] sm:$0xff]
    %v2206 = vld [vmem:[#allocation6 + $0x1d0] sm:$0xff]
    %v2207 = vld [vmem:[#allocation6 + $0x1d8] sm:$0xff]
    %v2208 = vld [vmem:[#allocation6 + $0x1e0] sm:$0xff]
    %v2209 = vld [vmem:[#allocation6 + $0x1e8] sm:$0xff]
    %v2210 = vld [vmem:[#allocation6 + $0x1f0] sm:$0xff]
    %v2211 = vld [vmem:[#allocation6 + $0x1f8] sm:$0xff]
    %v2212 = vld [vmem:[#allocation6 + $0x200] sm:$0xff]
    %v2213 = vld [vmem:[#allocation6 + $0x208] sm:$0xff]
    %v2214 = vld [vmem:[#allocation6 + $0x210] sm:$0xff]
    %v2215 = vld [vmem:[#allocation6 + $0x218] sm:$0xff]
    %v2216 = vld [vmem:[#allocation6 + $0x220] sm:$0xff]
    %v2217 = vld [vmem:[#allocation6 + $0x228] sm:$0xff]
    %v2218 = vld [vmem:[#allocation6 + $0x230] sm:$0xff]
    %v2219 = vld [vmem:[#allocation6 + $0x238] sm:$0xff]
    %2224 = vrot.lane.b32.xlu0 %v2144, 64
    %v2225 = vpop.permute.xlu0 %2224
    %2226 = vrot.lane.b32.xlu0 %v2145, 64
    %v2227 = vpop.permute.xlu0 %2226
    %2228 = vrot.lane.b32.xlu0 %v2146, 64
    %v2229 = vpop.permute.xlu0 %2228
    %2230 = vrot.lane.b32.xlu0 %v2147, 64
    %v2231 = vpop.permute.xlu0 %2230
    %v2232 = vsel %vm1277, %v2225, %v2227
    %v2233 = vsel %vm1277, %v2229, %v2231
    %v2308 = vunpack.c.l.b16 %v2148
    %v2309 = vunpack.c.h.b16 %v2148
    %v2310 = vunpack.c.l.b16 %v2149
    %v2311 = vunpack.c.h.b16 %v2149
    %v2312 = vunpack.c.l.b16 %v2150
    %v2313 = vunpack.c.h.b16 %v2150
    %v2314 = vunpack.c.l.b16 %v2151
    %v2315 = vunpack.c.h.b16 %v2151
    %v2316 = vunpack.c.l.b16 %v2152
    %v2317 = vunpack.c.h.b16 %v2152
    %v2318 = vunpack.c.l.b16 %v2153
    %v2319 = vunpack.c.h.b16 %v2153
    %v2320 = vunpack.c.l.b16 %v2154
    %v2321 = vunpack.c.h.b16 %v2154
    %v2322 = vunpack.c.l.b16 %v2155
    %v2323 = vunpack.c.h.b16 %v2155
    %v2324 = vunpack.c.l.b16 %v2156
    %v2325 = vunpack.c.h.b16 %v2156
    %v2326 = vunpack.c.l.b16 %v2157
    %v2327 = vunpack.c.h.b16 %v2157
    %v2328 = vunpack.c.l.b16 %v2158
    %v2329 = vunpack.c.h.b16 %v2158
    %v2330 = vunpack.c.l.b16 %v2159
    %v2331 = vunpack.c.h.b16 %v2159
    %v2332 = vunpack.c.l.b16 %v2160
    %v2333 = vunpack.c.h.b16 %v2160
    %v2334 = vunpack.c.l.b16 %v2161
    %v2335 = vunpack.c.h.b16 %v2161
    %v2336 = vunpack.c.l.b16 %v2162
    %v2337 = vunpack.c.h.b16 %v2162
    %v2338 = vunpack.c.l.b16 %v2163
    %v2339 = vunpack.c.h.b16 %v2163
    %v2340 = vunpack.c.l.b16 %v2164
    %v2341 = vunpack.c.h.b16 %v2164
    %v2342 = vunpack.c.l.b16 %v2165
    %v2343 = vunpack.c.h.b16 %v2165
    %v2344 = vunpack.c.l.b16 %v2166
    %v2345 = vunpack.c.h.b16 %v2166
    %v2346 = vunpack.c.l.b16 %v2167
    %v2347 = vunpack.c.h.b16 %v2167
    %v2348 = vunpack.c.l.b16 %v2168
    %v2349 = vunpack.c.h.b16 %v2168
    %v2350 = vunpack.c.l.b16 %v2169
    %v2351 = vunpack.c.h.b16 %v2169
    %v2352 = vunpack.c.l.b16 %v2170
    %v2353 = vunpack.c.h.b16 %v2170
    %v2354 = vunpack.c.l.b16 %v2171
    %v2355 = vunpack.c.h.b16 %v2171
    %v2356 = vunpack.c.l.b16 %v2172
    %v2357 = vunpack.c.h.b16 %v2172
    %v2358 = vunpack.c.l.b16 %v2173
    %v2359 = vunpack.c.h.b16 %v2173
    %v2360 = vunpack.c.l.b16 %v2174
    %v2361 = vunpack.c.h.b16 %v2174
    %v2362 = vunpack.c.l.b16 %v2175
    %v2363 = vunpack.c.h.b16 %v2175
    %v2364 = vunpack.c.l.b16 %v2176
    %v2365 = vunpack.c.h.b16 %v2176
    %v2366 = vunpack.c.l.b16 %v2177
    %v2367 = vunpack.c.h.b16 %v2177
    %v2368 = vunpack.c.l.b16 %v2178
    %v2369 = vunpack.c.h.b16 %v2178
    %v2370 = vunpack.c.l.b16 %v2179
    %v2371 = vunpack.c.h.b16 %v2179
    %v2372 = vunpack.c.l.b16 %v2180
    %v2373 = vunpack.c.h.b16 %v2180
    %v2374 = vunpack.c.l.b16 %v2181
    %v2375 = vunpack.c.h.b16 %v2181
    %v2376 = vunpack.c.l.b16 %v2182
    %v2377 = vunpack.c.h.b16 %v2182
    %v2378 = vunpack.c.l.b16 %v2183
    %v2379 = vunpack.c.h.b16 %v2183
    %v2380 = vunpack.c.l.b16 %v2184
    %v2381 = vunpack.c.h.b16 %v2184
    %v2382 = vunpack.c.l.b16 %v2185
    %v2383 = vunpack.c.h.b16 %v2185
    %v2384 = vunpack.c.l.b16 %v2186
    %v2385 = vunpack.c.h.b16 %v2186
    %v2386 = vunpack.c.l.b16 %v2187
    %v2387 = vunpack.c.h.b16 %v2187
    %v2388 = vunpack.c.l.b16 %v2188
    %v2389 = vunpack.c.h.b16 %v2188
    %v2390 = vunpack.c.l.b16 %v2189
    %v2391 = vunpack.c.h.b16 %v2189
    %v2392 = vunpack.c.l.b16 %v2190
    %v2393 = vunpack.c.h.b16 %v2190
    %v2394 = vunpack.c.l.b16 %v2191
    %v2395 = vunpack.c.h.b16 %v2191
    %v2396 = vunpack.c.l.b16 %v2192
    %v2397 = vunpack.c.h.b16 %v2192
    %v2398 = vunpack.c.l.b16 %v2193
    %v2399 = vunpack.c.h.b16 %v2193
    %v2400 = vunpack.c.l.b16 %v2194
    %v2401 = vunpack.c.h.b16 %v2194
    %v2402 = vunpack.c.l.b16 %v2195
    %v2403 = vunpack.c.h.b16 %v2195
    %v2404 = vunpack.c.l.b16 %v2196
    %v2405 = vunpack.c.h.b16 %v2196
    %v2406 = vunpack.c.l.b16 %v2197
    %v2407 = vunpack.c.h.b16 %v2197
    %v2408 = vunpack.c.l.b16 %v2198
    %v2409 = vunpack.c.h.b16 %v2198
    %v2410 = vunpack.c.l.b16 %v2199
    %v2411 = vunpack.c.h.b16 %v2199
    %v2412 = vunpack.c.l.b16 %v2200
    %v2413 = vunpack.c.h.b16 %v2200
    %v2414 = vunpack.c.l.b16 %v2201
    %v2415 = vunpack.c.h.b16 %v2201
    %v2416 = vunpack.c.l.b16 %v2202
    %v2417 = vunpack.c.h.b16 %v2202
    %v2418 = vunpack.c.l.b16 %v2203
    %v2419 = vunpack.c.h.b16 %v2203
    %v2420 = vunpack.c.l.b16 %v2204
    %v2421 = vunpack.c.h.b16 %v2204
    %v2422 = vunpack.c.l.b16 %v2205
    %v2423 = vunpack.c.h.b16 %v2205
    %v2424 = vunpack.c.l.b16 %v2206
    %v2425 = vunpack.c.h.b16 %v2206
    %v2426 = vunpack.c.l.b16 %v2207
    %v2427 = vunpack.c.h.b16 %v2207
    %v2428 = vunpack.c.l.b16 %v2208
    %v2429 = vunpack.c.h.b16 %v2208
    %v2430 = vunpack.c.l.b16 %v2209
    %v2431 = vunpack.c.h.b16 %v2209
    %v2432 = vunpack.c.l.b16 %v2210
    %v2433 = vunpack.c.h.b16 %v2210
    %v2434 = vunpack.c.l.b16 %v2211
    %v2435 = vunpack.c.h.b16 %v2211
    %v2436 = vunpack.c.l.b16 %v2212
    %v2437 = vunpack.c.h.b16 %v2212
    %v2438 = vunpack.c.l.b16 %v2213
    %v2439 = vunpack.c.h.b16 %v2213
    %v2440 = vunpack.c.l.b16 %v2214
    %v2441 = vunpack.c.h.b16 %v2214
    %v2442 = vunpack.c.l.b16 %v2215
    %v2443 = vunpack.c.h.b16 %v2215
    %v2444 = vunpack.c.l.b16 %v2216
    %v2445 = vunpack.c.h.b16 %v2216
    %v2446 = vunpack.c.l.b16 %v2217
    %v2447 = vunpack.c.h.b16 %v2217
    %v2448 = vunpack.c.l.b16 %v2218
    %v2449 = vunpack.c.h.b16 %v2218
    %v2450 = vunpack.c.l.b16 %v2219
    %v2451 = vunpack.c.h.b16 %v2219
    %v2452 = vpack.c.b16 %v2314, %v2308
    %v2453 = vpack.c.b16 %v2315, %v2309
    %v2454 = vpack.c.b16 %v2316, %v2310
    %v2455 = vpack.c.b16 %v2317, %v2311
    %v2456 = vpack.c.b16 %v2318, %v2312
    %v2457 = vpack.c.b16 %v2319, %v2313
    %v2458 = vpack.c.b16 %v2326, %v2320
    %v2459 = vpack.c.b16 %v2327, %v2321
    %v2460 = vpack.c.b16 %v2328, %v2322
    %v2461 = vpack.c.b16 %v2329, %v2323
    %v2462 = vpack.c.b16 %v2330, %v2324
    %v2463 = vpack.c.b16 %v2331, %v2325
    %v2464 = vpack.c.b16 %v2338, %v2332
    %v2465 = vpack.c.b16 %v2339, %v2333
    %v2466 = vpack.c.b16 %v2340, %v2334
    %v2467 = vpack.c.b16 %v2341, %v2335
    %v2468 = vpack.c.b16 %v2342, %v2336
    %v2469 = vpack.c.b16 %v2343, %v2337
    %v2470 = vpack.c.b16 %v2350, %v2344
    %v2471 = vpack.c.b16 %v2351, %v2345
    %v2472 = vpack.c.b16 %v2352, %v2346
    %v2473 = vpack.c.b16 %v2353, %v2347
    %v2474 = vpack.c.b16 %v2354, %v2348
    %v2475 = vpack.c.b16 %v2355, %v2349
    %v2476 = vpack.c.b16 %v2362, %v2356
    %v2477 = vpack.c.b16 %v2363, %v2357
    %v2478 = vpack.c.b16 %v2364, %v2358
    %v2479 = vpack.c.b16 %v2365, %v2359
    %v2480 = vpack.c.b16 %v2366, %v2360
    %v2481 = vpack.c.b16 %v2367, %v2361
    %v2482 = vpack.c.b16 %v2374, %v2368
    %v2483 = vpack.c.b16 %v2375, %v2369
    %v2484 = vpack.c.b16 %v2376, %v2370
    %v2485 = vpack.c.b16 %v2377, %v2371
    %v2486 = vpack.c.b16 %v2378, %v2372
    %v2487 = vpack.c.b16 %v2379, %v2373
    %v2488 = vpack.c.b16 %v2386, %v2380
    %v2489 = vpack.c.b16 %v2387, %v2381
    %v2490 = vpack.c.b16 %v2388, %v2382
    %v2491 = vpack.c.b16 %v2389, %v2383
    %v2492 = vpack.c.b16 %v2390, %v2384
    %v2493 = vpack.c.b16 %v2391, %v2385
    %v2494 = vpack.c.b16 %v2398, %v2392
    %v2495 = vpack.c.b16 %v2399, %v2393
    %v2496 = vpack.c.b16 %v2400, %v2394
    %v2497 = vpack.c.b16 %v2401, %v2395
    %v2498 = vpack.c.b16 %v2402, %v2396
    %v2499 = vpack.c.b16 %v2403, %v2397
    %v2500 = vpack.c.b16 %v2410, %v2404
    %v2501 = vpack.c.b16 %v2411, %v2405
    %v2502 = vpack.c.b16 %v2412, %v2406
    %v2503 = vpack.c.b16 %v2413, %v2407
    %v2504 = vpack.c.b16 %v2414, %v2408
    %v2505 = vpack.c.b16 %v2415, %v2409
    %v2506 = vpack.c.b16 %v2422, %v2416
    %v2507 = vpack.c.b16 %v2423, %v2417
    %v2508 = vpack.c.b16 %v2424, %v2418
    %v2509 = vpack.c.b16 %v2425, %v2419
    %v2510 = vpack.c.b16 %v2426, %v2420
    %v2511 = vpack.c.b16 %v2427, %v2421
    %v2512 = vpack.c.b16 %v2434, %v2428
    %v2513 = vpack.c.b16 %v2435, %v2429
    %v2514 = vpack.c.b16 %v2436, %v2430
    %v2515 = vpack.c.b16 %v2437, %v2431
    %v2516 = vpack.c.b16 %v2438, %v2432
    %v2517 = vpack.c.b16 %v2439, %v2433
    %v2518 = vpack.c.b16 %v2446, %v2440
    %v2519 = vpack.c.b16 %v2447, %v2441
    %v2520 = vpack.c.b16 %v2448, %v2442
    %v2521 = vpack.c.b16 %v2449, %v2443
    %v2522 = vpack.c.b16 %v2450, %v2444
    %v2523 = vpack.c.b16 %v2451, %v2445
    %v2597 = vsel %vm250, %v2227, 0
    %v2600 = vsel %vm250, %v2231, 0
    %2602 = vmatprep.subr.bf16.mxu0 %v2453
    %2603 = vmatpush1.bf16.msra.mxu0 %v2452
    %2604 = vmatprep.subr.bf16.mxu0 %v2459
    %2605 = vmatpush1.bf16.msra.mxu0 %v2458
    %2606 = vmatprep.subr.bf16.mxu0 %v2465
    %2607 = vmatpush1.bf16.msra.mxu0 %v2464
    %2608 = vmatprep.subr.bf16.mxu0 %v2471
    %2609 = vmatpush1.bf16.msra.mxu0 %v2470
    %2610 = vmatprep.subr.bf16.mxu0 %v2477
    %2611 = vmatpush1.bf16.msra.mxu0 %v2476
    %2612 = vmatprep.subr.bf16.mxu0 %v2483
    %2613 = vmatpush1.bf16.msra.mxu0 %v2482
    %2614 = vmatprep.subr.bf16.mxu0 %v2489
    %2615 = vmatpush1.bf16.msra.mxu0 %v2488
    %2616 = vmatprep.subr.bf16.mxu0 %v2495
    %2617 = vmatpush1.bf16.msra.mxu0 %v2494
    %2618 = vmatprep.subr.bf16.mxu0 %v2501
    %2619 = vmatpush1.bf16.msra.mxu0 %v2500
    %2620 = vmatprep.subr.bf16.mxu0 %v2507
    %2621 = vmatpush1.bf16.msra.mxu0 %v2506
    %2622 = vmatprep.subr.bf16.mxu0 %v2513
    %2623 = vmatpush1.bf16.msra.mxu0 %v2512
    %2624 = vmatprep.subr.bf16.mxu0 %v2519
    %2625 = vmatpush1.bf16.msra.mxu0 %v2518
    %2626 = vmatprep.subr.bf16.mxu0 0
    %2627 = vmatpush1.bf16.msra.mxu0 0
    %2628 = vmatprep.subr.bf16.mxu0 0
    %2629 = vmatpush1.bf16.msra.mxu0 0
    %2630 = vmatprep.subr.bf16.mxu0 0
    %2631 = vmatpush1.bf16.msra.mxu0 0
    %2632 = vmatprep.subr.bf16.mxu0 0
    %2633 = vmatpush1.bf16.msra.mxu0 0
    %2634 = vmatprep.mubr.bf16.mxu0 %v2597
    %2635 = vmatmul.mubr.bf16.gmra.mrb[0].mxu0 %v2232
    %v2636 = vpop.f32.mrb[0].mxu0
    %v2637 = vadd.f32 0.0, %v2636
    %v2638 = vpop.f32.mrb[0].mxu0
    %v2639 = vadd.f32 0.0, %v2638
    %v2640 = vpop.f32.mrb[0].mxu0
    %v2641 = vadd.f32 0.0, %v2640
    %v2642 = vpop.f32.mrb[0].mxu0
    %v2643 = vadd.f32 0.0, %v2642
    %2644 = vmatprep.mubr.bf16.mxu0 %v2600
    %2645 = vmatmul.mubr.bf16.gmra.mrb[0].mxu0 %v2233
    %v2646 = vpop.f32.mrb[0].mxu0
    %v2647 = vadd.f32 0.0, %v2646
    %v2648 = vpop.f32.mrb[0].mxu0
    %v2649 = vadd.f32 0.0, %v2648
    %v2650 = vpop.f32.mrb[0].mxu0
    %v2651 = vpop.f32.mrb[0].mxu0
    %2652 = vdwg.mxu0
    %2653 = vmatprep.subr.bf16.mxu0 %v2455
    %2654 = vmatpush1.bf16.msra.mxu0 %v2454
    %2655 = vmatprep.subr.bf16.mxu0 %v2461
    %2656 = vmatpush1.bf16.msra.mxu0 %v2460
    %2657 = vmatprep.subr.bf16.mxu0 %v2467
    %2658 = vmatpush1.bf16.msra.mxu0 %v2466
    %2659 = vmatprep.subr.bf16.mxu0 %v2473
    %2660 = vmatpush1.bf16.msra.mxu0 %v2472
    %2661 = vmatprep.subr.bf16.mxu0 %v2479
    %2662 = vmatpush1.bf16.msra.mxu0 %v2478
    %2663 = vmatprep.subr.bf16.mxu0 %v2485
    %2664 = vmatpush1.bf16.msra.mxu0 %v2484
    %2665 = vmatprep.subr.bf16.mxu0 %v2491
    %2666 = vmatpush1.bf16.msra.mxu0 %v2490
    %2667 = vmatprep.subr.bf16.mxu0 %v2497
    %2668 = vmatpush1.bf16.msra.mxu0 %v2496
    %2669 = vmatprep.subr.bf16.mxu0 %v2503
    %2670 = vmatpush1.bf16.msra.mxu0 %v2502
    %2671 = vmatprep.subr.bf16.mxu0 %v2509
    %2672 = vmatpush1.bf16.msra.mxu0 %v2508
    %2673 = vmatprep.subr.bf16.mxu0 %v2515
    %2674 = vmatpush1.bf16.msra.mxu0 %v2514
    %2675 = vmatprep.subr.bf16.mxu0 %v2521
    %2676 = vmatpush1.bf16.msra.mxu0 %v2520
    %2677 = vmatprep.subr.bf16.mxu0 0
    %2678 = vmatpush1.bf16.msra.mxu0 0
    %2679 = vmatprep.subr.bf16.mxu0 0
    %2680 = vmatpush1.bf16.msra.mxu0 0
    %2681 = vmatprep.subr.bf16.mxu0 0
    %2682 = vmatpush1.bf16.msra.mxu0 0
    %2683 = vmatprep.subr.bf16.mxu0 0
    %2684 = vmatpush1.bf16.msra.mxu0 0
    %2685 = vmatprep.mubr.bf16.mxu0 %v2597
    %2686 = vmatmul.mubr.bf16.gmra.mrb[0].mxu0 %v2232
    %v2687 = vpop.f32.mrb[0].mxu0
    %v2688 = vadd.f32 0.0, %v2687
    %v2689 = vpop.f32.mrb[0].mxu0
    %v2690 = vadd.f32 0.0, %v2689
    %v2691 = vpop.f32.mrb[0].mxu0
    %v2692 = vadd.f32 0.0, %v2691
    %v2693 = vpop.f32.mrb[0].mxu0
    %v2694 = vadd.f32 0.0, %v2693
    %2695 = vmatprep.mubr.bf16.mxu0 %v2600
    %2696 = vmatmul.mubr.bf16.gmra.mrb[0].mxu0 %v2233
    %v2697 = vpop.f32.mrb[0].mxu0
    %v2698 = vadd.f32 0.0, %v2697
    %v2699 = vpop.f32.mrb[0].mxu0
    %v2700 = vadd.f32 0.0, %v2699
    %v2701 = vpop.f32.mrb[0].mxu0
    %v2702 = vpop.f32.mrb[0].mxu0
    %2703 = vdwg.mxu0
    %2704 = vmatprep.subr.bf16.mxu0 %v2457
    %2705 = vmatpush1.bf16.msra.mxu0 %v2456
    %2706 = vmatprep.subr.bf16.mxu0 %v2463
    %2707 = vmatpush1.bf16.msra.mxu0 %v2462
    %2708 = vmatprep.subr.bf16.mxu0 %v2469
    %2709 = vmatpush1.bf16.msra.mxu0 %v2468
    %2710 = vmatprep.subr.bf16.mxu0 %v2475
    %2711 = vmatpush1.bf16.msra.mxu0 %v2474
    %2712 = vmatprep.subr.bf16.mxu0 %v2481
    %2713 = vmatpush1.bf16.msra.mxu0 %v2480
    %2714 = vmatprep.subr.bf16.mxu0 %v2487
    %2715 = vmatpush1.bf16.msra.mxu0 %v2486
    %2716 = vmatprep.subr.bf16.mxu0 %v2493
    %2717 = vmatpush1.bf16.msra.mxu0 %v2492
    %2718 = vmatprep.subr.bf16.mxu0 %v2499
    %2719 = vmatpush1.bf16.msra.mxu0 %v2498
    %2720 = vmatprep.subr.bf16.mxu0 %v2505
    %2721 = vmatpush1.bf16.msra.mxu0 %v2504
    %2722 = vmatprep.subr.bf16.mxu0 %v2511
    %2723 = vmatpush1.bf16.msra.mxu0 %v2510
    %2724 = vmatprep.subr.bf16.mxu0 %v2517
    %2725 = vmatpush1.bf16.msra.mxu0 %v2516
    %2726 = vmatprep.subr.bf16.mxu0 %v2523
    %2727 = vmatpush1.bf16.msra.mxu0 %v2522
    %2728 = vmatprep.subr.bf16.mxu0 0
    %2729 = vmatpush1.bf16.msra.mxu0 0
    %2730 = vmatprep.subr.bf16.mxu0 0
    %2731 = vmatpush1.bf16.msra.mxu0 0
    %2732 = vmatprep.subr.bf16.mxu0 0
    %2733 = vmatpush1.bf16.msra.mxu0 0
    %2734 = vmatprep.subr.bf16.mxu0 0
    %2735 = vmatpush1.bf16.msra.mxu0 0
    %2736 = vmatprep.mubr.bf16.mxu0 %v2597
    %2737 = vmatmul.mubr.bf16.gmra.mrb[0].mxu0 %v2232
    %v2738 = vpop.f32.mrb[0].mxu0
    %v2739 = vadd.f32 0.0, %v2738
    %v2740 = vpop.f32.mrb[0].mxu0
    %v2741 = vadd.f32 0.0, %v2740
    %v2742 = vpop.f32.mrb[0].mxu0
    %v2743 = vadd.f32 0.0, %v2742
    %v2744 = vpop.f32.mrb[0].mxu0
    %v2745 = vadd.f32 0.0, %v2744
    %2746 = vmatprep.mubr.bf16.mxu0 %v2600
    %2747 = vmatmul.mubr.bf16.gmra.mrb[0].mxu0 %v2233
    %v2748 = vpop.f32.mrb[0].mxu0
    %v2749 = vadd.f32 0.0, %v2748
    %v2750 = vpop.f32.mrb[0].mxu0
    %v2751 = vadd.f32 0.0, %v2750
    %v2752 = vpop.f32.mrb[0].mxu0
    %v2753 = vpop.f32.mrb[0].mxu0
    %2754 = vdwg.mxu0
    %v2757 = vrot.slane %v2690, 6
    %v2758 = vrot.slane %v2739, 6
    %v2761 = vadd.f32 %v2637, %v2757
    %v2762 = vadd.f32 %v2639, %v2758
    %v2764 = vrot.slane %v2741, 6
    %v2766 = vadd.f32 %v2688, %v2764
    %v2767 = vadd.f32 %v2641, %v2757
    %v2768 = vadd.f32 %v2643, %v2758
    %v2769 = vadd.f32 %v2692, %v2764
    %v2772 = vrot.slane %v2694, 6
    %v2773 = vrot.slane %v2743, 6
    %v2776 = vadd.f32 %v2641, %v2772
    %v2777 = vadd.f32 %v2643, %v2773
    %v2779 = vrot.slane %v2745, 6
    %v2781 = vadd.f32 %v2692, %v2779
    %v2782 = vadd.f32 %v2647, %v2772
    %v2783 = vadd.f32 %v2649, %v2773
    %v2784 = vadd.f32 %v2698, %v2779
    %v2787 = vrot.slane %v2700, 6
    %v2788 = vrot.slane %v2749, 6
    %v2791 = vadd.f32 %v2647, %v2787
    %v2792 = vadd.f32 %v2649, %v2788
    %v2794 = vrot.slane %v2751, 6
    %v2796 = vadd.f32 %v2698, %v2794
    %2799 = vrot.lane.b32.xlu0 %v2761, 64
    %v2800 = vpop.permute.xlu0 %2799
    %2801 = vrot.lane.b32.xlu0 %v2762, 64
    %v2802 = vpop.permute.xlu0 %2801
    %v2803 = vsel %vm250, %v2800, %v2802
    %v2807 = vrot.slane %v2762, 6
    %v2808 = vrot.slane %v2766, 6
    %v2811 = vrot.slane %v2761, 6
    %2812 = vrot.lane.b32.xlu0 %v2811, 64
    %v2813 = vpop.permute.xlu0 %2812
    %2814 = vrot.lane.b32.xlu0 %v2807, 64
    %v2815 = vpop.permute.xlu0 %2814
    %v2816 = vsel %vm250, %v2813, %v2815
    %v2819 = vrot.slane %v2762, 4
    %v2820 = vrot.slane %v2766, 4
    %v2823 = vrot.slane %v2761, 4
    %2824 = vrot.lane.b32.xlu0 %v2823, 64
    %v2825 = vpop.permute.xlu0 %2824
    %2826 = vrot.lane.b32.xlu0 %v2819, 64
    %v2827 = vpop.permute.xlu0 %2826
    %v2828 = vsel %vm250, %v2825, %v2827
    %v2831 = vrot.slane %v2762, 2
    %v2832 = vrot.slane %v2766, 2
    %v2837 = vrot.slane %v2767, 2
    %v2838 = vrot.slane %v2768, 2
    %2839 = vrot.lane.b32.xlu0 %v2837, 64
    %v2840 = vpop.permute.xlu0 %2839
    %2841 = vrot.lane.b32.xlu0 %v2838, 64
    %v2842 = vpop.permute.xlu0 %2841
    %v2843 = vsel %vm250, %v2840, %v2842
    %2848 = vrot.lane.b32.xlu0 %v2776, 64
    %v2849 = vpop.permute.xlu0 %2848
    %2850 = vrot.lane.b32.xlu0 %v2777, 64
    %v2851 = vpop.permute.xlu0 %2850
    %v2852 = vsel %vm250, %v2849, %v2851
    %v2856 = vrot.slane %v2777, 6
    %v2857 = vrot.slane %v2781, 6
    %v2860 = vrot.slane %v2776, 6
    %2861 = vrot.lane.b32.xlu0 %v2860, 64
    %v2862 = vpop.permute.xlu0 %2861
    %2863 = vrot.lane.b32.xlu0 %v2856, 64
    %v2864 = vpop.permute.xlu0 %2863
    %v2865 = vsel %vm250, %v2862, %v2864
    %v2868 = vrot.slane %v2777, 4
    %v2869 = vrot.slane %v2781, 4
    %v2872 = vrot.slane %v2776, 4
    %2873 = vrot.lane.b32.xlu0 %v2872, 64
    %v2874 = vpop.permute.xlu0 %2873
    %2875 = vrot.lane.b32.xlu0 %v2868, 64
    %v2876 = vpop.permute.xlu0 %2875
    %v2877 = vsel %vm250, %v2874, %v2876
    %v2880 = vrot.slane %v2777, 2
    %v2881 = vrot.slane %v2781, 2
    %v2886 = vrot.slane %v2782, 2
    %v2887 = vrot.slane %v2783, 2
    %2888 = vrot.lane.b32.xlu0 %v2886, 64
    %v2889 = vpop.permute.xlu0 %2888
    %2890 = vrot.lane.b32.xlu0 %v2887, 64
    %v2891 = vpop.permute.xlu0 %2890
    %v2892 = vsel %vm250, %v2889, %v2891
    %v2895 = vsel %vm260, %v2639, %v2800
    %v2896 = vsel %vm260, %v2688, %v2803
    %v2897 = vsel %vm104, %v2895, %v2807
    %v2898 = vsel %vm104, %v2896, %v2808
    %v2899 = vsel %vm266, %v2897, %v2813
    %v2900 = vsel %vm266, %v2898, %v2816
    %v2901 = vsel %vm260, %v2819, %v2825
    %v2902 = vsel %vm260, %v2820, %v2828
    %v2903 = vsel %vm104, %v2901, %v2831
    %v2904 = vsel %vm104, %v2902, %v2832
    %v2905 = vsel %vm266, %v2903, %v2840
    %v2906 = vsel %vm266, %v2904, %v2843
    %v2907 = vsel %vm260, %v2768, %v2849
    %v2908 = vsel %vm260, %v2769, %v2852
    %v2909 = vsel %vm104, %v2907, %v2856
    %v2910 = vsel %vm104, %v2908, %v2857
    %v2911 = vsel %vm266, %v2909, %v2862
    %v2912 = vsel %vm266, %v2910, %v2865
    %v2913 = vsel %vm260, %v2868, %v2874
    %v2914 = vsel %vm260, %v2869, %v2877
    %v2915 = vsel %vm104, %v2913, %v2880
    %v2916 = vsel %vm104, %v2914, %v2881
    %v2917 = vsel %vm266, %v2915, %v2889
    %v2918 = vsel %vm266, %v2916, %v2892
    %2921 = vrot.lane.b32.xlu0 %v2791, 64
    %v2922 = vpop.permute.xlu0 %2921
    %2923 = vrot.lane.b32.xlu0 %v2792, 64
    %v2924 = vpop.permute.xlu0 %2923
    %v2925 = vsel %vm250, %v2922, %v2924
    %v2929 = vrot.slane %v2792, 6
    %v2930 = vrot.slane %v2796, 6
    %v2933 = vrot.slane %v2791, 6
    %2934 = vrot.lane.b32.xlu0 %v2933, 64
    %v2935 = vpop.permute.xlu0 %2934
    %2936 = vrot.lane.b32.xlu0 %v2929, 64
    %v2937 = vpop.permute.xlu0 %2936
    %v2938 = vsel %vm250, %v2935, %v2937
    %v2941 = vrot.slane %v2792, 4
    %v2942 = vrot.slane %v2796, 4
    %v2945 = vrot.slane %v2791, 4
    %2946 = vrot.lane.b32.xlu0 %v2945, 64
    %v2947 = vpop.permute.xlu0 %2946
    %2948 = vrot.lane.b32.xlu0 %v2941, 64
    %v2949 = vpop.permute.xlu0 %2948
    %v2950 = vsel %vm250, %v2947, %v2949
    %v2953 = vrot.slane %v2792, 2
    %v2954 = vrot.slane %v2796, 2
    %2957 = vrot.lane.b32.xlu0 %v2700, 64
    %v2958 = vpop.permute.xlu0 %2957
    %2959 = vrot.lane.b32.xlu0 %v2749, 64
    %v2960 = vpop.permute.xlu0 %2959
    %v2961 = vsel %vm250, %v2958, %v2960
    %v2964 = vsel %vm260, %v2783, %v2922
    %v2965 = vsel %vm260, %v2784, %v2925
    %v2966 = vsel %vm104, %v2964, %v2929
    %v2967 = vsel %vm104, %v2965, %v2930
    %v2968 = vsel %vm266, %v2966, %v2935
    %v2969 = vsel %vm266, %v2967, %v2938
    %v2970 = vsel %vm260, %v2941, %v2947
    %v2971 = vsel %vm260, %v2942, %v2950
    %v2972 = vsel %vm104, %v2970, %v2953
    %v2973 = vsel %vm104, %v2971, %v2954
    %v2974 = vsel %vm266, %v2972, %v2958
    %v2975 = vsel %vm266, %v2973, %v2961
    %v2976 = vld [vmem:[%s6 + $0x1] sm:$0x1]
    %v2977 = vsel %vm993, %v2899, 0.0
    %v2978 = vsel %vm993, %v2905, 0.0
    %v2979 = vadd.f32 %v2977, %v2978
    %v2980 = vsel %vm993, %v2911, 0.0
    %v2981 = vadd.f32 %v2979, %v2980
    %v2982 = vsel %vm993, %v2917, 0.0
    %v2983 = vadd.f32 %v2981, %v2982
    %v2984 = vsel %vm993, %v2968, 0.0
    %v2985 = vadd.f32 %v2983, %v2984
    %v2986 = vsel %vm993, %v2974, 0.0
    %v2987 = vadd.f32 %v2985, %v2986
    %v2988 = vrot.slane %v2987, 4
    %v2989 = vadd.f32 %v2987, %v2988
    %v2990 = vrot.slane %v2989, 2
    %v2991 = vadd.f32 %v2989, %v2990
    %v2992 = vrot.slane %v2991, 1
    %v2993 = vadd.f32 %v2991, %v2992
    %v2994 = vadd.f32 %v2900, %v2906
    %v2995 = vadd.f32 %v2994, %v2912
    %v2996 = vadd.f32 %v2995, %v2918
    %v2997 = vadd.f32 %v2996, %v2969
    %v2998 = vadd.f32 %v2997, %v2975
    %v2999 = vrot.slane %v2998, 4
    %v3000 = vadd.f32 %v2998, %v2999
    %v3001 = vrot.slane %v3000, 2
    %v3002 = vadd.f32 %v3000, %v3001
    %v3003 = vrot.slane %v3002, 1
    %v3004 = vadd.f32 %v3002, %v3003
    %v3005 = vmul.f32 %v2899, %v2899
    %v3006 = vmul.f32 %v2900, %v2900
    %v3007 = vmul.f32 %v2905, %v2905
    %v3008 = vmul.f32 %v2906, %v2906
    %v3009 = vmul.f32 %v2911, %v2911
    %v3010 = vmul.f32 %v2912, %v2912
    %v3011 = vmul.f32 %v2917, %v2917
    %v3012 = vmul.f32 %v2918, %v2918
    %v3013 = vmul.f32 %v2968, %v2968
    %v3014 = vmul.f32 %v2969, %v2969
    %v3015 = vmul.f32 %v2974, %v2974
    %v3016 = vmul.f32 %v2975, %v2975
    %v3017 = vsel %vm993, %v3005, 0.0
    %v3018 = vsel %vm993, %v3007, 0.0
    %v3019 = vadd.f32 %v3017, %v3018
    %v3020 = vsel %vm993, %v3009, 0.0
    %v3021 = vadd.f32 %v3019, %v3020
    %v3022 = vsel %vm993, %v3011, 0.0
    %v3023 = vadd.f32 %v3021, %v3022
    %v3024 = vsel %vm993, %v3013, 0.0
    %v3025 = vadd.f32 %v3023, %v3024
    %v3026 = vsel %vm993, %v3015, 0.0
    %v3027 = vadd.f32 %v3025, %v3026
    %v3028 = vrot.slane %v3027, 4
    %v3029 = vadd.f32 %v3027, %v3028
    %v3030 = vrot.slane %v3029, 2
    %v3031 = vadd.f32 %v3029, %v3030
    %v3032 = vrot.slane %v3031, 1
    %v3033 = vadd.f32 %v3031, %v3032
    %v3034 = vadd.f32 %v3006, %v3008
    %v3035 = vadd.f32 %v3034, %v3010
    %v3036 = vadd.f32 %v3035, %v3012
    %v3037 = vadd.f32 %v3036, %v3014
    %v3038 = vadd.f32 %v3037, %v3016
    %v3039 = vrot.slane %v3038, 4
    %v3040 = vadd.f32 %v3038, %v3039
    %v3041 = vrot.slane %v3040, 2
    %v3042 = vadd.f32 %v3040, %v3041
    %v3043 = vrot.slane %v3042, 1
    %v3044 = vadd.f32 %v3042, %v3043
    %v3045 = vadd.f32 %v2993, 0.0
    %3047 = vrot.lane.b32.xlu0 %v2993, 120
    %v3048 = vpop.permute.xlu0 %3047
    %v3050 = vadd.f32 %v3045, %v3048
    %3051 = vrot.lane.b32.xlu0 %v2993, 112
    %v3052 = vpop.permute.xlu0 %3051
    %v3054 = vadd.f32 %v3050, %v3052
    %3055 = vrot.lane.b32.xlu0 %v2993, 104
    %v3056 = vpop.permute.xlu0 %3055
    %v3058 = vadd.f32 %v3054, %v3056
    %3059 = vrot.lane.b32.xlu0 %v2993, 96
    %v3060 = vpop.permute.xlu0 %3059
    %v3062 = vadd.f32 %v3058, %v3060
    %3063 = vrot.lane.b32.xlu0 %v2993, 88
    %v3064 = vpop.permute.xlu0 %3063
    %v3066 = vadd.f32 %v3062, %v3064
    %3067 = vrot.lane.b32.xlu0 %v2993, 80
    %v3068 = vpop.permute.xlu0 %3067
    %v3070 = vadd.f32 %v3066, %v3068
    %3071 = vrot.lane.b32.xlu0 %v2993, 72
    %v3072 = vpop.permute.xlu0 %3071
    %v3074 = vadd.f32 %v3070, %v3072
    %3076 = vrot.lane.b32.xlu0 %v3004, 64
    %v3077 = vpop.permute.xlu0 %3076
    %v3079 = vadd.f32 %v3074, %v3077
    %3080 = vrot.lane.b32.xlu0 %v3004, 56
    %v3081 = vpop.permute.xlu0 %3080
    %v3083 = vadd.f32 %v3079, %v3081
    %3084 = vrot.lane.b32.xlu0 %v3004, 48
    %v3085 = vpop.permute.xlu0 %3084
    %v3087 = vadd.f32 %v3083, %v3085
    %3088 = vrot.lane.b32.xlu0 %v3004, 40
    %v3089 = vpop.permute.xlu0 %3088
    %v3091 = vadd.f32 %v3087, %v3089
    %3092 = vrot.lane.b32.xlu0 %v3004, 32
    %v3093 = vpop.permute.xlu0 %3092
    %v3095 = vadd.f32 %v3091, %v3093
    %3096 = vrot.lane.b32.xlu0 %v3004, 24
    %v3097 = vpop.permute.xlu0 %3096
    %v3099 = vadd.f32 %v3095, %v3097
    %3100 = vrot.lane.b32.xlu0 %v3004, 16
    %v3101 = vpop.permute.xlu0 %3100
    %v3103 = vadd.f32 %v3099, %v3101
    %3104 = vrot.lane.b32.xlu0 %v3004, 8
    %v3105 = vpop.permute.xlu0 %3104
    %v3107 = vadd.f32 %v3103, %v3105
    %v3108 = vadd.f32 %v3107, %v3004
    %3109 = vrot.lane.b32.xlu0 %v3004, 120
    %v3110 = vpop.permute.xlu0 %3109
    %v3112 = vadd.f32 %v3108, %v3110
    %3113 = vrot.lane.b32.xlu0 %v3004, 112
    %v3114 = vpop.permute.xlu0 %3113
    %v3116 = vadd.f32 %v3112, %v3114
    %3117 = vrot.lane.b32.xlu0 %v3004, 104
    %v3118 = vpop.permute.xlu0 %3117
    %v3120 = vadd.f32 %v3116, %v3118
    %3121 = vrot.lane.b32.xlu0 %v3004, 96
    %v3122 = vpop.permute.xlu0 %3121
    %v3124 = vadd.f32 %v3120, %v3122
    %3125 = vrot.lane.b32.xlu0 %v3004, 88
    %v3126 = vpop.permute.xlu0 %3125
    %v3128 = vadd.f32 %v3124, %v3126
    %3129 = vrot.lane.b32.xlu0 %v3004, 80
    %v3130 = vpop.permute.xlu0 %3129
    %v3132 = vadd.f32 %v3128, %v3130
    %3133 = vrot.lane.b32.xlu0 %v3004, 72
    %v3134 = vpop.permute.xlu0 %3133
    %v3136 = vadd.f32 %v3132, %v3134
    %v3137 = vadd.f32 %v3033, 0.0
    %3139 = vrot.lane.b32.xlu0 %v3033, 120
    %v3140 = vpop.permute.xlu0 %3139
    %v3142 = vadd.f32 %v3137, %v3140
    %3143 = vrot.lane.b32.xlu0 %v3033, 112
    %v3144 = vpop.permute.xlu0 %3143
    %v3146 = vadd.f32 %v3142, %v3144
    %3147 = vrot.lane.b32.xlu0 %v3033, 104
    %v3148 = vpop.permute.xlu0 %3147
    %v3150 = vadd.f32 %v3146, %v3148
    %3151 = vrot.lane.b32.xlu0 %v3033, 96
    %v3152 = vpop.permute.xlu0 %3151
    %v3154 = vadd.f32 %v3150, %v3152
    %3155 = vrot.lane.b32.xlu0 %v3033, 88
    %v3156 = vpop.permute.xlu0 %3155
    %v3158 = vadd.f32 %v3154, %v3156
    %3159 = vrot.lane.b32.xlu0 %v3033, 80
    %v3160 = vpop.permute.xlu0 %3159
    %v3162 = vadd.f32 %v3158, %v3160
    %3163 = vrot.lane.b32.xlu0 %v3033, 72
    %v3164 = vpop.permute.xlu0 %3163
    %v3166 = vadd.f32 %v3162, %v3164
    %3168 = vrot.lane.b32.xlu0 %v3044, 64
    %v3169 = vpop.permute.xlu0 %3168
    %v3171 = vadd.f32 %v3166, %v3169
    %3172 = vrot.lane.b32.xlu0 %v3044, 56
    %v3173 = vpop.permute.xlu0 %3172
    %v3175 = vadd.f32 %v3171, %v3173
    %3176 = vrot.lane.b32.xlu0 %v3044, 48
    %v3177 = vpop.permute.xlu0 %3176
    %v3179 = vadd.f32 %v3175, %v3177
    %3180 = vrot.lane.b32.xlu0 %v3044, 40
    %v3181 = vpop.permute.xlu0 %3180
    %v3183 = vadd.f32 %v3179, %v3181
    %3184 = vrot.lane.b32.xlu0 %v3044, 32
    %v3185 = vpop.permute.xlu0 %3184
    %v3187 = vadd.f32 %v3183, %v3185
    %3188 = vrot.lane.b32.xlu0 %v3044, 24
    %v3189 = vpop.permute.xlu0 %3188
    %v3191 = vadd.f32 %v3187, %v3189
    %3192 = vrot.lane.b32.xlu0 %v3044, 16
    %v3193 = vpop.permute.xlu0 %3192
    %v3195 = vadd.f32 %v3191, %v3193
    %3196 = vrot.lane.b32.xlu0 %v3044, 8
    %v3197 = vpop.permute.xlu0 %3196
    %v3199 = vadd.f32 %v3195, %v3197
    %v3200 = vadd.f32 %v3199, %v3044
    %3201 = vrot.lane.b32.xlu0 %v3044, 120
    %v3202 = vpop.permute.xlu0 %3201
    %v3204 = vadd.f32 %v3200, %v3202
    %3205 = vrot.lane.b32.xlu0 %v3044, 112
    %v3206 = vpop.permute.xlu0 %3205
    %v3208 = vadd.f32 %v3204, %v3206
    %3209 = vrot.lane.b32.xlu0 %v3044, 104
    %v3210 = vpop.permute.xlu0 %3209
    %v3212 = vadd.f32 %v3208, %v3210
    %3213 = vrot.lane.b32.xlu0 %v3044, 96
    %v3214 = vpop.permute.xlu0 %3213
    %v3216 = vadd.f32 %v3212, %v3214
    %3217 = vrot.lane.b32.xlu0 %v3044, 88
    %v3218 = vpop.permute.xlu0 %3217
    %v3220 = vadd.f32 %v3216, %v3218
    %3221 = vrot.lane.b32.xlu0 %v3044, 80
    %v3222 = vpop.permute.xlu0 %3221
    %v3224 = vadd.f32 %v3220, %v3222
    %3225 = vrot.lane.b32.xlu0 %v3044, 72
    %v3226 = vpop.permute.xlu0 %3225
    %v3228 = vadd.f32 %v3224, %v3226
    %v3229 = vrcp.pop 1152.0
    %v3230 = vmul.f32 %v3136, %v3229
    %v3231 = vmul.f32 %v3228, %v3229
    %v3232 = vmul.f32 %v3230, %v3230
    %v3233 = vsub.f32 %v3231, %v3232
    %v3234 = vadd.f32 %v3233, 1e-05
    %v3235 = vrsqrt.pop %v3234
    %v3238 = vunpack.c.l.s4 1966171168
    %v3239 = vunpack.c.0.s8 %v3238
    %v3240 = vlaneseq
    %v3241 = vshrl.u32 %v3240, 7
    %v3242 = vsub.s32 %v3239, %v3241
    %v3243 = vrot.slane %v3235, %v3242
    %v3245 = vunpack.c.l.s4 1966171168
    %v3246 = vunpack.c.0.s8 %v3245
    %v3247 = vlaneseq
    %v3248 = vshrl.u32 %v3247, 7
    %v3249 = vsub.s32 %v3246, %v3248
    %v3250 = vrot.slane %v3243, %v3249
    %3251 = vrot.lane.b32.xlu0 %v3250, 32
    %v3252 = vpop.permute.xlu0 %3251
    %v3254 = vmul.f32 %v2976, %v3252
    %v3256 = vlaneseq
    %v3257 = vshrl.u32 %v3256, 7
    %v3258 = vsub.s32 0, %v3257
    %v3259 = vrot.slane %v3254, %v3258
    %3260 = vrot.lane.b32.xlu0 %v3259, 96
    %v3261 = vpop.permute.xlu0 %3260
    %v3263 = vmul.f32 %v3230, %v3261
    %v3266 = vunpack.c.l.s4 1966171168
    %v3267 = vunpack.c.0.s8 %v3266
    %v3268 = vlaneseq
    %v3269 = vshrl.u32 %v3268, 7
    %v3270 = vsub.s32 %v3267, %v3269
    %v3271 = vrot.slane %v3263, %v3270
    %v3273 = vunpack.c.l.s4 1966171168
    %v3274 = vunpack.c.0.s8 %v3273
    %v3275 = vlaneseq
    %v3276 = vshrl.u32 %v3275, 7
    %v3277 = vsub.s32 %v3274, %v3276
    %v3278 = vrot.slane %v3271, %v3277
    %3279 = vrot.lane.b32.xlu0 %v3278, 40
    %v3280 = vpop.permute.xlu0 %3279
    %v3282 = vsub.f32 %v2976, %v3280
    %v3284 = vlaneseq
    %v3285 = vshrl.u32 %v3284, 7
    %v3286 = vsub.s32 0, %v3285
    %v3287 = vrot.slane %v3282, %v3286
    %3288 = vrot.lane.b32.xlu0 %v3287, 120
    %v3289 = vpop.permute.xlu0 %3288
    %v3291 = vsel %vm348, %v3254, %v3289
    %3293 = vrot.lane.b32.xlu0 %v3291, 32
    %v3294 = vpop.permute.xlu0 %3293
    %3296 = vrot.lane.b32.xlu0 %v3291, 40
    %v3297 = vpop.permute.xlu0 %3296
    %3299 = vrot.lane.b32.xlu0 %v3291, 48
    %v3300 = vpop.permute.xlu0 %3299
    %3302 = vrot.lane.b32.xlu0 %v3291, 56
    %v3303 = vpop.permute.xlu0 %3302
    %3305 = vrot.lane.b32.xlu0 %v3291, 64
    %v3306 = vpop.permute.xlu0 %3305
    %3308 = vrot.lane.b32.xlu0 %v3291, 72
    %v3309 = vpop.permute.xlu0 %3308
    %3311 = vrot.lane.b32.xlu0 %v3291, 80
    %v3312 = vpop.permute.xlu0 %3311
    %3314 = vrot.lane.b32.xlu0 %v3291, 88
    %v3315 = vpop.permute.xlu0 %3314
    %3317 = vrot.lane.b32.xlu0 %v3291, 96
    %v3318 = vpop.permute.xlu0 %3317
    %3320 = vrot.lane.b32.xlu0 %v3291, 104
    %v3321 = vpop.permute.xlu0 %3320
    %3323 = vrot.lane.b32.xlu0 %v3291, 112
    %v3324 = vpop.permute.xlu0 %3323
    %3326 = vrot.lane.b32.xlu0 %v3291, 120
    %v3327 = vpop.permute.xlu0 %3326
    %3329 = vrot.lane.b32.xlu0 %v3291, 8
    %v3330 = vpop.permute.xlu0 %3329
    %3332 = vrot.lane.b32.xlu0 %v3291, 16
    %v3333 = vpop.permute.xlu0 %3332
    %3335 = vrot.lane.b32.xlu0 %v3291, 24
    %v3336 = vpop.permute.xlu0 %3335
    %v3338 = vsel %vm100, %v3294, %v3297
    %v3339 = vsel %vm2081, %v3338, %v3300
    %vm3340 = vcmask 195584
    %v3341 = vsel %vm3340, %v3339, %v3303
    %v3342 = vsel %vm1146, %v3341, %v3306
    %vm3343 = vcmask 326656
    %v3344 = vsel %vm3343, %v3342, %v3309
    %v3345 = vsel %vm2084, %v3344, %v3312
    %vm3346 = vcmask 457728
    %v3347 = vsel %vm3346, %v3345, %v3315
    %v3348 = vsel %vm250, %v3347, %v3318
    %vm3349 = vcmask 588800
    %v3350 = vsel %vm3349, %v3348, %v3321
    %v3351 = vsel %vm2087, %v3350, %v3324
    %vm3352 = vcmask 719872
    %v3353 = vsel %vm3352, %v3351, %v3327
    %v3354 = vsel %vm1149, %v3353, %v3291
    %vm3355 = vcmask 850944
    %v3356 = vsel %vm3355, %v3354, %v3330
    %v3357 = vsel %vm2090, %v3356, %v3333
    %vm3358 = vcmask 982016
    %v3359 = vsel %vm3358, %v3357, %v3336
    %v3360 = vlaneseq
    %v3361 = vshrl.u32 %v3360, 7
    %v3362 = vsub.s32 0, %v3361
    %v3363 = vrot.slane %v3359, %v3362
    %v3364 = vlaneseq
    %v3365 = vshrl.u32 %v3364, 7
    %v3366 = vsub.s32 0, %v3365
    %v3367 = vrot.slane %v3347, %v3366
    %3370 = vrot.lane.b32.xlu0 %v3363, 64
    %v3371 = vpop.permute.xlu0 %3370
    %3372 = vrot.lane.b32.xlu0 %v3367, 64
    %v3373 = vpop.permute.xlu0 %3372
    %v3374 = vsel %vm250, %v3371, %v3373
    %v3377 = vmul.f32 %v2899, %v3371
    %v3378 = vmul.f32 %v2900, %v3374
    %v3379 = vmul.f32 %v2905, %v3371
    %v3380 = vmul.f32 %v2906, %v3374
    %v3381 = vmul.f32 %v2911, %v3371
    %v3382 = vmul.f32 %v2912, %v3374
    %v3383 = vmul.f32 %v2917, %v3371
    %v3384 = vmul.f32 %v2918, %v3374
    %v3385 = vmul.f32 %v2968, %v3371
    %v3386 = vmul.f32 %v2969, %v3374
    %v3387 = vmul.f32 %v2974, %v3371
    %v3388 = vmul.f32 %v2975, %v3374
    %v3389 = vlaneseq
    %v3390 = vshrl.u32 %v3389, 7
    %v3391 = vsub.s32 1, %v3390
    %v3392 = vrot.slane %v3359, %v3391
    %v3393 = vlaneseq
    %v3394 = vshrl.u32 %v3393, 7
    %v3395 = vsub.s32 1, %v3394
    %v3396 = vrot.slane %v3347, %v3395
    %3399 = vrot.lane.b32.xlu0 %v3392, 64
    %v3400 = vpop.permute.xlu0 %3399
    %3401 = vrot.lane.b32.xlu0 %v3396, 64
    %v3402 = vpop.permute.xlu0 %3401
    %v3403 = vsel %vm250, %v3400, %v3402
    %v3406 = vadd.f32 %v3377, %v3400
    %v3407 = vadd.f32 %v3378, %v3403
    %v3408 = vadd.f32 %v3379, %v3400
    %v3409 = vadd.f32 %v3380, %v3403
    %v3410 = vadd.f32 %v3381, %v3400
    %v3411 = vadd.f32 %v3382, %v3403
    %v3412 = vadd.f32 %v3383, %v3400
    %v3413 = vadd.f32 %v3384, %v3403
    %v3414 = vadd.f32 %v3385, %v3400
    %v3415 = vadd.f32 %v3386, %v3403
    %v3416 = vadd.f32 %v3387, %v3400
    %v3417 = vadd.f32 %v3388, %v3403
    %v3418 = vmax.f32 %v3406, 0.0
    %v3419 = vmax.f32 %v3407, 0.0
    %v3420 = vmax.f32 %v3408, 0.0
    %v3421 = vmax.f32 %v3409, 0.0
    %v3422 = vmax.f32 %v3410, 0.0
    %v3423 = vmax.f32 %v3411, 0.0
    %v3424 = vmax.f32 %v3412, 0.0
    %v3425 = vmax.f32 %v3413, 0.0
    %v3426 = vmax.f32 %v3414, 0.0
    %v3427 = vmax.f32 %v3415, 0.0
    %v3428 = vmax.f32 %v3416, 0.0
    %v3429 = vmax.f32 %v3417, 0.0
    %v3430 = vpack.c.bf16 %v3420, %v3418
    %v3431 = vpack.c.bf16 %v3421, %v3419
    %v3432 = vpack.c.bf16 %v3424, %v3422
    %v3433 = vpack.c.bf16 %v3425, %v3423
    %v3434 = vpack.c.bf16 %v3428, %v3426
    %v3435 = vpack.c.bf16 %v3429, %v3427
    %v3436 = vld [vmem:[#allocation7] sm:$0xff]
    %v3437 = vld [vmem:[#allocation7 + $0x8] sm:$0xff]
    %v3438 = vld [vmem:[#allocation7 + $0x10] sm:$0xf]
    %v3439 = vld [vmem:[#allocation7 + $0x14] sm:$0xff]
    %v3440 = vld [vmem:[#allocation7 + $0x1c] sm:$0xff]
    %v3441 = vld [vmem:[#allocation7 + $0x24] sm:$0xf]
    %v3442 = vld [vmem:[#allocation7 + $0x28] sm:$0xff]
    %v3443 = vld [vmem:[#allocation7 + $0x30] sm:$0xff]
    %v3444 = vld [vmem:[#allocation7 + $0x38] sm:$0xf]
    %v3445 = vld [vmem:[#allocation7 + $0x3c] sm:$0xff]
    %v3446 = vld [vmem:[#allocation7 + $0x44] sm:$0xff]
    %v3447 = vld [vmem:[#allocation7 + $0x4c] sm:$0xf]
    %v3448 = vld [vmem:[#allocation7 + $0x50] sm:$0xff]
    %v3449 = vld [vmem:[#allocation7 + $0x58] sm:$0xff]
    %v3450 = vld [vmem:[#allocation7 + $0x60] sm:$0xf]
    %v3451 = vld [vmem:[#allocation7 + $0x64] sm:$0xff]
    %v3452 = vld [vmem:[#allocation7 + $0x6c] sm:$0xff]
    %v3453 = vld [vmem:[#allocation7 + $0x74] sm:$0xf]
    %v3454 = vld [vmem:[#allocation7 + $0x78] sm:$0xff]
    %v3455 = vld [vmem:[#allocation7 + $0x80] sm:$0xff]
    %v3456 = vld [vmem:[#allocation7 + $0x88] sm:$0xf]
    %v3457 = vld [vmem:[#allocation7 + $0x8c] sm:$0xff]
    %v3458 = vld [vmem:[#allocation7 + $0x94] sm:$0xff]
    %v3459 = vld [vmem:[#allocation7 + $0x9c] sm:$0xf]
    %v3460 = vld [vmem:[#allocation7 + $0xa0] sm:$0xff]
    %v3461 = vld [vmem:[#allocation7 + $0xa8] sm:$0xff]
    %v3462 = vld [vmem:[#allocation7 + $0xb0] sm:$0xf]
    %v3463 = vld [vmem:[#allocation7 + $0xb4] sm:$0xff]
    %v3464 = vld [vmem:[#allocation7 + $0xbc] sm:$0xff]
    %v3465 = vld [vmem:[#allocation7 + $0xc4] sm:$0xf]
    %v3466 = vld [vmem:[#allocation7 + $0xc8] sm:$0xff]
    %v3467 = vld [vmem:[#allocation7 + $0xd0] sm:$0xff]
    %v3468 = vld [vmem:[#allocation7 + $0xd8] sm:$0xf]
    %v3469 = vld [vmem:[#allocation7 + $0xdc] sm:$0xff]
    %v3470 = vld [vmem:[#allocation7 + $0xe4] sm:$0xff]
    %v3471 = vld [vmem:[#allocation7 + $0xec] sm:$0xf]
    %v3472 = vld [vmem:[#allocation7 + $0xf0] sm:$0xff]
    %v3473 = vld [vmem:[#allocation7 + $0xf8] sm:$0xff]
    %v3474 = vld [vmem:[#allocation7 + $0x100] sm:$0xf]
    %v3475 = vld [vmem:[#allocation7 + $0x104] sm:$0xff]
    %v3476 = vld [vmem:[#allocation7 + $0x10c] sm:$0xff]
    %v3477 = vld [vmem:[#allocation7 + $0x114] sm:$0xf]
    %v3478 = vld [vmem:[#allocation7 + $0x118] sm:$0xff]
    %v3479 = vld [vmem:[#allocation7 + $0x120] sm:$0xff]
    %v3480 = vld [vmem:[#allocation7 + $0x128] sm:$0xf]
    %v3481 = vld [vmem:[#allocation7 + $0x12c] sm:$0xff]
    %v3482 = vld [vmem:[#allocation7 + $0x134] sm:$0xff]
    %v3483 = vld [vmem:[#allocation7 + $0x13c] sm:$0xf]
    %v3484 = vld [vmem:[#allocation7 + $0x140] sm:$0xff]
    %v3485 = vld [vmem:[#allocation7 + $0x148] sm:$0xff]
    %v3486 = vld [vmem:[#allocation7 + $0x150] sm:$0xf]
    %v3487 = vld [vmem:[#allocation7 + $0x154] sm:$0xff]
    %v3488 = vld [vmem:[#allocation7 + $0x15c] sm:$0xff]
    %v3489 = vld [vmem:[#allocation7 + $0x164] sm:$0xf]
    %v3490 = vld [vmem:[#allocation7 + $0x168] sm:$0xff]
    %v3491 = vld [vmem:[#allocation7 + $0x170] sm:$0xff]
    %v3492 = vld [vmem:[#allocation7 + $0x178] sm:$0xf]
    %v3493 = vld [vmem:[#allocation7 + $0x17c] sm:$0xff]
    %v3494 = vld [vmem:[#allocation7 + $0x184] sm:$0xff]
    %v3495 = vld [vmem:[#allocation7 + $0x18c] sm:$0xf]
    %v3496 = vld [vmem:[#allocation7 + $0x190] sm:$0xff]
    %v3497 = vld [vmem:[#allocation7 + $0x198] sm:$0xff]
    %v3498 = vld [vmem:[#allocation7 + $0x1a0] sm:$0xf]
    %v3499 = vld [vmem:[#allocation7 + $0x1a4] sm:$0xff]
    %v3500 = vld [vmem:[#allocation7 + $0x1ac] sm:$0xff]
    %v3501 = vld [vmem:[#allocation7 + $0x1b4] sm:$0xf]
    %v3502 = vld [vmem:[#allocation7 + $0x1b8] sm:$0xff]
    %v3503 = vld [vmem:[#allocation7 + $0x1c0] sm:$0xff]
    %v3504 = vld [vmem:[#allocation7 + $0x1c8] sm:$0xf]
    %v3505 = vld [vmem:[#allocation7 + $0x1cc] sm:$0xff]
    %v3506 = vld [vmem:[#allocation7 + $0x1d4] sm:$0xff]
    %v3507 = vld [vmem:[#allocation7 + $0x1dc] sm:$0xf]
    %3514 = vrot.lane.b32.xlu0 %v3430, 64
    %v3515 = vpop.permute.xlu0 %3514
    %3516 = vrot.lane.b32.xlu0 %v3431, 64
    %v3517 = vpop.permute.xlu0 %3516
    %3518 = vrot.lane.b32.xlu0 %v3432, 64
    %v3519 = vpop.permute.xlu0 %3518
    %3520 = vrot.lane.b32.xlu0 %v3433, 64
    %v3521 = vpop.permute.xlu0 %3520
    %3522 = vrot.lane.b32.xlu0 %v3434, 64
    %v3523 = vpop.permute.xlu0 %3522
    %3524 = vrot.lane.b32.xlu0 %v3435, 64
    %v3525 = vpop.permute.xlu0 %3524
    %v3526 = vsel %vm1277, %v3515, %v3517
    %v3527 = vsel %vm1277, %v3519, %v3521
    %v3528 = vsel %vm1277, %v3523, %v3525
    %v3604 = vunpack.c.l.b16 %v3436
    %v3605 = vunpack.c.h.b16 %v3436
    %v3606 = vunpack.c.l.b16 %v3437
    %v3607 = vunpack.c.h.b16 %v3437
    %v3608 = vunpack.c.l.b16 %v3438
    %v3609 = vunpack.c.l.b16 %v3439
    %v3610 = vunpack.c.h.b16 %v3439
    %v3611 = vunpack.c.l.b16 %v3440
    %v3612 = vunpack.c.h.b16 %v3440
    %v3613 = vunpack.c.l.b16 %v3441
    %v3614 = vunpack.c.l.b16 %v3442
    %v3615 = vunpack.c.h.b16 %v3442
    %v3616 = vunpack.c.l.b16 %v3443
    %v3617 = vunpack.c.h.b16 %v3443
    %v3618 = vunpack.c.l.b16 %v3444
    %v3619 = vunpack.c.l.b16 %v3445
    %v3620 = vunpack.c.h.b16 %v3445
    %v3621 = vunpack.c.l.b16 %v3446
    %v3622 = vunpack.c.h.b16 %v3446
    %v3623 = vunpack.c.l.b16 %v3447
    %v3624 = vunpack.c.l.b16 %v3448
    %v3625 = vunpack.c.h.b16 %v3448
    %v3626 = vunpack.c.l.b16 %v3449
    %v3627 = vunpack.c.h.b16 %v3449
    %v3628 = vunpack.c.l.b16 %v3450
    %v3629 = vunpack.c.l.b16 %v3451
    %v3630 = vunpack.c.h.b16 %v3451
    %v3631 = vunpack.c.l.b16 %v3452
    %v3632 = vunpack.c.h.b16 %v3452
    %v3633 = vunpack.c.l.b16 %v3453
    %v3634 = vunpack.c.l.b16 %v3454
    %v3635 = vunpack.c.h.b16 %v3454
    %v3636 = vunpack.c.l.b16 %v3455
    %v3637 = vunpack.c.h.b16 %v3455
    %v3638 = vunpack.c.l.b16 %v3456
    %v3639 = vunpack.c.l.b16 %v3457
    %v3640 = vunpack.c.h.b16 %v3457
    %v3641 = vunpack.c.l.b16 %v3458
    %v3642 = vunpack.c.h.b16 %v3458
    %v3643 = vunpack.c.l.b16 %v3459
    %v3644 = vunpack.c.l.b16 %v3460
    %v3645 = vunpack.c.h.b16 %v3460
    %v3646 = vunpack.c.l.b16 %v3461
    %v3647 = vunpack.c.h.b16 %v3461
    %v3648 = vunpack.c.l.b16 %v3462
    %v3649 = vunpack.c.l.b16 %v3463
    %v3650 = vunpack.c.h.b16 %v3463
    %v3651 = vunpack.c.l.b16 %v3464
    %v3652 = vunpack.c.h.b16 %v3464
    %v3653 = vunpack.c.l.b16 %v3465
    %v3654 = vunpack.c.l.b16 %v3466
    %v3655 = vunpack.c.h.b16 %v3466
    %v3656 = vunpack.c.l.b16 %v3467
    %v3657 = vunpack.c.h.b16 %v3467
    %v3658 = vunpack.c.l.b16 %v3468
    %v3659 = vunpack.c.l.b16 %v3469
    %v3660 = vunpack.c.h.b16 %v3469
    %v3661 = vunpack.c.l.b16 %v3470
    %v3662 = vunpack.c.h.b16 %v3470
    %v3663 = vunpack.c.l.b16 %v3471
    %v3664 = vunpack.c.l.b16 %v3472
    %v3665 = vunpack.c.h.b16 %v3472
    %v3666 = vunpack.c.l.b16 %v3473
    %v3667 = vunpack.c.h.b16 %v3473
    %v3668 = vunpack.c.l.b16 %v3474
    %v3669 = vunpack.c.l.b16 %v3475
    %v3670 = vunpack.c.h.b16 %v3475
    %v3671 = vunpack.c.l.b16 %v3476
    %v3672 = vunpack.c.h.b16 %v3476
    %v3673 = vunpack.c.l.b16 %v3477
    %v3674 = vunpack.c.l.b16 %v3478
    %v3675 = vunpack.c.h.b16 %v3478
    %v3676 = vunpack.c.l.b16 %v3479
    %v3677 = vunpack.c.h.b16 %v3479
    %v3678 = vunpack.c.l.b16 %v3480
    %v3679 = vunpack.c.l.b16 %v3481
    %v3680 = vunpack.c.h.b16 %v3481
    %v3681 = vunpack.c.l.b16 %v3482
    %v3682 = vunpack.c.h.b16 %v3482
    %v3683 = vunpack.c.l.b16 %v3483
    %v3684 = vunpack.c.l.b16 %v3484
    %v3685 = vunpack.c.h.b16 %v3484
    %v3686 = vunpack.c.l.b16 %v3485
    %v3687 = vunpack.c.h.b16 %v3485
    %v3688 = vunpack.c.l.b16 %v3486
    %v3689 = vunpack.c.l.b16 %v3487
    %v3690 = vunpack.c.h.b16 %v3487
    %v3691 = vunpack.c.l.b16 %v3488
    %v3692 = vunpack.c.h.b16 %v3488
    %v3693 = vunpack.c.l.b16 %v3489
    %v3694 = vunpack.c.l.b16 %v3490
    %v3695 = vunpack.c.h.b16 %v3490
    %v3696 = vunpack.c.l.b16 %v3491
    %v3697 = vunpack.c.h.b16 %v3491
    %v3698 = vunpack.c.l.b16 %v3492
    %v3699 = vunpack.c.l.b16 %v3493
    %v3700 = vunpack.c.h.b16 %v3493
    %v3701 = vunpack.c.l.b16 %v3494
    %v3702 = vunpack.c.h.b16 %v3494
    %v3703 = vunpack.c.l.b16 %v3495
    %v3704 = vunpack.c.l.b16 %v3496
    %v3705 = vunpack.c.h.b16 %v3496
    %v3706 = vunpack.c.l.b16 %v3497
    %v3707 = vunpack.c.h.b16 %v3497
    %v3708 = vunpack.c.l.b16 %v3498
    %v3709 = vunpack.c.l.b16 %v3499
    %v3710 = vunpack.c.h.b16 %v3499
    %v3711 = vunpack.c.l.b16 %v3500
    %v3712 = vunpack.c.h.b16 %v3500
    %v3713 = vunpack.c.l.b16 %v3501
    %v3714 = vunpack.c.l.b16 %v3502
    %v3715 = vunpack.c.h.b16 %v3502
    %v3716 = vunpack.c.l.b16 %v3503
    %v3717 = vunpack.c.h.b16 %v3503
    %v3718 = vunpack.c.l.b16 %v3504
    %v3719 = vunpack.c.l.b16 %v3505
    %v3720 = vunpack.c.h.b16 %v3505
    %v3721 = vunpack.c.l.b16 %v3506
    %v3722 = vunpack.c.h.b16 %v3506
    %v3723 = vunpack.c.l.b16 %v3507
    %v3724 = vpack.c.b16 %v3609, %v3604
    %v3725 = vpack.c.b16 %v3610, %v3605
    %v3726 = vpack.c.b16 %v3611, %v3606
    %v3727 = vpack.c.b16 %v3612, %v3607
    %v3728 = vpack.c.b16 %v3613, %v3608
    %v3729 = vpack.c.b16 %v3619, %v3614
    %v3730 = vpack.c.b16 %v3620, %v3615
    %v3731 = vpack.c.b16 %v3621, %v3616
    %v3732 = vpack.c.b16 %v3622, %v3617
    %v3733 = vpack.c.b16 %v3623, %v3618
    %v3734 = vpack.c.b16 %v3629, %v3624
    %v3735 = vpack.c.b16 %v3630, %v3625
    %v3736 = vpack.c.b16 %v3631, %v3626
    %v3737 = vpack.c.b16 %v3632, %v3627
    %v3738 = vpack.c.b16 %v3633, %v3628
    %v3739 = vpack.c.b16 %v3639, %v3634
    %v3740 = vpack.c.b16 %v3640, %v3635
    %v3741 = vpack.c.b16 %v3641, %v3636
    %v3742 = vpack.c.b16 %v3642, %v3637
    %v3743 = vpack.c.b16 %v3643, %v3638
    %v3744 = vpack.c.b16 %v3649, %v3644
    %v3745 = vpack.c.b16 %v3650, %v3645
    %v3746 = vpack.c.b16 %v3651, %v3646
    %v3747 = vpack.c.b16 %v3652, %v3647
    %v3748 = vpack.c.b16 %v3653, %v3648
    %v3749 = vpack.c.b16 %v3659, %v3654
    %v3750 = vpack.c.b16 %v3660, %v3655
    %v3751 = vpack.c.b16 %v3661, %v3656
    %v3752 = vpack.c.b16 %v3662, %v3657
    %v3753 = vpack.c.b16 %v3663, %v3658
    %v3754 = vpack.c.b16 %v3669, %v3664
    %v3755 = vpack.c.b16 %v3670, %v3665
    %v3756 = vpack.c.b16 %v3671, %v3666
    %v3757 = vpack.c.b16 %v3672, %v3667
    %v3758 = vpack.c.b16 %v3673, %v3668
    %v3759 = vpack.c.b16 %v3679, %v3674
    %v3760 = vpack.c.b16 %v3680, %v3675
    %v3761 = vpack.c.b16 %v3681, %v3676
    %v3762 = vpack.c.b16 %v3682, %v3677
    %v3763 = vpack.c.b16 %v3683, %v3678
    %v3764 = vpack.c.b16 %v3689, %v3684
    %v3765 = vpack.c.b16 %v3690, %v3685
    %v3766 = vpack.c.b16 %v3691, %v3686
    %v3767 = vpack.c.b16 %v3692, %v3687
    %v3768 = vpack.c.b16 %v3693, %v3688
    %v3769 = vpack.c.b16 %v3699, %v3694
    %v3770 = vpack.c.b16 %v3700, %v3695
    %v3771 = vpack.c.b16 %v3701, %v3696
    %v3772 = vpack.c.b16 %v3702, %v3697
    %v3773 = vpack.c.b16 %v3703, %v3698
    %v3774 = vpack.c.b16 %v3709, %v3704
    %v3775 = vpack.c.b16 %v3710, %v3705
    %v3776 = vpack.c.b16 %v3711, %v3706
    %v3777 = vpack.c.b16 %v3712, %v3707
    %v3778 = vpack.c.b16 %v3713, %v3708
    %v3779 = vpack.c.b16 %v3719, %v3714
    %v3780 = vpack.c.b16 %v3720, %v3715
    %v3781 = vpack.c.b16 %v3721, %v3716
    %v3782 = vpack.c.b16 %v3722, %v3717
    %v3783 = vpack.c.b16 %v3723, %v3718
    %v3845 = vsel %vm250, %v3517, 0
    %v3848 = vsel %vm250, %v3521, 0
    %v3851 = vsel %vm250, %v3525, 0
    %3853 = vmatprep.subr.bf16.mxu0 %v3725
    %3854 = vmatpush1.bf16.msra.mxu0 %v3724
    %3855 = vmatprep.subr.bf16.mxu0 %v3730
    %3856 = vmatpush1.bf16.msra.mxu0 %v3729
    %3857 = vmatprep.subr.bf16.mxu0 %v3735
    %3858 = vmatpush1.bf16.msra.mxu0 %v3734
    %3859 = vmatprep.subr.bf16.mxu0 %v3740
    %3860 = vmatpush1.bf16.msra.mxu0 %v3739
    %3861 = vmatprep.subr.bf16.mxu0 %v3745
    %3862 = vmatpush1.bf16.msra.mxu0 %v3744
    %3863 = vmatprep.subr.bf16.mxu0 %v3750
    %3864 = vmatpush1.bf16.msra.mxu0 %v3749
    %3865 = vmatprep.subr.bf16.mxu0 %v3755
    %3866 = vmatpush1.bf16.msra.mxu0 %v3754
    %3867 = vmatprep.subr.bf16.mxu0 %v3760
    %3868 = vmatpush1.bf16.msra.mxu0 %v3759
    %3869 = vmatprep.subr.bf16.mxu0 %v3765
    %3870 = vmatpush1.bf16.msra.mxu0 %v3764
    %3871 = vmatprep.subr.bf16.mxu0 %v3770
    %3872 = vmatpush1.bf16.msra.mxu0 %v3769
    %3873 = vmatprep.subr.bf16.mxu0 %v3775
    %3874 = vmatpush1.bf16.msra.mxu0 %v3774
    %3875 = vmatprep.subr.bf16.mxu0 %v3780
    %3876 = vmatpush1.bf16.msra.mxu0 %v3779
    %3877 = vmatprep.subr.bf16.mxu0 0
    %3878 = vmatpush1.bf16.msra.mxu0 0
    %3879 = vmatprep.subr.bf16.mxu0 0
    %3880 = vmatpush1.bf16.msra.mxu0 0
    %3881 = vmatprep.subr.bf16.mxu0 0
    %3882 = vmatpush1.bf16.msra.mxu0 0
    %3883 = vmatprep.subr.bf16.mxu0 0
    %3884 = vmatpush1.bf16.msra.mxu0 0
    %3885 = vmatprep.mubr.bf16.mxu0 %v3845
    %3886 = vmatmul.mubr.bf16.gmra.mrb[0].mxu0 %v3526
    %v3887 = vpop.f32.mrb[0].mxu0
    %v3888 = vadd.f32 0.0, %v3887
    %v3889 = vpop.f32.mrb[0].mxu0
    %v3890 = vadd.f32 0.0, %v3889
    %v3891 = vpop.f32.mrb[0].mxu0
    %v3892 = vadd.f32 0.0, %v3891
    %v3893 = vpop.f32.mrb[0].mxu0
    %v3894 = vadd.f32 0.0, %v3893
    %3895 = vmatprep.mubr.bf16.mxu0 %v3848
    %3896 = vmatmul.mubr.bf16.gmra.mrb[0].mxu0 %v3527
    %v3897 = vpop.f32.mrb[0].mxu0
    %v3898 = vadd.f32 0.0, %v3897
    %v3899 = vpop.f32.mrb[0].mxu0
    %v3900 = vadd.f32 0.0, %v3899
    %v3901 = vpop.f32.mrb[0].mxu0
    %v3902 = vadd.f32 0.0, %v3901
    %v3903 = vpop.f32.mrb[0].mxu0
    %v3904 = vadd.f32 0.0, %v3903
    %3905 = vmatprep.mubr.bf16.mxu0 %v3851
    %3906 = vmatmul.mubr.bf16.gmra.mrb[0].mxu0 %v3528
    %v3907 = vpop.f32.mrb[0].mxu0
    %v3908 = vadd.f32 0.0, %v3907
    %v3909 = vpop.f32.mrb[0].mxu0
    %v3910 = vadd.f32 0.0, %v3909
    %v3911 = vpop.f32.mrb[0].mxu0
    %v3912 = vadd.f32 0.0, %v3911
    %v3913 = vpop.f32.mrb[0].mxu0
    %v3914 = vadd.f32 0.0, %v3913
    %3915 = vdwg.mxu0
    %3916 = vmatprep.subr.bf16.mxu0 %v3727
    %3917 = vmatpush1.bf16.msra.mxu0 %v3726
    %3918 = vmatprep.subr.bf16.mxu0 %v3732
    %3919 = vmatpush1.bf16.msra.mxu0 %v3731
    %3920 = vmatprep.subr.bf16.mxu0 %v3737
    %3921 = vmatpush1.bf16.msra.mxu0 %v3736
    %3922 = vmatprep.subr.bf16.mxu0 %v3742
    %3923 = vmatpush1.bf16.msra.mxu0 %v3741
    %3924 = vmatprep.subr.bf16.mxu0 %v3747
    %3925 = vmatpush1.bf16.msra.mxu0 %v3746
    %3926 = vmatprep.subr.bf16.mxu0 %v3752
    %3927 = vmatpush1.bf16.msra.mxu0 %v3751
    %3928 = vmatprep.subr.bf16.mxu0 %v3757
    %3929 = vmatpush1.bf16.msra.mxu0 %v3756
    %3930 = vmatprep.subr.bf16.mxu0 %v3762
    %3931 = vmatpush1.bf16.msra.mxu0 %v3761
    %3932 = vmatprep.subr.bf16.mxu0 %v3767
    %3933 = vmatpush1.bf16.msra.mxu0 %v3766
    %3934 = vmatprep.subr.bf16.mxu0 %v3772
    %3935 = vmatpush1.bf16.msra.mxu0 %v3771
    %3936 = vmatprep.subr.bf16.mxu0 %v3777
    %3937 = vmatpush1.bf16.msra.mxu0 %v3776
    %3938 = vmatprep.subr.bf16.mxu0 %v3782
    %3939 = vmatpush1.bf16.msra.mxu0 %v3781
    %3940 = vmatprep.subr.bf16.mxu0 0
    %3941 = vmatpush1.bf16.msra.mxu0 0
    %3942 = vmatprep.subr.bf16.mxu0 0
    %3943 = vmatpush1.bf16.msra.mxu0 0
    %3944 = vmatprep.subr.bf16.mxu0 0
    %3945 = vmatpush1.bf16.msra.mxu0 0
    %3946 = vmatprep.subr.bf16.mxu0 0
    %3947 = vmatpush1.bf16.msra.mxu0 0
    %3948 = vmatprep.mubr.bf16.mxu0 %v3845
    %3949 = vmatmul.mubr.bf16.gmra.mrb[0].mxu0 %v3526
    %v3950 = vpop.f32.mrb[0].mxu0
    %v3951 = vadd.f32 0.0, %v3950
    %v3952 = vpop.f32.mrb[0].mxu0
    %v3953 = vadd.f32 0.0, %v3952
    %v3954 = vpop.f32.mrb[0].mxu0
    %v3955 = vadd.f32 0.0, %v3954
    %v3956 = vpop.f32.mrb[0].mxu0
    %v3957 = vadd.f32 0.0, %v3956
    %3958 = vmatprep.mubr.bf16.mxu0 %v3848
    %3959 = vmatmul.mubr.bf16.gmra.mrb[0].mxu0 %v3527
    %v3960 = vpop.f32.mrb[0].mxu0
    %v3961 = vadd.f32 0.0, %v3960
    %v3962 = vpop.f32.mrb[0].mxu0
    %v3963 = vadd.f32 0.0, %v3962
    %v3964 = vpop.f32.mrb[0].mxu0
    %v3965 = vadd.f32 0.0, %v3964
    %v3966 = vpop.f32.mrb[0].mxu0
    %v3967 = vadd.f32 0.0, %v3966
    %3968 = vmatprep.mubr.bf16.mxu0 %v3851
    %3969 = vmatmul.mubr.bf16.gmra.mrb[0].mxu0 %v3528
    %v3970 = vpop.f32.mrb[0].mxu0
    %v3971 = vadd.f32 0.0, %v3970
    %v3972 = vpop.f32.mrb[0].mxu0
    %v3973 = vadd.f32 0.0, %v3972
    %v3974 = vpop.f32.mrb[0].mxu0
    %v3975 = vadd.f32 0.0, %v3974
    %v3976 = vpop.f32.mrb[0].mxu0
    %v3977 = vadd.f32 0.0, %v3976
    %3978 = vdwg.mxu0
    %3979 = vmatprep.subr.bf16.mxu0 0
    %3980 = vmatpush1.bf16.msra.mxu0 %v3728
    %3981 = vmatprep.subr.bf16.mxu0 0
    %3982 = vmatpush1.bf16.msra.mxu0 %v3733
    %3983 = vmatprep.subr.bf16.mxu0 0
    %3984 = vmatpush1.bf16.msra.mxu0 %v3738
    %3985 = vmatprep.subr.bf16.mxu0 0
    %3986 = vmatpush1.bf16.msra.mxu0 %v3743
    %3987 = vmatprep.subr.bf16.mxu0 0
    %3988 = vmatpush1.bf16.msra.mxu0 %v3748
    %3989 = vmatprep.subr.bf16.mxu0 0
    %3990 = vmatpush1.bf16.msra.mxu0 %v3753
    %3991 = vmatprep.subr.bf16.mxu0 0
    %3992 = vmatpush1.bf16.msra.mxu0 %v3758
    %3993 = vmatprep.subr.bf16.mxu0 0
    %3994 = vmatpush1.bf16.msra.mxu0 %v3763
    %3995 = vmatprep.subr.bf16.mxu0 0
    %3996 = vmatpush1.bf16.msra.mxu0 %v3768
    %3997 = vmatprep.subr.bf16.mxu0 0
    %3998 = vmatpush1.bf16.msra.mxu0 %v3773
    %3999 = vmatprep.subr.bf16.mxu0 0
    %4000 = vmatpush1.bf16.msra.mxu0 %v3778
    %4001 = vmatprep.subr.bf16.mxu0 0
    %4002 = vmatpush1.bf16.msra.mxu0 %v3783
    %4003 = vmatprep.subr.bf16.mxu0 0
    %4004 = vmatpush1.bf16.msra.mxu0 0
    %4005 = vmatprep.subr.bf16.mxu0 0
    %4006 = vmatpush1.bf16.msra.mxu0 0
    %4007 = vmatprep.subr.bf16.mxu0 0
    %4008 = vmatpush1.bf16.msra.mxu0 0
    %4009 = vmatprep.subr.bf16.mxu0 0
    %4010 = vmatpush1.bf16.msra.mxu0 0
    %4011 = vmatprep.mubr.bf16.mxu0 %v3845
    %4012 = vmatmul.mubr.bf16.gmra.mrb[0].mxu0 %v3526
    %v4013 = vpop.f32.mrb[0].mxu0
    %v4014 = vadd.f32 0.0, %v4013
    %v4015 = vpop.f32.mrb[0].mxu0
    %v4016 = vpop.f32.mrb[0].mxu0
    %v4017 = vadd.f32 0.0, %v4016
    %v4018 = vpop.f32.mrb[0].mxu0
    %4019 = vmatprep.mubr.bf16.mxu0 %v3848
    %4020 = vmatmul.mubr.bf16.gmra.mrb[0].mxu0 %v3527
    %v4021 = vpop.f32.mrb[0].mxu0
    %v4022 = vadd.f32 0.0, %v4021
    %v4023 = vpop.f32.mrb[0].mxu0
    %v4024 = vpop.f32.mrb[0].mxu0
    %v4025 = vadd.f32 0.0, %v4024
    %v4026 = vpop.f32.mrb[0].mxu0
    %4027 = vmatprep.mubr.bf16.mxu0 %v3851
    %4028 = vmatmul.mubr.bf16.gmra.mrb[0].mxu0 %v3528
    %v4029 = vpop.f32.mrb[0].mxu0
    %v4030 = vadd.f32 0.0, %v4029
    %v4031 = vpop.f32.mrb[0].mxu0
    %v4032 = vpop.f32.mrb[0].mxu0
    %v4033 = vadd.f32 0.0, %v4032
    %v4034 = vpop.f32.mrb[0].mxu0
    %4035 = vdwg.mxu0
    %v4037 = vrot.slane %v3890, 6
    %v4039 = vadd.f32 %v3888, %v4037
    %v4041 = vrot.slane %v3951, 4
    %v4043 = vadd.f32 %v4039, %v4041
    %v4045 = vrot.slane %v3953, 2
    %v4047 = vadd.f32 %v4043, %v4045
    %v4048 = vadd.f32 %v3892, %v4037
    %v4049 = vadd.f32 %v4048, %v4041
    %v4050 = vadd.f32 %v4049, %v4045
    %v4051 = vadd.f32 %v4050, %v4014
    %v4053 = vrot.slane %v3894, 6
    %v4055 = vadd.f32 %v3892, %v4053
    %v4056 = vadd.f32 %v4055, %v4041
    %v4057 = vadd.f32 %v4056, %v4045
    %v4058 = vadd.f32 %v4057, %v4014
    %v4060 = vrot.slane %v3955, 4
    %v4062 = vadd.f32 %v4055, %v4060
    %v4063 = vadd.f32 %v4062, %v4045
    %v4064 = vadd.f32 %v4063, %v4014
    %v4066 = vrot.slane %v3957, 2
    %v4068 = vadd.f32 %v4062, %v4066
    %v4069 = vadd.f32 %v4068, %v4014
    %v4070 = vadd.f32 %v3898, %v4053
    %v4071 = vadd.f32 %v4070, %v4060
    %v4072 = vadd.f32 %v4071, %v4066
    %v4073 = vadd.f32 %v4072, %v4017
    %v4075 = vrot.slane %v3900, 6
    %v4077 = vadd.f32 %v3898, %v4075
    %v4078 = vadd.f32 %v4077, %v4060
    %v4079 = vadd.f32 %v4078, %v4066
    %v4080 = vadd.f32 %v4079, %v4017
    %v4082 = vrot.slane %v3961, 4
    %v4084 = vadd.f32 %v4077, %v4082
    %v4085 = vadd.f32 %v4084, %v4066
    %v4086 = vadd.f32 %v4085, %v4017
    %v4088 = vrot.slane %v3963, 2
    %v4090 = vadd.f32 %v4084, %v4088
    %v4091 = vadd.f32 %v4090, %v4017
    %v4092 = vadd.f32 %v3902, %v4075
    %v4093 = vadd.f32 %v4092, %v4082
    %v4094 = vadd.f32 %v4093, %v4088
    %v4095 = vadd.f32 %v4094, %v4022
    %v4097 = vrot.slane %v3904, 6
    %v4099 = vadd.f32 %v3902, %v4097
    %v4100 = vadd.f32 %v4099, %v4082
    %v4101 = vadd.f32 %v4100, %v4088
    %v4102 = vadd.f32 %v4101, %v4022
    %v4104 = vrot.slane %v3965, 4
    %v4106 = vadd.f32 %v4099, %v4104
    %v4107 = vadd.f32 %v4106, %v4088
    %v4108 = vadd.f32 %v4107, %v4022
    %v4110 = vrot.slane %v3967, 2
    %v4112 = vadd.f32 %v4106, %v4110
    %v4113 = vadd.f32 %v4112, %v4022
    %v4114 = vadd.f32 %v3908, %v4097
    %v4115 = vadd.f32 %v4114, %v4104
    %v4116 = vadd.f32 %v4115, %v4110
    %v4117 = vadd.f32 %v4116, %v4025
    %v4119 = vrot.slane %v3910, 6
    %v4121 = vadd.f32 %v3908, %v4119
    %v4122 = vadd.f32 %v4121, %v4104
    %v4123 = vadd.f32 %v4122, %v4110
    %v4124 = vadd.f32 %v4123, %v4025
    %v4126 = vrot.slane %v3971, 4
    %v4128 = vadd.f32 %v4121, %v4126
    %v4129 = vadd.f32 %v4128, %v4110
    %v4130 = vadd.f32 %v4129, %v4025
    %v4132 = vrot.slane %v3973, 2
    %v4134 = vadd.f32 %v4128, %v4132
    %v4135 = vadd.f32 %v4134, %v4025
    %v4136 = vadd.f32 %v3912, %v4119
    %v4137 = vadd.f32 %v4136, %v4126
    %v4138 = vadd.f32 %v4137, %v4132
    %v4139 = vadd.f32 %v4138, %v4030
    %v4141 = vrot.slane %v3914, 6
    %v4143 = vadd.f32 %v3912, %v4141
    %v4144 = vadd.f32 %v4143, %v4126
    %v4145 = vadd.f32 %v4144, %v4132
    %v4146 = vadd.f32 %v4145, %v4030
    %v4148 = vrot.slane %v3975, 4
    %v4150 = vadd.f32 %v4143, %v4148
    %v4151 = vadd.f32 %v4150, %v4132
    %v4152 = vadd.f32 %v4151, %v4030
    %v4154 = vrot.slane %v3977, 2
    %v4156 = vadd.f32 %v4150, %v4154
    %v4157 = vadd.f32 %v4156, %v4030
    %v4158 = vrot.slane %v3975, 6
    %v4160 = vadd.f32 %v3914, %v4158
    %v4161 = vrot.slane %v3977, 4
    %v4163 = vadd.f32 %v4160, %v4161
    %v4165 = vrot.slane %v4033, 2
    %v4167 = vadd.f32 %v4163, %v4165
    %v4168 = vrot.slane %v3977, 6
    %v4170 = vadd.f32 %v3975, %v4168
    %v4171 = vrot.slane %v4033, 4
    %v4173 = vadd.f32 %v4170, %v4171
    %v4174 = vrot.slane %v4033, 6
    %v4176 = vadd.f32 %v3977, %v4174
    %v4177 = vsel %vm260, %v3888, %v4039
    %v4178 = vsel %vm104, %v4177, %v4043
    %v4179 = vsel %vm266, %v4178, %v4047
    %v4180 = vsel %vm260, %v4051, %v4058
    %v4181 = vsel %vm104, %v4180, %v4064
    %v4182 = vsel %vm266, %v4181, %v4069
    %v4183 = vsel %vm260, %v4073, %v4080
    %v4184 = vsel %vm104, %v4183, %v4086
    %v4185 = vsel %vm266, %v4184, %v4091
    %v4186 = vsel %vm260, %v4095, %v4102
    %v4187 = vsel %vm104, %v4186, %v4108
    %v4188 = vsel %vm266, %v4187, %v4113
    %v4190 = vrot.slane %v4167, 6
    %v4193 = vrot.slane %v4173, 4
    %v4196 = vrot.slane %v4176, 2
    %v4198 = vsel %vm260, %v4117, %v4124
    %v4199 = vsel %vm104, %v4198, %v4130
    %v4200 = vsel %vm266, %v4199, %v4135
    %v4201 = vsel %vm260, %v4139, %v4146
    %v4202 = vsel %vm104, %v4201, %v4152
    %v4203 = vsel %vm266, %v4202, %v4157
    %v4204 = vsel %vm260, %v4190, %v4193
    %v4205 = vsel %vm104, %v4204, %v4196
    %v4206 = vsel %vm266, %v4205, %v4033
    %v4207 = vld [vmem:[%s6 + $0x1] sm:$0x3]
    %v4209 = vlaneseq
    %v4210 = vshrl.u32 %v4209, 7
    %v4211 = vsub.s32 0, %v4210
    %v4212 = vrot.slane %v4207, %v4211
    %v4213 = vlaneseq
    %v4214 = vshrl.u32 %v4213, 7
    %v4215 = vsub.s32 1, %v4214
    %v4216 = vrot.slane %v4207, %v4215
    %4217 = vrot.lane.b32.xlu0 %v4212, 16
    %v4218 = vpop.permute.xlu0 %4217
    %4219 = vrot.lane.b32.xlu0 %v4216, 16
    %v4220 = vpop.permute.xlu0 %4219
    %v4221 = vsel %vm2081, %v4218, %v4220
    %v4223 = vadd.f32 %v4179, %v4221
    %v4224 = vadd.f32 %v4182, %v4221
    %v4225 = vadd.f32 %v4185, %v4221
    %v4226 = vadd.f32 %v4188, %v4221
    %v4227 = vadd.f32 %v4200, %v4221
    %v4228 = vadd.f32 %v4203, %v4221
    %v4229 = vadd.f32 %v4206, %v4221
    %v4230 = vtanh.pop %v4223
    %v4231 = vtanh.pop %v4224
    %v4232 = vtanh.pop %v4225
    %v4233 = vtanh.pop %v4226
    %v4234 = vtanh.pop %v4227
    %v4235 = vtanh.pop %v4228
    %v4236 = vtanh.pop %v4229
    %4237 = vst [vmem:[%s7] sm:$0xff] %v4230
    %4238 = vst [vmem:[%s7 + $0x8] sm:$0xff] %v4231
    %4239 = vst [vmem:[%s7 + $0x10] sm:$0xff] %v4232
    %4240 = vst [vmem:[%s7 + $0x18] sm:$0xff] %v4233
    %4241 = vst [vmem:[%s7 + $0x20] sm:$0xff] %v4234
    %4242 = vst [vmem:[%s7 + $0x28] sm:$0xff] %v4235
    %4243 = vst [vmem:[%s7 + $0x30] sm:$0xff] %v4236
    // Predicated region
    $region46: #{forward.1} parent=1 // pred_check
      _
    $region47: #{forward.1} parent=1 // pred_check_branch
      %4245 = sbr.rel (0) target = $region49
    $region48: #{forward.1} parent=1 // pred_region
      _
    $region49: #{forward.1} parent=1 // pred_fallthru
      _
    // Predicated region
    $region50: #{forward.1} parent=1 // pred_check
      _
    $region51: #{forward.1} parent=1 // pred_check_branch
      %4247 = sbr.rel (0) target = $region53
    $region52: #{forward.1} parent=1 // pred_region
      _
    $region53: #{forward.1} parent=1 // pred_fallthru
      _
    %4248 = vsyncpa [#allocation3], 1
    %4249 = vsyncpa [#allocation5], 1
    %4250 = vsyncpa [#allocation8], 1

</llo_original>
